<compile_context>
chip_gen: v6e
topology: v6e:2x2x1
jax: 0.10.0
libtpu: 0.0.40
codegen_flags: <defaults>
</compile_context>

<pallas_src>
import numpy as np

import jax
import jax.numpy as jnp
from jax.experimental import pallas as pl
from jax.experimental.pallas import tpu as pltpu

_CIN_PAD = 8  # pad the 3 input channels up to one sublane tile


# ----------------------------------------------------------------------------
# Fused kernel: conv1/bn1/relu -> conv2/bn2/relu -> conv3/bn3/relu
#               -> global-avg-pool -> fc.  One image per grid step.
# ----------------------------------------------------------------------------
def _fused_cnn_kernel(x_ref,
                      s1_ref, w1_ref, b1_ref,
                      s2_ref, w2_ref, b2_ref,
                      s3_ref, w3_ref, b3_ref,
                      fcw_ref, fcb_ref,
                      o_ref,
                      g1_ref, g2_ref, g3_ref):
    def conv_bn_relu(a, s_ref, w_ref, b_ref, g_ref):
        # a:     (Cin_pad, P)      activation, channels on sublanes (lane-dense)
        # s_ref: (9, P, Q)         bf16 0/1 per-tap gathers (stride-2 + zero pad)
        # w_ref: (Cout, 9*Cin_pad) f32 BN-scale-folded, tap-stacked conv weights
        # b_ref: (Cout, 1)         f32 folded conv-bias + BN shift
        # g_ref: (9*Cin_pad, Q)    f32 VMEM scratch holding all gathered taps
        cin_pad = a.shape[0]
        a_bf = a.astype(jnp.bfloat16)          # one cast per layer, not per tap
        for t in range(s_ref.shape[0]):        # unrolled over the 9 taps
            g_ref[t * cin_pad:(t + 1) * cin_pad, :] = jnp.dot(
                a_bf, s_ref[t], preferred_element_type=jnp.float32)
        # Single fused weight matmul per layer against the stacked taps.
        out = jnp.dot(w_ref[...], g_ref[...],
                      preferred_element_type=jnp.float32)
        return jnp.maximum(out + b_ref[...], 0.0)

    a = x_ref[0]                                           # (8, H*W)   bf16
    a = conv_bn_relu(a, s1_ref, w1_ref, b1_ref, g1_ref)    # (16, 64)   f32
    a = conv_bn_relu(a, s2_ref, w2_ref, b2_ref, g2_ref)    # (32, 16)
    a = conv_bn_relu(a, s3_ref, w3_ref, b3_ref, g3_ref)    # (64, 4)

    # AdaptiveAvgPool2d((1,1)) + Linear without any transpose: broadcast the
    # pooled column against the (64, out_dim) FC weight and reduce sublanes,
    # giving a lane-dense (1, out_dim) row for the only HBM write.
    pooled = jnp.mean(a, axis=1, keepdims=True)                      # (64, 1)
    out_row = jnp.sum(pooled * fcw_ref[...], axis=0, keepdims=True)  # (1, D)
    o_ref[0] = (out_row + fcb_ref[...]).astype(o_ref.dtype)


def _const_spec(arr):
    zeros = (0,) * arr.ndim
    return pl.BlockSpec(arr.shape, lambda n, _z=zeros: _z)


def fused_cnn_forward(x_nchw, consts):
    """Whole SimpleCNN forward as a single pallas_call (grid over batch)."""
    (s1, w1s, sh1, s2, w2s, sh2, s3, w3s, sh3, fcw, fcb) = consts
    n, c, h, w = x_nchw.shape
    out_dim = fcw.shape[1]

    # NCHW -> (N, Cin_pad, H*W): channels on sublanes, pixels on lanes.  The 3
    # input channels are zero-padded to 8 so all scratch writes are 8-aligned.
    x = x_nchw.reshape(n, c, h * w)
    x = jnp.pad(x, ((0, 0), (0, _CIN_PAD - c), (0, 0))).astype(jnp.bfloat16)

    const_inputs = (s1, w1s, sh1, s2, w2s, sh2, s3, w3s, sh3, fcw, fcb)
    inputs = (x,) + const_inputs

    in_specs = [pl.BlockSpec((1, _CIN_PAD, h * w), lambda i: (i, 0, 0))]
    in_specs += [_const_spec(a) for a in const_inputs]

    scratch_shapes = [
        pltpu.VMEM((9 * _CIN_PAD, s1.shape[2]), jnp.float32),      # (72,  64)
        pltpu.VMEM((9 * w1s.shape[0], s2.shape[2]), jnp.float32),  # (144, 16)
        pltpu.VMEM((9 * w2s.shape[0], s3.shape[2]), jnp.float32),  # (288,  4)
    ]

    # Advisory cost estimate (per-image layers x batch).
    layer_dims = [(_CIN_PAD, s1.shape[1], s1.shape[2], w1s.shape[0]),
                  (w1s.shape[0], s2.shape[1], s2.shape[2], w2s.shape[0]),
                  (w2s.shape[0], s3.shape[1], s3.shape[2], w3s.shape[0])]
    flops = 0
    for cin_p, p, q, cout in layer_dims:
        flops += 9 * 2 * cin_p * p * q + 2 * cout * 9 * cin_p * q
    flops += 2 * w3s.shape[0] * out_dim
    flops *= n
    bytes_accessed = sum(int(a.size) * a.dtype.itemsize for a in inputs)
    bytes_accessed += n * out_dim * 4

    out = pl.pallas_call(
        _fused_cnn_kernel,
        out_shape=jax.ShapeDtypeStruct((n, 1, out_dim), jnp.float32),
        grid=(n,),
        in_specs=in_specs,
        out_specs=pl.BlockSpec((1, 1, out_dim), lambda i: (i, 0, 0)),
        scratch_shapes=scratch_shapes,
        compiler_params=pltpu.CompilerParams(
            dimension_semantics=("parallel",)),
        cost_estimate=pl.CostEstimate(
            flops=int(flops), transcendentals=0,
            bytes_accessed=int(bytes_accessed)),
    )(*inputs)
    return out.reshape(n, out_dim)


# ----------------------------------------------------------------------------
# One-time constant preparation: per-image transposed gather matrices,
# BN folding, tap-stacked weights, FC transpose.
# ----------------------------------------------------------------------------
def _out_hw(x, ksize=3, stride=2, pad=1):
    return (x + 2 * pad - ksize) // stride + 1


def _gather_mats_t(hi, wi, ho, wo, ksize=3, stride=2, pad=1):
    """S[t] of shape (Hi*Wi, Ho*Wo): S[t][p_in, q_out] = 1 iff input pixel p_in
    is the tap-t source of output pixel q_out (zero rows where the tap falls in
    the padding region).  Per-image (no batch coupling)."""
    s = np.zeros((ksize * ksize, hi * wi, ho * wo), np.float32)
    for kh in range(ksize):
        for kw in range(ksize):
            t = kh * ksize + kw
            for oh in range(ho):
                ih = stride * oh + kh - pad
                if not 0 <= ih < hi:
                    continue
                for ow in range(wo):
                    iw = stride * ow + kw - pad
                    if not 0 <= iw < wi:
                        continue
                    s[t, ih * wi + iw, oh * wo + ow] = 1.0
    return jnp.asarray(s, jnp.bfloat16)   # 0/1 entries are exact in bf16


def prepare_constants(params, height, width, eps=1e-5):
    def fold(w_oihw, bias, bn, cin_pad):
        gamma, beta, mean, var = bn
        scale = gamma / jnp.sqrt(var + eps)                 # (Cout,)
        shift = (bias - mean) * scale + beta                # (Cout,)
        cout, cin = w_oihw.shape[0], w_oihw.shape[1]
        wk = w_oihw * scale[:, None, None, None]            # (Cout, Cin, 3, 3)
        wk = jnp.transpose(wk, (0, 2, 3, 1)).reshape(cout, 9, cin)
        if cin_pad > cin:
            wk = jnp.pad(wk, ((0, 0), (0, 0), (0, cin_pad - cin)))
        wk = wk.reshape(cout, 9 * cin_pad)                  # tap-stacked
        return (wk.astype(jnp.float32),
                shift.reshape(-1, 1).astype(jnp.float32))

    h1, w1 = _out_hw(height), _out_hw(width)
    h2, w2 = _out_hw(h1), _out_hw(w1)
    h3, w3 = _out_hw(h2), _out_hw(w2)

    s1 = _gather_mats_t(height, width, h1, w1)
    s2 = _gather_mats_t(h1, w1, h2, w2)
    s3 = _gather_mats_t(h2, w2, h3, w3)

    w1s, sh1 = fold(params["conv1_w"], params["conv1_b"], params["bn1"], _CIN_PAD)
    w2s, sh2 = fold(params["conv2_w"], params["conv2_b"], params["bn2"],
                    params["conv2_w"].shape[1])
    w3s, sh3 = fold(params["conv3_w"], params["conv3_b"], params["bn3"],
                    params["conv3_w"].shape[1])

    fcw = params["fc_w"].T.astype(jnp.float32)              # (64, out_dim)
    fcb = params["fc_b"].reshape(1, -1).astype(jnp.float32)
    return (s1, w1s, sh1, s2, w2s, sh2, s3, w3s, sh3, fcw, fcb)


# ----------------------------------------------------------------------------
# Parameter init (deterministic, synthetic; eval-mode BN statistics)
# ----------------------------------------------------------------------------
def init_params(key, out_dim):
    def conv_p(k, cin, cout):
        k1, k2 = jax.random.split(k)
        w = jax.random.normal(k1, (cout, cin, 3, 3), jnp.float32) * 0.1
        b = jax.random.normal(k2, (cout,), jnp.float32) * 0.05
        return w, b

    def bn_p(k, ch):
        k1, k2, k3, k4 = jax.random.split(k, 4)
        gamma = 1.0 + 0.1 * jax.random.normal(k1, (ch,), jnp.float32)
        beta = 0.05 * jax.random.normal(k2, (ch,), jnp.float32)
        mean = 0.1 * jax.random.normal(k3, (ch,), jnp.float32)
        var = jnp.abs(0.5 + 0.1 * jax.random.normal(k4, (ch,), jnp.float32))
        return gamma, beta, mean, var

    keys = jax.random.split(key, 8)
    p = {}
    p["conv1_w"], p["conv1_b"] = conv_p(keys[0], 3, 16)
    p["bn1"] = bn_p(keys[1], 16)
    p["conv2_w"], p["conv2_b"] = conv_p(keys[2], 16, 32)
    p["bn2"] = bn_p(keys[3], 32)
    p["conv3_w"], p["conv3_b"] = conv_p(keys[4], 32, 64)
    p["bn3"] = bn_p(keys[5], 64)
    p["fc_w"] = jax.random.normal(keys[6], (out_dim, 64), jnp.float32) * 0.1
    p["fc_b"] = jax.random.normal(keys[7], (out_dim,), jnp.float32) * 0.05
    return p


# ----------------------------------------------------------------------------
# Plain-JAX f32 reference (correctness sanity check)
# ----------------------------------------------------------------------------
def reference_forward(x_nchw, params):
    x = jnp.transpose(x_nchw, (0, 2, 3, 1))
    eps = 1e-5

    def layer(x_nhwc, w_oihw, b, bn):
        gamma, beta, mean, var = bn
        w_hwio = jnp.transpose(w_oihw, (2, 3, 1, 0))
        y = jax.lax.conv_general_dilated(
            x_nhwc, w_hwio, window_strides=(2, 2), padding=((1, 1), (1, 1)),
            dimension_numbers=("NHWC", "HWIO", "NHWC")) + b
        y = (y - mean) / jnp.sqrt(var + eps) * gamma + beta
        return jnp.maximum(y, 0.0)

    x = layer(x, params["conv1_w"], params["conv1_b"], params["bn1"])
    x = layer(x, params["conv2_w"], params["conv2_b"], params["bn2"])
    x = layer(x, params["conv3_w"], params["conv3_b"], params["bn3"])
    pooled = jnp.mean(x, axis=(1, 2))
    return pooled @ params["fc_w"].T + params["fc_b"]


if __name__ == "__main__":
    OUT_DIM = 512                      # nn.Linear(64, out_dim) module default
    N, C, H, W = 2, 3, 16, 16          # conv1 requires 3 input channels

    key = jax.random.PRNGKey(0)
    k_x, k_p = jax.random.split(key)
    x = jax.random.normal(k_x, (N, C, H, W), jnp.float32)
    params = init_params(k_p, OUT_DIM)

    consts = prepare_constants(params, H, W)        # one-time parameter prep

    out = jax.block_until_ready(jax.jit(fused_cnn_forward)(x, consts))
    ref = jax.block_until_ready(reference_forward(x, params))

    assert out.shape == (N, OUT_DIM), out.shape
    # bf16 MXU path for the gather matmuls => ~1e-2-level error vs f32 ref.
    max_err = float(jnp.max(jnp.abs(out - ref)))
    assert jnp.allclose(out, ref, atol=5e-2, rtol=5e-2), max_err

    print("KERNEL_OK")
</pallas_src>

<mosaic_0001>
module attributes {stable_mosaic.version = 11 : i64} {
  func.func @_fused_cnn_kernel(%arg0: i32, %arg1: memref<1x8x256xbf16, #tpu.memory_space<vmem>>, %arg2: memref<9x256x64xbf16, #tpu.memory_space<vmem>>, %arg3: memref<16x72xf32, #tpu.memory_space<vmem>>, %arg4: memref<16x1xf32, #tpu.memory_space<vmem>>, %arg5: memref<9x64x16xbf16, #tpu.memory_space<vmem>>, %arg6: memref<32x144xf32, #tpu.memory_space<vmem>>, %arg7: memref<32x1xf32, #tpu.memory_space<vmem>>, %arg8: memref<9x16x4xbf16, #tpu.memory_space<vmem>>, %arg9: memref<64x288xf32, #tpu.memory_space<vmem>>, %arg10: memref<64x1xf32, #tpu.memory_space<vmem>>, %arg11: memref<64x512xf32, #tpu.memory_space<vmem>>, %arg12: memref<1x512xf32, #tpu.memory_space<vmem>>, %arg13: memref<1x1x512xf32, #tpu.memory_space<vmem>>, %arg14: memref<72x64xf32, #tpu.memory_space<vmem>>, %arg15: memref<144x16xf32, #tpu.memory_space<vmem>>, %arg16: memref<288x4xf32, #tpu.memory_space<vmem>>) attributes {dimension_semantics = [#tpu.dimension_semantics<parallel>], iteration_bounds = array<i64: 2>, scalar_prefetch = 0 : i64, scratch_operands = 3 : i64, tpu.core_type = #tpu.core_type<tc>, window_params = [{transform_indices = @transform_0, window_bounds = array<i64: 1, 8, 256>}, {pipeline_mode = #tpu.pipeline_mode<synchronous>, transform_indices = @transform_1, window_bounds = array<i64: 9, 256, 64>}, {pipeline_mode = #tpu.pipeline_mode<synchronous>, transform_indices = @transform_2, window_bounds = array<i64: 16, 72>}, {pipeline_mode = #tpu.pipeline_mode<synchronous>, transform_indices = @transform_3, window_bounds = array<i64: 16, 1>}, {pipeline_mode = #tpu.pipeline_mode<synchronous>, transform_indices = @transform_4, window_bounds = array<i64: 9, 64, 16>}, {pipeline_mode = #tpu.pipeline_mode<synchronous>, transform_indices = @transform_5, window_bounds = array<i64: 32, 144>}, {pipeline_mode = #tpu.pipeline_mode<synchronous>, transform_indices = @transform_6, window_bounds = array<i64: 32, 1>}, {pipeline_mode = #tpu.pipeline_mode<synchronous>, transform_indices = @transform_7, window_bounds = array<i64: 9, 16, 4>}, {pipeline_mode = #tpu.pipeline_mode<synchronous>, transform_indices = @transform_8, window_bounds = array<i64: 64, 288>}, {pipeline_mode = #tpu.pipeline_mode<synchronous>, transform_indices = @transform_9, window_bounds = array<i64: 64, 1>}, {pipeline_mode = #tpu.pipeline_mode<synchronous>, transform_indices = @transform_10, window_bounds = array<i64: 64, 512>}, {pipeline_mode = #tpu.pipeline_mode<synchronous>, transform_indices = @transform_11, window_bounds = array<i64: 1, 512>}, {transform_indices = @transform_12, window_bounds = array<i64: 1, 1, 512>}]} {
    %c0 = arith.constant 0 : index
    %c0_0 = arith.constant 0 : index
    %c0_1 = arith.constant 0 : index
    %0 = vector.load %arg1[%c0, %c0_0, %c0_1] : memref<1x8x256xbf16, #tpu.memory_space<vmem>>, vector<1x8x256xbf16>
    %1 = vector.shape_cast %0 : vector<1x8x256xbf16> to vector<8x256xbf16>
    %c0_2 = arith.constant 0 : index
    %c0_3 = arith.constant 0 : index
    %c0_4 = arith.constant 0 : index
    %2 = vector.load %arg2[%c0_2, %c0_3, %c0_4] : memref<9x256x64xbf16, #tpu.memory_space<vmem>>, vector<1x256x64xbf16>
    %3 = vector.shape_cast %2 : vector<1x256x64xbf16> to vector<256x64xbf16>
    %cst = arith.constant dense<0.000000e+00> : vector<8x64xf32>
    %4 = tpu.matmul %1, %3, %cst {dimension_numbers = #tpu.dot_dimension_numbers<[1], [0], [0], [1], [0, 0, 1, 1], [], []>} : vector<8x256xbf16>, vector<256x64xbf16>, vector<8x64xf32> -> vector<8x64xf32>
    %c0_5 = arith.constant 0 : index
    %c0_6 = arith.constant 0 : index
    %5 = vector.load %arg14[%c0_5, %c0_6] : memref<72x64xf32, #tpu.memory_space<vmem>>, vector<8x64xf32>
    tpu.vector_store %arg14[%c0_5, %c0_6], %4 {strides = array<i32>} : memref<72x64xf32, #tpu.memory_space<vmem>>, vector<8x64xf32>,
    %c1 = arith.constant 1 : index
    %c0_7 = arith.constant 0 : index
    %c0_8 = arith.constant 0 : index
    %6 = vector.load %arg2[%c1, %c0_7, %c0_8] : memref<9x256x64xbf16, #tpu.memory_space<vmem>>, vector<1x256x64xbf16>
    %7 = vector.shape_cast %6 : vector<1x256x64xbf16> to vector<256x64xbf16>
    %cst_9 = arith.constant dense<0.000000e+00> : vector<8x64xf32>
    %8 = tpu.matmul %1, %7, %cst_9 {dimension_numbers = #tpu.dot_dimension_numbers<[1], [0], [0], [1], [0, 0, 1, 1], [], []>} : vector<8x256xbf16>, vector<256x64xbf16>, vector<8x64xf32> -> vector<8x64xf32>
    %c8 = arith.constant 8 : index
    %c0_10 = arith.constant 0 : index
    %9 = vector.load %arg14[%c8, %c0_10] : memref<72x64xf32, #tpu.memory_space<vmem>>, vector<8x64xf32>
    tpu.vector_store %arg14[%c8, %c0_10], %8 {strides = array<i32>} : memref<72x64xf32, #tpu.memory_space<vmem>>, vector<8x64xf32>,
    %c2 = arith.constant 2 : index
    %c0_11 = arith.constant 0 : index
    %c0_12 = arith.constant 0 : index
    %10 = vector.load %arg2[%c2, %c0_11, %c0_12] : memref<9x256x64xbf16, #tpu.memory_space<vmem>>, vector<1x256x64xbf16>
    %11 = vector.shape_cast %10 : vector<1x256x64xbf16> to vector<256x64xbf16>
    %cst_13 = arith.constant dense<0.000000e+00> : vector<8x64xf32>
    %12 = tpu.matmul %1, %11, %cst_13 {dimension_numbers = #tpu.dot_dimension_numbers<[1], [0], [0], [1], [0, 0, 1, 1], [], []>} : vector<8x256xbf16>, vector<256x64xbf16>, vector<8x64xf32> -> vector<8x64xf32>
    %c16 = arith.constant 16 : index
    %c0_14 = arith.constant 0 : index
    %13 = vector.load %arg14[%c16, %c0_14] : memref<72x64xf32, #tpu.memory_space<vmem>>, vector<8x64xf32>
    tpu.vector_store %arg14[%c16, %c0_14], %12 {strides = array<i32>} : memref<72x64xf32, #tpu.memory_space<vmem>>, vector<8x64xf32>,
    %c3 = arith.constant 3 : index
    %c0_15 = arith.constant 0 : index
    %c0_16 = arith.constant 0 : index
    %14 = vector.load %arg2[%c3, %c0_15, %c0_16] : memref<9x256x64xbf16, #tpu.memory_space<vmem>>, vector<1x256x64xbf16>
    %15 = vector.shape_cast %14 : vector<1x256x64xbf16> to vector<256x64xbf16>
    %cst_17 = arith.constant dense<0.000000e+00> : vector<8x64xf32>
    %16 = tpu.matmul %1, %15, %cst_17 {dimension_numbers = #tpu.dot_dimension_numbers<[1], [0], [0], [1], [0, 0, 1, 1], [], []>} : vector<8x256xbf16>, vector<256x64xbf16>, vector<8x64xf32> -> vector<8x64xf32>
    %c24 = arith.constant 24 : index
    %c0_18 = arith.constant 0 : index
    %17 = vector.load %arg14[%c24, %c0_18] : memref<72x64xf32, #tpu.memory_space<vmem>>, vector<8x64xf32>
    tpu.vector_store %arg14[%c24, %c0_18], %16 {strides = array<i32>} : memref<72x64xf32, #tpu.memory_space<vmem>>, vector<8x64xf32>,
    %c4 = arith.constant 4 : index
    %c0_19 = arith.constant 0 : index
    %c0_20 = arith.constant 0 : index
    %18 = vector.load %arg2[%c4, %c0_19, %c0_20] : memref<9x256x64xbf16, #tpu.memory_space<vmem>>, vector<1x256x64xbf16>
    %19 = vector.shape_cast %18 : vector<1x256x64xbf16> to vector<256x64xbf16>
    %cst_21 = arith.constant dense<0.000000e+00> : vector<8x64xf32>
    %20 = tpu.matmul %1, %19, %cst_21 {dimension_numbers = #tpu.dot_dimension_numbers<[1], [0], [0], [1], [0, 0, 1, 1], [], []>} : vector<8x256xbf16>, vector<256x64xbf16>, vector<8x64xf32> -> vector<8x64xf32>
    %c32 = arith.constant 32 : index
    %c0_22 = arith.constant 0 : index
    %21 = vector.load %arg14[%c32, %c0_22] : memref<72x64xf32, #tpu.memory_space<vmem>>, vector<8x64xf32>
    tpu.vector_store %arg14[%c32, %c0_22], %20 {strides = array<i32>} : memref<72x64xf32, #tpu.memory_space<vmem>>, vector<8x64xf32>,
    %c5 = arith.constant 5 : index
    %c0_23 = arith.constant 0 : index
    %c0_24 = arith.constant 0 : index
    %22 = vector.load %arg2[%c5, %c0_23, %c0_24] : memref<9x256x64xbf16, #tpu.memory_space<vmem>>, vector<1x256x64xbf16>
    %23 = vector.shape_cast %22 : vector<1x256x64xbf16> to vector<256x64xbf16>
    %cst_25 = arith.constant dense<0.000000e+00> : vector<8x64xf32>
    %24 = tpu.matmul %1, %23, %cst_25 {dimension_numbers = #tpu.dot_dimension_numbers<[1], [0], [0], [1], [0, 0, 1, 1], [], []>} : vector<8x256xbf16>, vector<256x64xbf16>, vector<8x64xf32> -> vector<8x64xf32>
    %c40 = arith.constant 40 : index
    %c0_26 = arith.constant 0 : index
    %25 = vector.load %arg14[%c40, %c0_26] : memref<72x64xf32, #tpu.memory_space<vmem>>, vector<8x64xf32>
    tpu.vector_store %arg14[%c40, %c0_26], %24 {strides = array<i32>} : memref<72x64xf32, #tpu.memory_space<vmem>>, vector<8x64xf32>,
    %c6 = arith.constant 6 : index
    %c0_27 = arith.constant 0 : index
    %c0_28 = arith.constant 0 : index
    %26 = vector.load %arg2[%c6, %c0_27, %c0_28] : memref<9x256x64xbf16, #tpu.memory_space<vmem>>, vector<1x256x64xbf16>
    %27 = vector.shape_cast %26 : vector<1x256x64xbf16> to vector<256x64xbf16>
    %cst_29 = arith.constant dense<0.000000e+00> : vector<8x64xf32>
    %28 = tpu.matmul %1, %27, %cst_29 {dimension_numbers = #tpu.dot_dimension_numbers<[1], [0], [0], [1], [0, 0, 1, 1], [], []>} : vector<8x256xbf16>, vector<256x64xbf16>, vector<8x64xf32> -> vector<8x64xf32>
    %c48 = arith.constant 48 : index
    %c0_30 = arith.constant 0 : index
    %29 = vector.load %arg14[%c48, %c0_30] : memref<72x64xf32, #tpu.memory_space<vmem>>, vector<8x64xf32>
    tpu.vector_store %arg14[%c48, %c0_30], %28 {strides = array<i32>} : memref<72x64xf32, #tpu.memory_space<vmem>>, vector<8x64xf32>,
    %c7 = arith.constant 7 : index
    %c0_31 = arith.constant 0 : index
    %c0_32 = arith.constant 0 : index
    %30 = vector.load %arg2[%c7, %c0_31, %c0_32] : memref<9x256x64xbf16, #tpu.memory_space<vmem>>, vector<1x256x64xbf16>
    %31 = vector.shape_cast %30 : vector<1x256x64xbf16> to vector<256x64xbf16>
    %cst_33 = arith.constant dense<0.000000e+00> : vector<8x64xf32>
    %32 = tpu.matmul %1, %31, %cst_33 {dimension_numbers = #tpu.dot_dimension_numbers<[1], [0], [0], [1], [0, 0, 1, 1], [], []>} : vector<8x256xbf16>, vector<256x64xbf16>, vector<8x64xf32> -> vector<8x64xf32>
    %c56 = arith.constant 56 : index
    %c0_34 = arith.constant 0 : index
    %33 = vector.load %arg14[%c56, %c0_34] : memref<72x64xf32, #tpu.memory_space<vmem>>, vector<8x64xf32>
    tpu.vector_store %arg14[%c56, %c0_34], %32 {strides = array<i32>} : memref<72x64xf32, #tpu.memory_space<vmem>>, vector<8x64xf32>,
    %c8_35 = arith.constant 8 : index
    %c0_36 = arith.constant 0 : index
    %c0_37 = arith.constant 0 : index
    %34 = vector.load %arg2[%c8_35, %c0_36, %c0_37] : memref<9x256x64xbf16, #tpu.memory_space<vmem>>, vector<1x256x64xbf16>
    %35 = vector.shape_cast %34 : vector<1x256x64xbf16> to vector<256x64xbf16>
    %cst_38 = arith.constant dense<0.000000e+00> : vector<8x64xf32>
    %36 = tpu.matmul %1, %35, %cst_38 {dimension_numbers = #tpu.dot_dimension_numbers<[1], [0], [0], [1], [0, 0, 1, 1], [], []>} : vector<8x256xbf16>, vector<256x64xbf16>, vector<8x64xf32> -> vector<8x64xf32>
    %c64 = arith.constant 64 : index
    %c0_39 = arith.constant 0 : index
    %37 = vector.load %arg14[%c64, %c0_39] : memref<72x64xf32, #tpu.memory_space<vmem>>, vector<8x64xf32>
    tpu.vector_store %arg14[%c64, %c0_39], %36 {strides = array<i32>} : memref<72x64xf32, #tpu.memory_space<vmem>>, vector<8x64xf32>,
    %c0_40 = arith.constant 0 : index
    %c0_41 = arith.constant 0 : index
    %38 = vector.load %arg3[%c0_40, %c0_41] : memref<16x72xf32, #tpu.memory_space<vmem>>, vector<16x72xf32>
    %c0_42 = arith.constant 0 : index
    %c0_43 = arith.constant 0 : index
    %39 = vector.load %arg14[%c0_42, %c0_43] : memref<72x64xf32, #tpu.memory_space<vmem>>, vector<72x64xf32>
    %cst_44 = arith.constant dense<0.000000e+00> : vector<16x64xf32>
    %40 = tpu.matmul %38, %39, %cst_44 {dimension_numbers = #tpu.dot_dimension_numbers<[1], [0], [0], [1], [0, 0, 1, 1], [], []>} : vector<16x72xf32>, vector<72x64xf32>, vector<16x64xf32> -> vector<16x64xf32>
    %c0_45 = arith.constant 0 : index
    %c0_46 = arith.constant 0 : index
    %41 = vector.load %arg4[%c0_45, %c0_46] : memref<16x1xf32, #tpu.memory_space<vmem>>, vector<16x1xf32>
    %42 = vector.broadcast %41 : vector<16x1xf32> to vector<16x64xf32>
    %43 = arith.addf %40, %42 : vector<16x64xf32>
    %cst_47 = arith.constant 0.000000e+00 : f32
    %44 = vector.broadcast %cst_47 : f32 to vector<16x64xf32>
    %45 = arith.maximumf %43, %44 : vector<16x64xf32>
    %46 = arith.truncf %45 : vector<16x64xf32> to vector<16x64xbf16>
    %c0_48 = arith.constant 0 : index
    %c0_49 = arith.constant 0 : index
    %c0_50 = arith.constant 0 : index
    %47 = vector.load %arg5[%c0_48, %c0_49, %c0_50] : memref<9x64x16xbf16, #tpu.memory_space<vmem>>, vector<1x64x16xbf16>
    %48 = vector.shape_cast %47 : vector<1x64x16xbf16> to vector<64x16xbf16>
    %cst_51 = arith.constant dense<0.000000e+00> : vector<16x16xf32>
    %49 = tpu.matmul %46, %48, %cst_51 {dimension_numbers = #tpu.dot_dimension_numbers<[1], [0], [0], [1], [0, 0, 1, 1], [], []>} : vector<16x64xbf16>, vector<64x16xbf16>, vector<16x16xf32> -> vector<16x16xf32>
    %c0_52 = arith.constant 0 : index
    %c0_53 = arith.constant 0 : index
    %50 = vector.load %arg15[%c0_52, %c0_53] : memref<144x16xf32, #tpu.memory_space<vmem>>, vector<16x16xf32>
    tpu.vector_store %arg15[%c0_52, %c0_53], %49 {strides = array<i32>} : memref<144x16xf32, #tpu.memory_space<vmem>>, vector<16x16xf32>,
    %c1_54 = arith.constant 1 : index
    %c0_55 = arith.constant 0 : index
    %c0_56 = arith.constant 0 : index
    %51 = vector.load %arg5[%c1_54, %c0_55, %c0_56] : memref<9x64x16xbf16, #tpu.memory_space<vmem>>, vector<1x64x16xbf16>
    %52 = vector.shape_cast %51 : vector<1x64x16xbf16> to vector<64x16xbf16>
    %cst_57 = arith.constant dense<0.000000e+00> : vector<16x16xf32>
    %53 = tpu.matmul %46, %52, %cst_57 {dimension_numbers = #tpu.dot_dimension_numbers<[1], [0], [0], [1], [0, 0, 1, 1], [], []>} : vector<16x64xbf16>, vector<64x16xbf16>, vector<16x16xf32> -> vector<16x16xf32>
    %c16_58 = arith.constant 16 : index
    %c0_59 = arith.constant 0 : index
    %54 = vector.load %arg15[%c16_58, %c0_59] : memref<144x16xf32, #tpu.memory_space<vmem>>, vector<16x16xf32>
    tpu.vector_store %arg15[%c16_58, %c0_59], %53 {strides = array<i32>} : memref<144x16xf32, #tpu.memory_space<vmem>>, vector<16x16xf32>,
    %c2_60 = arith.constant 2 : index
    %c0_61 = arith.constant 0 : index
    %c0_62 = arith.constant 0 : index
    %55 = vector.load %arg5[%c2_60, %c0_61, %c0_62] : memref<9x64x16xbf16, #tpu.memory_space<vmem>>, vector<1x64x16xbf16>
    %56 = vector.shape_cast %55 : vector<1x64x16xbf16> to vector<64x16xbf16>
    %cst_63 = arith.constant dense<0.000000e+00> : vector<16x16xf32>
    %57 = tpu.matmul %46, %56, %cst_63 {dimension_numbers = #tpu.dot_dimension_numbers<[1], [0], [0], [1], [0, 0, 1, 1], [], []>} : vector<16x64xbf16>, vector<64x16xbf16>, vector<16x16xf32> -> vector<16x16xf32>
    %c32_64 = arith.constant 32 : index
    %c0_65 = arith.constant 0 : index
    %58 = vector.load %arg15[%c32_64, %c0_65] : memref<144x16xf32, #tpu.memory_space<vmem>>, vector<16x16xf32>
    tpu.vector_store %arg15[%c32_64, %c0_65], %57 {strides = array<i32>} : memref<144x16xf32, #tpu.memory_space<vmem>>, vector<16x16xf32>,
    %c3_66 = arith.constant 3 : index
    %c0_67 = arith.constant 0 : index
    %c0_68 = arith.constant 0 : index
    %59 = vector.load %arg5[%c3_66, %c0_67, %c0_68] : memref<9x64x16xbf16, #tpu.memory_space<vmem>>, vector<1x64x16xbf16>
    %60 = vector.shape_cast %59 : vector<1x64x16xbf16> to vector<64x16xbf16>
    %cst_69 = arith.constant dense<0.000000e+00> : vector<16x16xf32>
    %61 = tpu.matmul %46, %60, %cst_69 {dimension_numbers = #tpu.dot_dimension_numbers<[1], [0], [0], [1], [0, 0, 1, 1], [], []>} : vector<16x64xbf16>, vector<64x16xbf16>, vector<16x16xf32> -> vector<16x16xf32>
    %c48_70 = arith.constant 48 : index
    %c0_71 = arith.constant 0 : index
    %62 = vector.load %arg15[%c48_70, %c0_71] : memref<144x16xf32, #tpu.memory_space<vmem>>, vector<16x16xf32>
    tpu.vector_store %arg15[%c48_70, %c0_71], %61 {strides = array<i32>} : memref<144x16xf32, #tpu.memory_space<vmem>>, vector<16x16xf32>,
    %c4_72 = arith.constant 4 : index
    %c0_73 = arith.constant 0 : index
    %c0_74 = arith.constant 0 : index
    %63 = vector.load %arg5[%c4_72, %c0_73, %c0_74] : memref<9x64x16xbf16, #tpu.memory_space<vmem>>, vector<1x64x16xbf16>
    %64 = vector.shape_cast %63 : vector<1x64x16xbf16> to vector<64x16xbf16>
    %cst_75 = arith.constant dense<0.000000e+00> : vector<16x16xf32>
    %65 = tpu.matmul %46, %64, %cst_75 {dimension_numbers = #tpu.dot_dimension_numbers<[1], [0], [0], [1], [0, 0, 1, 1], [], []>} : vector<16x64xbf16>, vector<64x16xbf16>, vector<16x16xf32> -> vector<16x16xf32>
    %c64_76 = arith.constant 64 : index
    %c0_77 = arith.constant 0 : index
    %66 = vector.load %arg15[%c64_76, %c0_77] : memref<144x16xf32, #tpu.memory_space<vmem>>, vector<16x16xf32>
    tpu.vector_store %arg15[%c64_76, %c0_77], %65 {strides = array<i32>} : memref<144x16xf32, #tpu.memory_space<vmem>>, vector<16x16xf32>,
    %c5_78 = arith.constant 5 : index
    %c0_79 = arith.constant 0 : index
    %c0_80 = arith.constant 0 : index
    %67 = vector.load %arg5[%c5_78, %c0_79, %c0_80] : memref<9x64x16xbf16, #tpu.memory_space<vmem>>, vector<1x64x16xbf16>
    %68 = vector.shape_cast %67 : vector<1x64x16xbf16> to vector<64x16xbf16>
    %cst_81 = arith.constant dense<0.000000e+00> : vector<16x16xf32>
    %69 = tpu.matmul %46, %68, %cst_81 {dimension_numbers = #tpu.dot_dimension_numbers<[1], [0], [0], [1], [0, 0, 1, 1], [], []>} : vector<16x64xbf16>, vector<64x16xbf16>, vector<16x16xf32> -> vector<16x16xf32>
    %c80 = arith.constant 80 : index
    %c0_82 = arith.constant 0 : index
    %70 = vector.load %arg15[%c80, %c0_82] : memref<144x16xf32, #tpu.memory_space<vmem>>, vector<16x16xf32>
    tpu.vector_store %arg15[%c80, %c0_82], %69 {strides = array<i32>} : memref<144x16xf32, #tpu.memory_space<vmem>>, vector<16x16xf32>,
    %c6_83 = arith.constant 6 : index
    %c0_84 = arith.constant 0 : index
    %c0_85 = arith.constant 0 : index
    %71 = vector.load %arg5[%c6_83, %c0_84, %c0_85] : memref<9x64x16xbf16, #tpu.memory_space<vmem>>, vector<1x64x16xbf16>
    %72 = vector.shape_cast %71 : vector<1x64x16xbf16> to vector<64x16xbf16>
    %cst_86 = arith.constant dense<0.000000e+00> : vector<16x16xf32>
    %73 = tpu.matmul %46, %72, %cst_86 {dimension_numbers = #tpu.dot_dimension_numbers<[1], [0], [0], [1], [0, 0, 1, 1], [], []>} : vector<16x64xbf16>, vector<64x16xbf16>, vector<16x16xf32> -> vector<16x16xf32>
    %c96 = arith.constant 96 : index
    %c0_87 = arith.constant 0 : index
    %74 = vector.load %arg15[%c96, %c0_87] : memref<144x16xf32, #tpu.memory_space<vmem>>, vector<16x16xf32>
    tpu.vector_store %arg15[%c96, %c0_87], %73 {strides = array<i32>} : memref<144x16xf32, #tpu.memory_space<vmem>>, vector<16x16xf32>,
    %c7_88 = arith.constant 7 : index
    %c0_89 = arith.constant 0 : index
    %c0_90 = arith.constant 0 : index
    %75 = vector.load %arg5[%c7_88, %c0_89, %c0_90] : memref<9x64x16xbf16, #tpu.memory_space<vmem>>, vector<1x64x16xbf16>
    %76 = vector.shape_cast %75 : vector<1x64x16xbf16> to vector<64x16xbf16>
    %cst_91 = arith.constant dense<0.000000e+00> : vector<16x16xf32>
    %77 = tpu.matmul %46, %76, %cst_91 {dimension_numbers = #tpu.dot_dimension_numbers<[1], [0], [0], [1], [0, 0, 1, 1], [], []>} : vector<16x64xbf16>, vector<64x16xbf16>, vector<16x16xf32> -> vector<16x16xf32>
    %c112 = arith.constant 112 : index
    %c0_92 = arith.constant 0 : index
    %78 = vector.load %arg15[%c112, %c0_92] : memref<144x16xf32, #tpu.memory_space<vmem>>, vector<16x16xf32>
    tpu.vector_store %arg15[%c112, %c0_92], %77 {strides = array<i32>} : memref<144x16xf32, #tpu.memory_space<vmem>>, vector<16x16xf32>,
    %c8_93 = arith.constant 8 : index
    %c0_94 = arith.constant 0 : index
    %c0_95 = arith.constant 0 : index
    %79 = vector.load %arg5[%c8_93, %c0_94, %c0_95] : memref<9x64x16xbf16, #tpu.memory_space<vmem>>, vector<1x64x16xbf16>
    %80 = vector.shape_cast %79 : vector<1x64x16xbf16> to vector<64x16xbf16>
    %cst_96 = arith.constant dense<0.000000e+00> : vector<16x16xf32>
    %81 = tpu.matmul %46, %80, %cst_96 {dimension_numbers = #tpu.dot_dimension_numbers<[1], [0], [0], [1], [0, 0, 1, 1], [], []>} : vector<16x64xbf16>, vector<64x16xbf16>, vector<16x16xf32> -> vector<16x16xf32>
    %c128 = arith.constant 128 : index
    %c0_97 = arith.constant 0 : index
    %82 = vector.load %arg15[%c128, %c0_97] : memref<144x16xf32, #tpu.memory_space<vmem>>, vector<16x16xf32>
    tpu.vector_store %arg15[%c128, %c0_97], %81 {strides = array<i32>} : memref<144x16xf32, #tpu.memory_space<vmem>>, vector<16x16xf32>,
    %c0_98 = arith.constant 0 : index
    %c0_99 = arith.constant 0 : index
    %83 = vector.load %arg6[%c0_98, %c0_99] : memref<32x144xf32, #tpu.memory_space<vmem>>, vector<32x144xf32>
    %c0_100 = arith.constant 0 : index
    %c0_101 = arith.constant 0 : index
    %84 = vector.load %arg15[%c0_100, %c0_101] : memref<144x16xf32, #tpu.memory_space<vmem>>, vector<144x16xf32>
    %cst_102 = arith.constant dense<0.000000e+00> : vector<32x16xf32>
    %85 = tpu.matmul %83, %84, %cst_102 {dimension_numbers = #tpu.dot_dimension_numbers<[1], [0], [0], [1], [0, 0, 1, 1], [], []>} : vector<32x144xf32>, vector<144x16xf32>, vector<32x16xf32> -> vector<32x16xf32>
    %c0_103 = arith.constant 0 : index
    %c0_104 = arith.constant 0 : index
    %86 = vector.load %arg7[%c0_103, %c0_104] : memref<32x1xf32, #tpu.memory_space<vmem>>, vector<32x1xf32>
    %87 = vector.broadcast %86 : vector<32x1xf32> to vector<32x16xf32>
    %88 = arith.addf %85, %87 : vector<32x16xf32>
    %cst_105 = arith.constant 0.000000e+00 : f32
    %89 = vector.broadcast %cst_105 : f32 to vector<32x16xf32>
    %90 = arith.maximumf %88, %89 : vector<32x16xf32>
    %91 = arith.truncf %90 : vector<32x16xf32> to vector<32x16xbf16>
    %c0_106 = arith.constant 0 : index
    %c0_107 = arith.constant 0 : index
    %c0_108 = arith.constant 0 : index
    %92 = vector.load %arg8[%c0_106, %c0_107, %c0_108] : memref<9x16x4xbf16, #tpu.memory_space<vmem>>, vector<1x16x4xbf16>
    %93 = vector.shape_cast %92 : vector<1x16x4xbf16> to vector<16x4xbf16>
    %cst_109 = arith.constant dense<0.000000e+00> : vector<32x4xf32>
    %94 = tpu.matmul %91, %93, %cst_109 {dimension_numbers = #tpu.dot_dimension_numbers<[1], [0], [0], [1], [0, 0, 1, 1], [], []>} : vector<32x16xbf16>, vector<16x4xbf16>, vector<32x4xf32> -> vector<32x4xf32>
    %c0_110 = arith.constant 0 : index
    %c0_111 = arith.constant 0 : index
    %95 = vector.load %arg16[%c0_110, %c0_111] : memref<288x4xf32, #tpu.memory_space<vmem>>, vector<32x4xf32>
    tpu.vector_store %arg16[%c0_110, %c0_111], %94 {strides = array<i32>} : memref<288x4xf32, #tpu.memory_space<vmem>>, vector<32x4xf32>,
    %c1_112 = arith.constant 1 : index
    %c0_113 = arith.constant 0 : index
    %c0_114 = arith.constant 0 : index
    %96 = vector.load %arg8[%c1_112, %c0_113, %c0_114] : memref<9x16x4xbf16, #tpu.memory_space<vmem>>, vector<1x16x4xbf16>
    %97 = vector.shape_cast %96 : vector<1x16x4xbf16> to vector<16x4xbf16>
    %cst_115 = arith.constant dense<0.000000e+00> : vector<32x4xf32>
    %98 = tpu.matmul %91, %97, %cst_115 {dimension_numbers = #tpu.dot_dimension_numbers<[1], [0], [0], [1], [0, 0, 1, 1], [], []>} : vector<32x16xbf16>, vector<16x4xbf16>, vector<32x4xf32> -> vector<32x4xf32>
    %c32_116 = arith.constant 32 : index
    %c0_117 = arith.constant 0 : index
    %99 = vector.load %arg16[%c32_116, %c0_117] : memref<288x4xf32, #tpu.memory_space<vmem>>, vector<32x4xf32>
    tpu.vector_store %arg16[%c32_116, %c0_117], %98 {strides = array<i32>} : memref<288x4xf32, #tpu.memory_space<vmem>>, vector<32x4xf32>,
    %c2_118 = arith.constant 2 : index
    %c0_119 = arith.constant 0 : index
    %c0_120 = arith.constant 0 : index
    %100 = vector.load %arg8[%c2_118, %c0_119, %c0_120] : memref<9x16x4xbf16, #tpu.memory_space<vmem>>, vector<1x16x4xbf16>
    %101 = vector.shape_cast %100 : vector<1x16x4xbf16> to vector<16x4xbf16>
    %cst_121 = arith.constant dense<0.000000e+00> : vector<32x4xf32>
    %102 = tpu.matmul %91, %101, %cst_121 {dimension_numbers = #tpu.dot_dimension_numbers<[1], [0], [0], [1], [0, 0, 1, 1], [], []>} : vector<32x16xbf16>, vector<16x4xbf16>, vector<32x4xf32> -> vector<32x4xf32>
    %c64_122 = arith.constant 64 : index
    %c0_123 = arith.constant 0 : index
    %103 = vector.load %arg16[%c64_122, %c0_123] : memref<288x4xf32, #tpu.memory_space<vmem>>, vector<32x4xf32>
    tpu.vector_store %arg16[%c64_122, %c0_123], %102 {strides = array<i32>} : memref<288x4xf32, #tpu.memory_space<vmem>>, vector<32x4xf32>,
    %c3_124 = arith.constant 3 : index
    %c0_125 = arith.constant 0 : index
    %c0_126 = arith.constant 0 : index
    %104 = vector.load %arg8[%c3_124, %c0_125, %c0_126] : memref<9x16x4xbf16, #tpu.memory_space<vmem>>, vector<1x16x4xbf16>
    %105 = vector.shape_cast %104 : vector<1x16x4xbf16> to vector<16x4xbf16>
    %cst_127 = arith.constant dense<0.000000e+00> : vector<32x4xf32>
    %106 = tpu.matmul %91, %105, %cst_127 {dimension_numbers = #tpu.dot_dimension_numbers<[1], [0], [0], [1], [0, 0, 1, 1], [], []>} : vector<32x16xbf16>, vector<16x4xbf16>, vector<32x4xf32> -> vector<32x4xf32>
    %c96_128 = arith.constant 96 : index
    %c0_129 = arith.constant 0 : index
    %107 = vector.load %arg16[%c96_128, %c0_129] : memref<288x4xf32, #tpu.memory_space<vmem>>, vector<32x4xf32>
    tpu.vector_store %arg16[%c96_128, %c0_129], %106 {strides = array<i32>} : memref<288x4xf32, #tpu.memory_space<vmem>>, vector<32x4xf32>,
    %c4_130 = arith.constant 4 : index
    %c0_131 = arith.constant 0 : index
    %c0_132 = arith.constant 0 : index
    %108 = vector.load %arg8[%c4_130, %c0_131, %c0_132] : memref<9x16x4xbf16, #tpu.memory_space<vmem>>, vector<1x16x4xbf16>
    %109 = vector.shape_cast %108 : vector<1x16x4xbf16> to vector<16x4xbf16>
    %cst_133 = arith.constant dense<0.000000e+00> : vector<32x4xf32>
    %110 = tpu.matmul %91, %109, %cst_133 {dimension_numbers = #tpu.dot_dimension_numbers<[1], [0], [0], [1], [0, 0, 1, 1], [], []>} : vector<32x16xbf16>, vector<16x4xbf16>, vector<32x4xf32> -> vector<32x4xf32>
    %c128_134 = arith.constant 128 : index
    %c0_135 = arith.constant 0 : index
    %111 = vector.load %arg16[%c128_134, %c0_135] : memref<288x4xf32, #tpu.memory_space<vmem>>, vector<32x4xf32>
    tpu.vector_store %arg16[%c128_134, %c0_135], %110 {strides = array<i32>} : memref<288x4xf32, #tpu.memory_space<vmem>>, vector<32x4xf32>,
    %c5_136 = arith.constant 5 : index
    %c0_137 = arith.constant 0 : index
    %c0_138 = arith.constant 0 : index
    %112 = vector.load %arg8[%c5_136, %c0_137, %c0_138] : memref<9x16x4xbf16, #tpu.memory_space<vmem>>, vector<1x16x4xbf16>
    %113 = vector.shape_cast %112 : vector<1x16x4xbf16> to vector<16x4xbf16>
    %cst_139 = arith.constant dense<0.000000e+00> : vector<32x4xf32>
    %114 = tpu.matmul %91, %113, %cst_139 {dimension_numbers = #tpu.dot_dimension_numbers<[1], [0], [0], [1], [0, 0, 1, 1], [], []>} : vector<32x16xbf16>, vector<16x4xbf16>, vector<32x4xf32> -> vector<32x4xf32>
    %c160 = arith.constant 160 : index
    %c0_140 = arith.constant 0 : index
    %115 = vector.load %arg16[%c160, %c0_140] : memref<288x4xf32, #tpu.memory_space<vmem>>, vector<32x4xf32>
    tpu.vector_store %arg16[%c160, %c0_140], %114 {strides = array<i32>} : memref<288x4xf32, #tpu.memory_space<vmem>>, vector<32x4xf32>,
    %c6_141 = arith.constant 6 : index
    %c0_142 = arith.constant 0 : index
    %c0_143 = arith.constant 0 : index
    %116 = vector.load %arg8[%c6_141, %c0_142, %c0_143] : memref<9x16x4xbf16, #tpu.memory_space<vmem>>, vector<1x16x4xbf16>
    %117 = vector.shape_cast %116 : vector<1x16x4xbf16> to vector<16x4xbf16>
    %cst_144 = arith.constant dense<0.000000e+00> : vector<32x4xf32>
    %118 = tpu.matmul %91, %117, %cst_144 {dimension_numbers = #tpu.dot_dimension_numbers<[1], [0], [0], [1], [0, 0, 1, 1], [], []>} : vector<32x16xbf16>, vector<16x4xbf16>, vector<32x4xf32> -> vector<32x4xf32>
    %c192 = arith.constant 192 : index
    %c0_145 = arith.constant 0 : index
    %119 = vector.load %arg16[%c192, %c0_145] : memref<288x4xf32, #tpu.memory_space<vmem>>, vector<32x4xf32>
    tpu.vector_store %arg16[%c192, %c0_145], %118 {strides = array<i32>} : memref<288x4xf32, #tpu.memory_space<vmem>>, vector<32x4xf32>,
    %c7_146 = arith.constant 7 : index
    %c0_147 = arith.constant 0 : index
    %c0_148 = arith.constant 0 : index
    %120 = vector.load %arg8[%c7_146, %c0_147, %c0_148] : memref<9x16x4xbf16, #tpu.memory_space<vmem>>, vector<1x16x4xbf16>
    %121 = vector.shape_cast %120 : vector<1x16x4xbf16> to vector<16x4xbf16>
    %cst_149 = arith.constant dense<0.000000e+00> : vector<32x4xf32>
    %122 = tpu.matmul %91, %121, %cst_149 {dimension_numbers = #tpu.dot_dimension_numbers<[1], [0], [0], [1], [0, 0, 1, 1], [], []>} : vector<32x16xbf16>, vector<16x4xbf16>, vector<32x4xf32> -> vector<32x4xf32>
    %c224 = arith.constant 224 : index
    %c0_150 = arith.constant 0 : index
    %123 = vector.load %arg16[%c224, %c0_150] : memref<288x4xf32, #tpu.memory_space<vmem>>, vector<32x4xf32>
    tpu.vector_store %arg16[%c224, %c0_150], %122 {strides = array<i32>} : memref<288x4xf32, #tpu.memory_space<vmem>>, vector<32x4xf32>,
    %c8_151 = arith.constant 8 : index
    %c0_152 = arith.constant 0 : index
    %c0_153 = arith.constant 0 : index
    %124 = vector.load %arg8[%c8_151, %c0_152, %c0_153] : memref<9x16x4xbf16, #tpu.memory_space<vmem>>, vector<1x16x4xbf16>
    %125 = vector.shape_cast %124 : vector<1x16x4xbf16> to vector<16x4xbf16>
    %cst_154 = arith.constant dense<0.000000e+00> : vector<32x4xf32>
    %126 = tpu.matmul %91, %125, %cst_154 {dimension_numbers = #tpu.dot_dimension_numbers<[1], [0], [0], [1], [0, 0, 1, 1], [], []>} : vector<32x16xbf16>, vector<16x4xbf16>, vector<32x4xf32> -> vector<32x4xf32>
    %c256 = arith.constant 256 : index
    %c0_155 = arith.constant 0 : index
    %127 = vector.load %arg16[%c256, %c0_155] : memref<288x4xf32, #tpu.memory_space<vmem>>, vector<32x4xf32>
    tpu.vector_store %arg16[%c256, %c0_155], %126 {strides = array<i32>} : memref<288x4xf32, #tpu.memory_space<vmem>>, vector<32x4xf32>,
    %c0_156 = arith.constant 0 : index
    %c0_157 = arith.constant 0 : index
    %128 = vector.load %arg9[%c0_156, %c0_157] : memref<64x288xf32, #tpu.memory_space<vmem>>, vector<64x288xf32>
    %c0_158 = arith.constant 0 : index
    %c0_159 = arith.constant 0 : index
    %129 = vector.load %arg16[%c0_158, %c0_159] : memref<288x4xf32, #tpu.memory_space<vmem>>, vector<288x4xf32>
    %cst_160 = arith.constant dense<0.000000e+00> : vector<64x4xf32>
    %130 = tpu.matmul %128, %129, %cst_160 {dimension_numbers = #tpu.dot_dimension_numbers<[1], [0], [0], [1], [0, 0, 1, 1], [], []>} : vector<64x288xf32>, vector<288x4xf32>, vector<64x4xf32> -> vector<64x4xf32>
    %c0_161 = arith.constant 0 : index
    %c0_162 = arith.constant 0 : index
    %131 = vector.load %arg10[%c0_161, %c0_162] : memref<64x1xf32, #tpu.memory_space<vmem>>, vector<64x1xf32>
    %132 = vector.broadcast %131 : vector<64x1xf32> to vector<64x4xf32>
    %133 = arith.addf %130, %132 : vector<64x4xf32>
    %cst_163 = arith.constant 0.000000e+00 : f32
    %134 = vector.broadcast %cst_163 : f32 to vector<64x4xf32>
    %135 = arith.maximumf %133, %134 : vector<64x4xf32>
    %cst_164 = arith.constant dense<0.000000e+00> : vector<64xf32>
    %136 = vector.multi_reduction <add>, %135, %cst_164 [1] : vector<64x4xf32> to vector<64xf32>
    %137 = vector.shape_cast %136 : vector<64xf32> to vector<64x1xf32>
    %cst_165 = arith.constant 4.000000e+00 : f32
    %138 = vector.broadcast %cst_165 : f32 to vector<64x1xf32>
    %139 = arith.divf %137, %138 : vector<64x1xf32>
    %c0_166 = arith.constant 0 : index
    %c0_167 = arith.constant 0 : index
    %140 = vector.load %arg11[%c0_166, %c0_167] : memref<64x512xf32, #tpu.memory_space<vmem>>, vector<64x512xf32>
    %141 = vector.broadcast %139 : vector<64x1xf32> to vector<64x512xf32>
    %142 = arith.mulf %141, %140 : vector<64x512xf32>
    %cst_168 = arith.constant dense<0.000000e+00> : vector<512xf32>
    %143 = vector.multi_reduction <add>, %142, %cst_168 [0] : vector<64x512xf32> to vector<512xf32>
    %144 = vector.shape_cast %143 : vector<512xf32> to vector<1x512xf32>
    %c0_169 = arith.constant 0 : index
    %c0_170 = arith.constant 0 : index
    %145 = vector.load %arg12[%c0_169, %c0_170] : memref<1x512xf32, #tpu.memory_space<vmem>>, vector<1x512xf32>
    %146 = arith.addf %144, %145 : vector<1x512xf32>
    %c0_171 = arith.constant 0 : index
    %c0_172 = arith.constant 0 : index
    %c0_173 = arith.constant 0 : index
    %147 = vector.load %arg13[%c0_171, %c0_172, %c0_173] : memref<1x1x512xf32, #tpu.memory_space<vmem>>, vector<1x1x512xf32>
    %148 = vector.shape_cast %147 : vector<1x1x512xf32> to vector<1x512xf32>
    %149 = vector.shape_cast %146 : vector<1x512xf32> to vector<1x1x512xf32>
    tpu.vector_store %arg13[%c0_171, %c0_172, %c0_173], %149 {strides = array<i32>} : memref<1x1x512xf32, #tpu.memory_space<vmem>>, vector<1x1x512xf32>,
    return
  }
  func.func @transform_0(%arg0: i32) -> (i32, i32, i32) {
    %c0_i32 = arith.constant 0 : i32
    %c0_i32_0 = arith.constant 0 : i32
    %c0_i32_1 = arith.constant 0 : i32
    return %arg0, %c0_i32, %c0_i32_0 : i32, i32, i32
  }
  func.func @transform_1(%arg0: i32) -> (i32, i32, i32) {
    %c0_i32 = arith.constant 0 : i32
    %c0_i32_0 = arith.constant 0 : i32
    %c0_i32_1 = arith.constant 0 : i32
    %c0_i32_2 = arith.constant 0 : i32
    return %c0_i32, %c0_i32_0, %c0_i32_1 : i32, i32, i32
  }
  func.func @transform_2(%arg0: i32) -> (i32, i32) {
    %c0_i32 = arith.constant 0 : i32
    %c0_i32_0 = arith.constant 0 : i32
    %c0_i32_1 = arith.constant 0 : i32
    return %c0_i32, %c0_i32_0 : i32, i32
  }
  func.func @transform_3(%arg0: i32) -> (i32, i32) {
    %c0_i32 = arith.constant 0 : i32
    %c0_i32_0 = arith.constant 0 : i32
    %c0_i32_1 = arith.constant 0 : i32
    return %c0_i32, %c0_i32_0 : i32, i32
  }
  func.func @transform_4(%arg0: i32) -> (i32, i32, i32) {
    %c0_i32 = arith.constant 0 : i32
    %c0_i32_0 = arith.constant 0 : i32
    %c0_i32_1 = arith.constant 0 : i32
    %c0_i32_2 = arith.constant 0 : i32
    return %c0_i32, %c0_i32_0, %c0_i32_1 : i32, i32, i32
  }
  func.func @transform_5(%arg0: i32) -> (i32, i32) {
    %c0_i32 = arith.constant 0 : i32
    %c0_i32_0 = arith.constant 0 : i32
    %c0_i32_1 = arith.constant 0 : i32
    return %c0_i32, %c0_i32_0 : i32, i32
  }
  func.func @transform_6(%arg0: i32) -> (i32, i32) {
    %c0_i32 = arith.constant 0 : i32
    %c0_i32_0 = arith.constant 0 : i32
    %c0_i32_1 = arith.constant 0 : i32
    return %c0_i32, %c0_i32_0 : i32, i32
  }
  func.func @transform_7(%arg0: i32) -> (i32, i32, i32) {
    %c0_i32 = arith.constant 0 : i32
    %c0_i32_0 = arith.constant 0 : i32
    %c0_i32_1 = arith.constant 0 : i32
    %c0_i32_2 = arith.constant 0 : i32
    return %c0_i32, %c0_i32_0, %c0_i32_1 : i32, i32, i32
  }
  func.func @transform_8(%arg0: i32) -> (i32, i32) {
    %c0_i32 = arith.constant 0 : i32
    %c0_i32_0 = arith.constant 0 : i32
    %c0_i32_1 = arith.constant 0 : i32
    return %c0_i32, %c0_i32_0 : i32, i32
  }
  func.func @transform_9(%arg0: i32) -> (i32, i32) {
    %c0_i32 = arith.constant 0 : i32
    %c0_i32_0 = arith.constant 0 : i32
    %c0_i32_1 = arith.constant 0 : i32
    return %c0_i32, %c0_i32_0 : i32, i32
  }
  func.func @transform_10(%arg0: i32) -> (i32, i32) {
    %c0_i32 = arith.constant 0 : i32
    %c0_i32_0 = arith.constant 0 : i32
    %c0_i32_1 = arith.constant 0 : i32
    return %c0_i32, %c0_i32_0 : i32, i32
  }
  func.func @transform_11(%arg0: i32) -> (i32, i32) {
    %c0_i32 = arith.constant 0 : i32
    %c0_i32_0 = arith.constant 0 : i32
    %c0_i32_1 = arith.constant 0 : i32
    return %c0_i32, %c0_i32_0 : i32, i32
  }
  func.func @transform_12(%arg0: i32) -> (i32, i32, i32) {
    %c0_i32 = arith.constant 0 : i32
    %c0_i32_0 = arith.constant 0 : i32
    %c0_i32_1 = arith.constant 0 : i32
    return %arg0, %c0_i32, %c0_i32_0 : i32, i32, i32
  }
}

</mosaic_0001>

<llo_original>
// kernel: fused_cnn_forward.1
$region0: #{fused_cnn_forward.1}
  #allocation0 [shape = 'u32[]', space=smem, size = 0x4, offset = 0x4, fixed_abs, tag = 'smem constant byte address 0x4 - core index']
  #allocation1 [shape = 'u32[144,128]{1,0:T(1,128)}', space=vmem, size = 0x12000, scoped, tag = 'internal scratch']
  #allocation2 [shape = 'f32[72,64]{1,0:T(8,128)}', space=vmem, size = 0x9000, scoped, tag = 'scratch operand']
  #allocation3 [shape = 'f32[144,16]{1,0:T(8,128)}', space=vmem, size = 0x12000, scoped, tag = 'scratch operand']
  #allocation4 [shape = 'f32[288,4]{1,0:T(8,128)}', space=vmem, size = 0x24000, scoped, tag = 'scratch operand']
  %s0 = inlined_call_operand.vmem [shape: bf16[2,8,256], index: 0, kind: input, shape index: {}]
  %s1 = inlined_call_operand.vmem [shape: bf16[9,256,64], index: 1, kind: input, shape index: {}]
  %s2 = inlined_call_operand.vmem [shape: f32[16,72], index: 2, kind: input, shape index: {}]
  %s3 = inlined_call_operand.vmem [shape: f32[16,1], index: 3, kind: input, shape index: {}]
  %s4 = inlined_call_operand.vmem [shape: bf16[9,64,16], index: 4, kind: input, shape index: {}]
  %s5 = inlined_call_operand.vmem [shape: f32[32,144], index: 5, kind: input, shape index: {}]
  %s6 = inlined_call_operand.vmem [shape: f32[32,1], index: 6, kind: input, shape index: {}]
  %s7 = inlined_call_operand.vmem [shape: bf16[9,16,4], index: 7, kind: input, shape index: {}]
  %s8 = inlined_call_operand.vmem [shape: f32[64,288], index: 8, kind: input, shape index: {}]
  %s9 = inlined_call_operand.vmem [shape: f32[64,1], index: 9, kind: input, shape index: {}]
  %s10 = inlined_call_operand.vmem [shape: f32[64,512], index: 10, kind: input, shape index: {}]
  %s11 = inlined_call_operand.vmem [shape: f32[1,512], index: 11, kind: input, shape index: {}]
  %s12 = inlined_call_operand.vmem [shape: f32[2,1,512], index: 12, kind: output, shape index: {}]
  %s13 = sld [smem:[#allocation0]]
  $region81: #{fused_cnn_forward.1} parent=0
    _
  %s15 = ssub.s32 1, %s13
  %s16 = scalar_select 0, %s15, %s13
  loop: start=0, step=1, limit=4
  $region2: #{fused_cnn_forward.1} parent=0 // loop_pre_header
    _
  $region3: #{fused_cnn_forward.1} parent=0 // loop_header
    %s18 = sphi 0, %s22
    %p19 = scmp.ge.s32.totalorder %s18, 4
    %s28 = sphi 0, %s30
    %s31 = sphi 0, %s28
    %s32 = sphi 0, %s31
    %s48 = sphi 0, %s32
    %s52 = sphi 0, %s52
    %s54 = sphi 0, %s52
    %s55 = sphi 0, %s54
    %s69 = sphi 0, %s55
    %s73 = sphi 0, %s73
    %s75 = sphi 0, %s73
    %s76 = sphi 0, %s75
    %s90 = sphi 0, %s76
    %s94 = sphi 0, %s94
    %s96 = sphi 0, %s94
    %s97 = sphi 0, %s96
    %s111 = sphi 0, %s97
    %s115 = sphi 0, %s115
    %s117 = sphi 0, %s115
    %s118 = sphi 0, %s117
    %s132 = sphi 0, %s118
    %s136 = sphi 0, %s136
    %s138 = sphi 0, %s136
    %s139 = sphi 0, %s138
    %s153 = sphi 0, %s139
    %s157 = sphi 0, %s157
    %s159 = sphi 0, %s157
    %s160 = sphi 0, %s159
    %s174 = sphi 0, %s160
    %s178 = sphi 0, %s178
    %s180 = sphi 0, %s178
    %s181 = sphi 0, %s180
    %s195 = sphi 0, %s181
    %s199 = sphi 0, %s199
    %s201 = sphi 0, %s199
    %s202 = sphi 0, %s201
    %s216 = sphi 0, %s202
    %s220 = sphi 0, %s220
    %s222 = sphi 0, %s220
    %s223 = sphi 0, %s222
    %s237 = sphi 0, %s223
    %s241 = sphi 0, %s241
    %s243 = sphi 0, %s241
    %s244 = sphi 0, %s243
    %s258 = sphi 0, %s244
    %s262 = sphi 0, %s262
    %s264 = sphi 0, %s262
    %s265 = sphi 0, %s264
    %s279 = sphi 0, %s265
    %s285 = sphi 0, %s287
    %s288 = sphi 0, %s285
    %s289 = sphi 0, %s288
    %s305 = sphi 0, %s289
  $region4: #{fused_cnn_forward.1} parent=0 // loop_header_branch
    %21 = sbr.rel (%p19) target = $region8
  $region5: #{fused_cnn_forward.1} parent=0 // loop_body
    %s23 = ssub.s32 %s18, 1
    %s24 = ssub.s32 %s18, 2
    %s25 = sadd.s32 %s18, 1
    %s26 = ssub.s32 %s18, %s25
    %p27 = scmp.eq.s32.totalorder %s26, 0
    %s29 = sadd.s32 %s28, 1
    %s30 = scalar_select %p27, %s28, %s29
    %p33 = pneg %p27
    %p34 = scmp.eq.s32.totalorder %s18, 1
    %p35 = por %p33, %p34
    %p36 = scmp.ne.s32.totalorder %s28, %s31
    %p37 = scmp.eq.s32.totalorder %s18, 0
    %p38 = por %p36, %p37
    %p39 = scmp.ne.s32.totalorder %s28, %s31
    %p40 = scmp.eq.s32.totalorder %s23, 1
    %p41 = por %p39, %p40
    %p42 = scmp.ne.s32.totalorder %s31, %s32
    %p43 = scmp.eq.s32.totalorder %s23, 0
    %p44 = por %p42, %p43
    %p45 = scmp.ne.s32.totalorder %s31, %s32
    %p46 = scmp.eq.s32.totalorder %s24, 1
    %p47 = por %p45, %p46
    %p49 = scmp.ne.s32.totalorder %s32, %s48
    %p50 = scmp.eq.s32.totalorder %s24, 0
    %p51 = por %p49, %p50
    %s53 = sadd.s32 %s52, 1
    %p56 = scmp.eq.s32.totalorder %s18, 1
    %p57 = scmp.ne.s32.totalorder %s52, %s54
    %p58 = scmp.eq.s32.totalorder %s18, 0
    %p59 = por %p57, %p58
    %p60 = scmp.ne.s32.totalorder %s52, %s54
    %p61 = scmp.eq.s32.totalorder %s23, 1
    %p62 = por %p60, %p61
    %p63 = scmp.ne.s32.totalorder %s54, %s55
    %p64 = scmp.eq.s32.totalorder %s23, 0
    %p65 = por %p63, %p64
    %p66 = scmp.ne.s32.totalorder %s54, %s55
    %p67 = scmp.eq.s32.totalorder %s24, 1
    %p68 = por %p66, %p67
    %p70 = scmp.ne.s32.totalorder %s55, %s69
    %p71 = scmp.eq.s32.totalorder %s24, 0
    %p72 = por %p70, %p71
    %s74 = sadd.s32 %s73, 1
    %p77 = scmp.eq.s32.totalorder %s18, 1
    %p78 = scmp.ne.s32.totalorder %s73, %s75
    %p79 = scmp.eq.s32.totalorder %s18, 0
    %p80 = por %p78, %p79
    %p81 = scmp.ne.s32.totalorder %s73, %s75
    %p82 = scmp.eq.s32.totalorder %s23, 1
    %p83 = por %p81, %p82
    %p84 = scmp.ne.s32.totalorder %s75, %s76
    %p85 = scmp.eq.s32.totalorder %s23, 0
    %p86 = por %p84, %p85
    %p87 = scmp.ne.s32.totalorder %s75, %s76
    %p88 = scmp.eq.s32.totalorder %s24, 1
    %p89 = por %p87, %p88
    %p91 = scmp.ne.s32.totalorder %s76, %s90
    %p92 = scmp.eq.s32.totalorder %s24, 0
    %p93 = por %p91, %p92
    %s95 = sadd.s32 %s94, 1
    %p98 = scmp.eq.s32.totalorder %s18, 1
    %p99 = scmp.ne.s32.totalorder %s94, %s96
    %p100 = scmp.eq.s32.totalorder %s18, 0
    %p101 = por %p99, %p100
    %p102 = scmp.ne.s32.totalorder %s94, %s96
    %p103 = scmp.eq.s32.totalorder %s23, 1
    %p104 = por %p102, %p103
    %p105 = scmp.ne.s32.totalorder %s96, %s97
    %p106 = scmp.eq.s32.totalorder %s23, 0
    %p107 = por %p105, %p106
    %p108 = scmp.ne.s32.totalorder %s96, %s97
    %p109 = scmp.eq.s32.totalorder %s24, 1
    %p110 = por %p108, %p109
    %p112 = scmp.ne.s32.totalorder %s97, %s111
    %p113 = scmp.eq.s32.totalorder %s24, 0
    %p114 = por %p112, %p113
    %s116 = sadd.s32 %s115, 1
    %p119 = scmp.eq.s32.totalorder %s18, 1
    %p120 = scmp.ne.s32.totalorder %s115, %s117
    %p121 = scmp.eq.s32.totalorder %s18, 0
    %p122 = por %p120, %p121
    %p123 = scmp.ne.s32.totalorder %s115, %s117
    %p124 = scmp.eq.s32.totalorder %s23, 1
    %p125 = por %p123, %p124
    %p126 = scmp.ne.s32.totalorder %s117, %s118
    %p127 = scmp.eq.s32.totalorder %s23, 0
    %p128 = por %p126, %p127
    %p129 = scmp.ne.s32.totalorder %s117, %s118
    %p130 = scmp.eq.s32.totalorder %s24, 1
    %p131 = por %p129, %p130
    %p133 = scmp.ne.s32.totalorder %s118, %s132
    %p134 = scmp.eq.s32.totalorder %s24, 0
    %p135 = por %p133, %p134
    %s137 = sadd.s32 %s136, 1
    %p140 = scmp.eq.s32.totalorder %s18, 1
    %p141 = scmp.ne.s32.totalorder %s136, %s138
    %p142 = scmp.eq.s32.totalorder %s18, 0
    %p143 = por %p141, %p142
    %p144 = scmp.ne.s32.totalorder %s136, %s138
    %p145 = scmp.eq.s32.totalorder %s23, 1
    %p146 = por %p144, %p145
    %p147 = scmp.ne.s32.totalorder %s138, %s139
    %p148 = scmp.eq.s32.totalorder %s23, 0
    %p149 = por %p147, %p148
    %p150 = scmp.ne.s32.totalorder %s138, %s139
    %p151 = scmp.eq.s32.totalorder %s24, 1
    %p152 = por %p150, %p151
    %p154 = scmp.ne.s32.totalorder %s139, %s153
    %p155 = scmp.eq.s32.totalorder %s24, 0
    %p156 = por %p154, %p155
    %s158 = sadd.s32 %s157, 1
    %p161 = scmp.eq.s32.totalorder %s18, 1
    %p162 = scmp.ne.s32.totalorder %s157, %s159
    %p163 = scmp.eq.s32.totalorder %s18, 0
    %p164 = por %p162, %p163
    %p165 = scmp.ne.s32.totalorder %s157, %s159
    %p166 = scmp.eq.s32.totalorder %s23, 1
    %p167 = por %p165, %p166
    %p168 = scmp.ne.s32.totalorder %s159, %s160
    %p169 = scmp.eq.s32.totalorder %s23, 0
    %p170 = por %p168, %p169
    %p171 = scmp.ne.s32.totalorder %s159, %s160
    %p172 = scmp.eq.s32.totalorder %s24, 1
    %p173 = por %p171, %p172
    %p175 = scmp.ne.s32.totalorder %s160, %s174
    %p176 = scmp.eq.s32.totalorder %s24, 0
    %p177 = por %p175, %p176
    %s179 = sadd.s32 %s178, 1
    %p182 = scmp.eq.s32.totalorder %s18, 1
    %p183 = scmp.ne.s32.totalorder %s178, %s180
    %p184 = scmp.eq.s32.totalorder %s18, 0
    %p185 = por %p183, %p184
    %p186 = scmp.ne.s32.totalorder %s178, %s180
    %p187 = scmp.eq.s32.totalorder %s23, 1
    %p188 = por %p186, %p187
    %p189 = scmp.ne.s32.totalorder %s180, %s181
    %p190 = scmp.eq.s32.totalorder %s23, 0
    %p191 = por %p189, %p190
    %p192 = scmp.ne.s32.totalorder %s180, %s181
    %p193 = scmp.eq.s32.totalorder %s24, 1
    %p194 = por %p192, %p193
    %p196 = scmp.ne.s32.totalorder %s181, %s195
    %p197 = scmp.eq.s32.totalorder %s24, 0
    %p198 = por %p196, %p197
    %s200 = sadd.s32 %s199, 1
    %p203 = scmp.eq.s32.totalorder %s18, 1
    %p204 = scmp.ne.s32.totalorder %s199, %s201
    %p205 = scmp.eq.s32.totalorder %s18, 0
    %p206 = por %p204, %p205
    %p207 = scmp.ne.s32.totalorder %s199, %s201
    %p208 = scmp.eq.s32.totalorder %s23, 1
    %p209 = por %p207, %p208
    %p210 = scmp.ne.s32.totalorder %s201, %s202
    %p211 = scmp.eq.s32.totalorder %s23, 0
    %p212 = por %p210, %p211
    %p213 = scmp.ne.s32.totalorder %s201, %s202
    %p214 = scmp.eq.s32.totalorder %s24, 1
    %p215 = por %p213, %p214
    %p217 = scmp.ne.s32.totalorder %s202, %s216
    %p218 = scmp.eq.s32.totalorder %s24, 0
    %p219 = por %p217, %p218
    %s221 = sadd.s32 %s220, 1
    %p224 = scmp.eq.s32.totalorder %s18, 1
    %p225 = scmp.ne.s32.totalorder %s220, %s222
    %p226 = scmp.eq.s32.totalorder %s18, 0
    %p227 = por %p225, %p226
    %p228 = scmp.ne.s32.totalorder %s220, %s222
    %p229 = scmp.eq.s32.totalorder %s23, 1
    %p230 = por %p228, %p229
    %p231 = scmp.ne.s32.totalorder %s222, %s223
    %p232 = scmp.eq.s32.totalorder %s23, 0
    %p233 = por %p231, %p232
    %p234 = scmp.ne.s32.totalorder %s222, %s223
    %p235 = scmp.eq.s32.totalorder %s24, 1
    %p236 = por %p234, %p235
    %p238 = scmp.ne.s32.totalorder %s223, %s237
    %p239 = scmp.eq.s32.totalorder %s24, 0
    %p240 = por %p238, %p239
    %s242 = sadd.s32 %s241, 1
    %p245 = scmp.eq.s32.totalorder %s18, 1
    %p246 = scmp.ne.s32.totalorder %s241, %s243
    %p247 = scmp.eq.s32.totalorder %s18, 0
    %p248 = por %p246, %p247
    %p249 = scmp.ne.s32.totalorder %s241, %s243
    %p250 = scmp.eq.s32.totalorder %s23, 1
    %p251 = por %p249, %p250
    %p252 = scmp.ne.s32.totalorder %s243, %s244
    %p253 = scmp.eq.s32.totalorder %s23, 0
    %p254 = por %p252, %p253
    %p255 = scmp.ne.s32.totalorder %s243, %s244
    %p256 = scmp.eq.s32.totalorder %s24, 1
    %p257 = por %p255, %p256
    %p259 = scmp.ne.s32.totalorder %s244, %s258
    %p260 = scmp.eq.s32.totalorder %s24, 0
    %p261 = por %p259, %p260
    %s263 = sadd.s32 %s262, 1
    %p266 = scmp.eq.s32.totalorder %s18, 1
    %p267 = scmp.ne.s32.totalorder %s262, %s264
    %p268 = scmp.eq.s32.totalorder %s18, 0
    %p269 = por %p267, %p268
    %p270 = scmp.ne.s32.totalorder %s262, %s264
    %p271 = scmp.eq.s32.totalorder %s23, 1
    %p272 = por %p270, %p271
    %p273 = scmp.ne.s32.totalorder %s264, %s265
    %p274 = scmp.eq.s32.totalorder %s23, 0
    %p275 = por %p273, %p274
    %p276 = scmp.ne.s32.totalorder %s264, %s265
    %p277 = scmp.eq.s32.totalorder %s24, 1
    %p278 = por %p276, %p277
    %p280 = scmp.ne.s32.totalorder %s265, %s279
    %p281 = scmp.eq.s32.totalorder %s24, 0
    %p282 = por %p280, %p281
    %s283 = ssub.s32 %s18, %s25
    %p284 = scmp.eq.s32.totalorder %s283, 0
    %s286 = sadd.s32 %s285, 1
    %s287 = scalar_select %p284, %s285, %s286
    %p290 = pneg %p284
    %p291 = scmp.eq.s32.totalorder %s18, 1
    %p292 = por %p290, %p291
    %p293 = scmp.ne.s32.totalorder %s285, %s288
    %p294 = scmp.eq.s32.totalorder %s18, 0
    %p295 = por %p293, %p294
    %p296 = scmp.ne.s32.totalorder %s285, %s288
    %p297 = scmp.eq.s32.totalorder %s23, 1
    %p298 = por %p296, %p297
    %p299 = scmp.ne.s32.totalorder %s288, %s289
    %p300 = scmp.eq.s32.totalorder %s23, 0
    %p301 = por %p299, %p300
    %p302 = scmp.ne.s32.totalorder %s288, %s289
    %p303 = scmp.eq.s32.totalorder %s24, 1
    %p304 = por %p302, %p303
    %p306 = scmp.ne.s32.totalorder %s289, %s305
    %p307 = scmp.eq.s32.totalorder %s24, 0
    %p308 = por %p306, %p307
    %p309 = scmp.le.s32.totalorder 1, %s18
    %p310 = scmp.lt.s32.totalorder %s18, 3
    %p311 = pnand %p309, %p310
    %p312 = pneg %p311
    // Predicated region
    $region9: #{fused_cnn_forward.1} parent=5 // pred_check
      _
    $region10: #{fused_cnn_forward.1} parent=5 // pred_check_branch
      %314 = sbr.rel (%p311) target = $region12
    $region11: #{fused_cnn_forward.1} parent=5 // pred_region
      %s315 = ssub.s32 %s18, 1
      // Predicated region
      $region13: #{fused_cnn_forward.1} parent=11 // pred_check
        %p316 = pneg %p65
      $region14: #{fused_cnn_forward.1} parent=11 // pred_check_branch
        %318 = sbr.rel (%p316) target = $region16
      $region15: #{fused_cnn_forward.1} parent=11 // pred_region
        _
      $region16: #{fused_cnn_forward.1} parent=11 // pred_fallthru
        _
      // Predicated region
      $region17: #{fused_cnn_forward.1} parent=11 // pred_check
        %p319 = pneg %p86
      $region18: #{fused_cnn_forward.1} parent=11 // pred_check_branch
        %321 = sbr.rel (%p319) target = $region20
      $region19: #{fused_cnn_forward.1} parent=11 // pred_region
        _
      $region20: #{fused_cnn_forward.1} parent=11 // pred_fallthru
        _
      // Predicated region
      $region21: #{fused_cnn_forward.1} parent=11 // pred_check
        %p322 = pneg %p107
      $region22: #{fused_cnn_forward.1} parent=11 // pred_check_branch
        %324 = sbr.rel (%p322) target = $region24
      $region23: #{fused_cnn_forward.1} parent=11 // pred_region
        _
      $region24: #{fused_cnn_forward.1} parent=11 // pred_fallthru
        _
      // Predicated region
      $region25: #{fused_cnn_forward.1} parent=11 // pred_check
        %p325 = pneg %p128
      $region26: #{fused_cnn_forward.1} parent=11 // pred_check_branch
        %327 = sbr.rel (%p325) target = $region28
      $region27: #{fused_cnn_forward.1} parent=11 // pred_region
        _
      $region28: #{fused_cnn_forward.1} parent=11 // pred_fallthru
        _
      // Predicated region
      $region29: #{fused_cnn_forward.1} parent=11 // pred_check
        %p328 = pneg %p149
      $region30: #{fused_cnn_forward.1} parent=11 // pred_check_branch
        %330 = sbr.rel (%p328) target = $region32
      $region31: #{fused_cnn_forward.1} parent=11 // pred_region
        _
      $region32: #{fused_cnn_forward.1} parent=11 // pred_fallthru
        _
      // Predicated region
      $region33: #{fused_cnn_forward.1} parent=11 // pred_check
        %p331 = pneg %p170
      $region34: #{fused_cnn_forward.1} parent=11 // pred_check_branch
        %333 = sbr.rel (%p331) target = $region36
      $region35: #{fused_cnn_forward.1} parent=11 // pred_region
        _
      $region36: #{fused_cnn_forward.1} parent=11 // pred_fallthru
        _
      // Predicated region
      $region37: #{fused_cnn_forward.1} parent=11 // pred_check
        %p334 = pneg %p191
      $region38: #{fused_cnn_forward.1} parent=11 // pred_check_branch
        %336 = sbr.rel (%p334) target = $region40
      $region39: #{fused_cnn_forward.1} parent=11 // pred_region
        _
      $region40: #{fused_cnn_forward.1} parent=11 // pred_fallthru
        _
      // Predicated region
      $region41: #{fused_cnn_forward.1} parent=11 // pred_check
        %p337 = pneg %p212
      $region42: #{fused_cnn_forward.1} parent=11 // pred_check_branch
        %339 = sbr.rel (%p337) target = $region44
      $region43: #{fused_cnn_forward.1} parent=11 // pred_region
        _
      $region44: #{fused_cnn_forward.1} parent=11 // pred_fallthru
        _
      // Predicated region
      $region45: #{fused_cnn_forward.1} parent=11 // pred_check
        %p340 = pneg %p233
      $region46: #{fused_cnn_forward.1} parent=11 // pred_check_branch
        %342 = sbr.rel (%p340) target = $region48
      $region47: #{fused_cnn_forward.1} parent=11 // pred_region
        _
      $region48: #{fused_cnn_forward.1} parent=11 // pred_fallthru
        _
      // Predicated region
      $region49: #{fused_cnn_forward.1} parent=11 // pred_check
        %p343 = pneg %p254
      $region50: #{fused_cnn_forward.1} parent=11 // pred_check_branch
        %345 = sbr.rel (%p343) target = $region52
      $region51: #{fused_cnn_forward.1} parent=11 // pred_region
        _
      $region52: #{fused_cnn_forward.1} parent=11 // pred_fallthru
        _
      // Predicated region
      $region53: #{fused_cnn_forward.1} parent=11 // pred_check
        %p346 = pneg %p275
      $region54: #{fused_cnn_forward.1} parent=11 // pred_check_branch
        %348 = sbr.rel (%p346) target = $region56
      $region55: #{fused_cnn_forward.1} parent=11 // pred_region
        _
      $region56: #{fused_cnn_forward.1} parent=11 // pred_fallthru
        _
    $region12: #{fused_cnn_forward.1} parent=5 // pred_fallthru
      _
    %p349 = scmp.lt.s32.totalorder %s18, 2
    // Predicated region
    $region57: #{fused_cnn_forward.1} parent=5 // pred_check
      %p350 = pneg %p349
    $region58: #{fused_cnn_forward.1} parent=5 // pred_check_branch
      %352 = sbr.rel (%p350) target = $region60
    $region59: #{fused_cnn_forward.1} parent=5 // pred_region
      // Predicated region
      $region61: #{fused_cnn_forward.1} parent=59 // pred_check
        %p353 = pneg %p38
      $region62: #{fused_cnn_forward.1} parent=59 // pred_check_branch
        %355 = sbr.rel (%p353) target = $region64
      $region63: #{fused_cnn_forward.1} parent=59 // pred_region
        %p356 = scmp.lt.s32.totalorder %s18, 1
        %s357 = scalar_select %p356, %s18, 1
        %s358 = smul.addr %s357, 2
        %s359 = smul.addr %s358, 4
        %s360 = scalar_lea.vmem %s0, %s359
      $region64: #{fused_cnn_forward.1} parent=59 // pred_fallthru
        _
    $region60: #{fused_cnn_forward.1} parent=5 // pred_fallthru
      _
    %p361 = scmp.le.s32.totalorder 1, %s18
    %p362 = scmp.lt.s32.totalorder %s18, 3
    %p363 = pnand %p361, %p362
    %p364 = pneg %p363
    // Predicated region
    $region65: #{fused_cnn_forward.1} parent=5 // pred_check
      _
    $region66: #{fused_cnn_forward.1} parent=5 // pred_check_branch
      %366 = sbr.rel (%p363) target = $region68
    $region67: #{fused_cnn_forward.1} parent=5 // pred_region
      %s367 = ssub.s32 %s18, 1
      %p368 = scmp.lt.s32.totalorder %s23, 1
      %s369 = scalar_select %p368, %s23, 1
      %s370 = smul.addr %s369, 2
      %s371 = smul.addr %s370, 4
      %s372 = scalar_lea.vmem %s0, %s371
      %p373 = pneg %p44
      %p374 = pneg %p41
      %p375 = pneg %p65
      %p376 = pneg %p62
      %p377 = pneg %p86
      %p378 = pneg %p83
      %p379 = pneg %p107
      %p380 = pneg %p104
      %p381 = pneg %p128
      %p382 = pneg %p125
      %p383 = pneg %p149
      %p384 = pneg %p146
      %p385 = pneg %p170
      %p386 = pneg %p167
      %p387 = pneg %p191
      %p388 = pneg %p188
      %p389 = pneg %p212
      %p390 = pneg %p209
      %p391 = pneg %p233
      %p392 = pneg %p230
      %p393 = pneg %p254
      %p394 = pneg %p251
      %p395 = pneg %p275
      %p396 = pneg %p272
      %p397 = pneg %p301
      %p398 = pneg %p298
      %p399 = scmp.lt.s32.totalorder %s23, 1
      %s400 = scalar_select %p399, %s23, 1
      %s401 = smul.addr %s400, 4
      %s402 = scalar_lea.vmem %s12, %s401
      %p403 = scmp.lt.s32.totalorder %s23, 1
      %s404 = scalar_select %p403, %s23, 1
      %s405 = smul.addr %s404, 2
      %s406 = smul.addr %s405, 4
      %s407 = scalar_lea.vmem %s0, %s406
      %p408 = scmp.lt.s32.totalorder %s23, 1
      %s409 = scalar_select %p408, %s23, 1
      %s410 = smul.addr %s409, 4
      %s411 = scalar_lea.vmem %s12, %s410
      %v413 = vld [vmem:[%s407] sm:$0xff]
      %v414 = vld [vmem:[%s1] sm:$0xf]
      %v415 = vld [vmem:[%s1 + $0x4] sm:$0xf]
      %v416 = vld [vmem:[%s1 + $0x8] sm:$0xf]
      %v417 = vld [vmem:[%s1 + $0xc] sm:$0xf]
      %v418 = vld [vmem:[%s1 + $0x10] sm:$0xf]
      %v419 = vld [vmem:[%s1 + $0x14] sm:$0xf]
      %v420 = vld [vmem:[%s1 + $0x18] sm:$0xf]
      %v421 = vld [vmem:[%s1 + $0x1c] sm:$0xf]
      %v422 = vld [vmem:[%s1 + $0x20] sm:$0xf]
      %v423 = vld [vmem:[%s1 + $0x24] sm:$0xf]
      %v424 = vld [vmem:[%s1 + $0x28] sm:$0xf]
      %v425 = vld [vmem:[%s1 + $0x2c] sm:$0xf]
      %v426 = vld [vmem:[%s1 + $0x30] sm:$0xf]
      %v427 = vld [vmem:[%s1 + $0x34] sm:$0xf]
      %v428 = vld [vmem:[%s1 + $0x38] sm:$0xf]
      %v429 = vld [vmem:[%s1 + $0x3c] sm:$0xf]
      %v430 = vld [vmem:[%s1 + $0x40] sm:$0xf]
      %v431 = vld [vmem:[%s1 + $0x44] sm:$0xf]
      %v432 = vld [vmem:[%s1 + $0x48] sm:$0xf]
      %v433 = vld [vmem:[%s1 + $0x4c] sm:$0xf]
      %v434 = vld [vmem:[%s1 + $0x50] sm:$0xf]
      %v435 = vld [vmem:[%s1 + $0x54] sm:$0xf]
      %v436 = vld [vmem:[%s1 + $0x58] sm:$0xf]
      %v437 = vld [vmem:[%s1 + $0x5c] sm:$0xf]
      %v438 = vld [vmem:[%s1 + $0x60] sm:$0xf]
      %v439 = vld [vmem:[%s1 + $0x64] sm:$0xf]
      %v440 = vld [vmem:[%s1 + $0x68] sm:$0xf]
      %v441 = vld [vmem:[%s1 + $0x6c] sm:$0xf]
      %v442 = vld [vmem:[%s1 + $0x70] sm:$0xf]
      %v443 = vld [vmem:[%s1 + $0x74] sm:$0xf]
      %v444 = vld [vmem:[%s1 + $0x78] sm:$0xf]
      %v445 = vld [vmem:[%s1 + $0x7c] sm:$0xf]
      %v447 = vunpack.c.l.b16 %v413
      %v448 = vunpack.c.h.b16 %v413
      %v449 = vpack.c.b16 %v447, %v447
      %v450 = vpack.c.b16 %v448, %v448
      %v485 = vunpack.c.l.b16 %v414
      %v486 = vunpack.c.l.b16 %v415
      %v487 = vunpack.c.l.b16 %v416
      %v488 = vunpack.c.l.b16 %v417
      %v489 = vunpack.c.l.b16 %v418
      %v490 = vunpack.c.l.b16 %v419
      %v491 = vunpack.c.l.b16 %v420
      %v492 = vunpack.c.l.b16 %v421
      %v493 = vunpack.c.l.b16 %v422
      %v494 = vunpack.c.l.b16 %v423
      %v495 = vunpack.c.l.b16 %v424
      %v496 = vunpack.c.l.b16 %v425
      %v497 = vunpack.c.l.b16 %v426
      %v498 = vunpack.c.l.b16 %v427
      %v499 = vunpack.c.l.b16 %v428
      %v500 = vunpack.c.l.b16 %v429
      %v501 = vunpack.c.l.b16 %v430
      %v502 = vunpack.c.l.b16 %v431
      %v503 = vunpack.c.l.b16 %v432
      %v504 = vunpack.c.l.b16 %v433
      %v505 = vunpack.c.l.b16 %v434
      %v506 = vunpack.c.l.b16 %v435
      %v507 = vunpack.c.l.b16 %v436
      %v508 = vunpack.c.l.b16 %v437
      %v509 = vunpack.c.l.b16 %v438
      %v510 = vunpack.c.l.b16 %v439
      %v511 = vunpack.c.l.b16 %v440
      %v512 = vunpack.c.l.b16 %v441
      %v513 = vunpack.c.l.b16 %v442
      %v514 = vunpack.c.l.b16 %v443
      %v515 = vunpack.c.l.b16 %v444
      %v516 = vunpack.c.l.b16 %v445
      %v517 = vpack.c.b16 %v486, %v485
      %v518 = vpack.c.b16 %v488, %v487
      %v519 = vpack.c.b16 %v490, %v489
      %v520 = vpack.c.b16 %v492, %v491
      %v521 = vpack.c.b16 %v494, %v493
      %v522 = vpack.c.b16 %v496, %v495
      %v523 = vpack.c.b16 %v498, %v497
      %v524 = vpack.c.b16 %v500, %v499
      %v525 = vpack.c.b16 %v502, %v501
      %v526 = vpack.c.b16 %v504, %v503
      %v527 = vpack.c.b16 %v506, %v505
      %v528 = vpack.c.b16 %v508, %v507
      %v529 = vpack.c.b16 %v510, %v509
      %v530 = vpack.c.b16 %v512, %v511
      %v531 = vpack.c.b16 %v514, %v513
      %v532 = vpack.c.b16 %v516, %v515
      %549 = vmatprep.subr.bf16.mxu0 0
      %550 = vmatpush1.bf16.msra.mxu0 %v524
      %551 = vmatprep.subr.bf16.mxu0 0
      %552 = vmatpush1.bf16.msra.mxu0 %v523
      %553 = vmatprep.subr.bf16.mxu0 0
      %554 = vmatpush1.bf16.msra.mxu0 %v522
      %555 = vmatprep.subr.bf16.mxu0 0
      %556 = vmatpush1.bf16.msra.mxu0 %v521
      %557 = vmatprep.subr.bf16.mxu0 0
      %558 = vmatpush1.bf16.msra.mxu0 %v520
      %559 = vmatprep.subr.bf16.mxu0 0
      %560 = vmatpush1.bf16.msra.mxu0 %v519
      %561 = vmatprep.subr.bf16.mxu0 0
      %562 = vmatpush1.bf16.msra.mxu0 %v518
      %563 = vmatprep.subr.bf16.mxu0 0
      %564 = vmatpush1.bf16.msra.mxu0 %v517
      %565 = vmatprep.subr.bf16.mxu0 0
      %566 = vmatpush2.bf16.msra.mxu0 %v532
      %567 = vmatprep.subr.bf16.mxu0 0
      %568 = vmatpush2.bf16.msra.mxu0 %v531
      %569 = vmatprep.subr.bf16.mxu0 0
      %570 = vmatpush2.bf16.msra.mxu0 %v530
      %571 = vmatprep.subr.bf16.mxu0 0
      %572 = vmatpush2.bf16.msra.mxu0 %v529
      %573 = vmatprep.subr.bf16.mxu0 0
      %574 = vmatpush2.bf16.msra.mxu0 %v528
      %575 = vmatprep.subr.bf16.mxu0 0
      %576 = vmatpush2.bf16.msra.mxu0 %v527
      %577 = vmatprep.subr.bf16.mxu0 0
      %578 = vmatpush2.bf16.msra.mxu0 %v526
      %579 = vmatprep.subr.bf16.mxu0 0
      %580 = vmatpush2.bf16.msra.mxu0 %v525
      %581 = vmatprep.mubr.bf16.mxu0 %v450
      %582 = vmatmul.mubr.bf16.gmra.mxu0 %v449
      %v583 = vpop.f32.mrf.mxu0
      %v584 = vadd.f32 0.0, %v583
      %v585 = vpop.f32.mrf.mxu0
      %v586 = vpop.f32.mrf.mxu0
      %v587 = vpop.f32.mrf.mxu0
      %588 = vdwg.mxu0
      %vm589 = vcmask 523264
      %590 = vst.msk [vmem:[#allocation2] sm:$0xff] %vm589, %v584
      %s591 = scalar_lea.vmem %s1, 128
      %v592 = vld [vmem:[%s591] sm:$0xf]
      %v593 = vld [vmem:[%s591 + $0x4] sm:$0xf]
      %v594 = vld [vmem:[%s591 + $0x8] sm:$0xf]
      %v595 = vld [vmem:[%s591 + $0xc] sm:$0xf]
      %v596 = vld [vmem:[%s591 + $0x10] sm:$0xf]
      %v597 = vld [vmem:[%s591 + $0x14] sm:$0xf]
      %v598 = vld [vmem:[%s591 + $0x18] sm:$0xf]
      %v599 = vld [vmem:[%s591 + $0x1c] sm:$0xf]
      %v600 = vld [vmem:[%s591 + $0x20] sm:$0xf]
      %v601 = vld [vmem:[%s591 + $0x24] sm:$0xf]
      %v602 = vld [vmem:[%s591 + $0x28] sm:$0xf]
      %v603 = vld [vmem:[%s591 + $0x2c] sm:$0xf]
      %v604 = vld [vmem:[%s591 + $0x30] sm:$0xf]
      %v605 = vld [vmem:[%s591 + $0x34] sm:$0xf]
      %v606 = vld [vmem:[%s591 + $0x38] sm:$0xf]
      %v607 = vld [vmem:[%s591 + $0x3c] sm:$0xf]
      %v608 = vld [vmem:[%s591 + $0x40] sm:$0xf]
      %v609 = vld [vmem:[%s591 + $0x44] sm:$0xf]
      %v610 = vld [vmem:[%s591 + $0x48] sm:$0xf]
      %v611 = vld [vmem:[%s591 + $0x4c] sm:$0xf]
      %v612 = vld [vmem:[%s591 + $0x50] sm:$0xf]
      %v613 = vld [vmem:[%s591 + $0x54] sm:$0xf]
      %v614 = vld [vmem:[%s591 + $0x58] sm:$0xf]
      %v615 = vld [vmem:[%s591 + $0x5c] sm:$0xf]
      %v616 = vld [vmem:[%s591 + $0x60] sm:$0xf]
      %v617 = vld [vmem:[%s591 + $0x64] sm:$0xf]
      %v618 = vld [vmem:[%s591 + $0x68] sm:$0xf]
      %v619 = vld [vmem:[%s591 + $0x6c] sm:$0xf]
      %v620 = vld [vmem:[%s591 + $0x70] sm:$0xf]
      %v621 = vld [vmem:[%s591 + $0x74] sm:$0xf]
      %v622 = vld [vmem:[%s591 + $0x78] sm:$0xf]
      %v623 = vld [vmem:[%s591 + $0x7c] sm:$0xf]
      %v656 = vunpack.c.l.b16 %v592
      %v657 = vunpack.c.l.b16 %v593
      %v658 = vunpack.c.l.b16 %v594
      %v659 = vunpack.c.l.b16 %v595
      %v660 = vunpack.c.l.b16 %v596
      %v661 = vunpack.c.l.b16 %v597
      %v662 = vunpack.c.l.b16 %v598
      %v663 = vunpack.c.l.b16 %v599
      %v664 = vunpack.c.l.b16 %v600
      %v665 = vunpack.c.l.b16 %v601
      %v666 = vunpack.c.l.b16 %v602
      %v667 = vunpack.c.l.b16 %v603
      %v668 = vunpack.c.l.b16 %v604
      %v669 = vunpack.c.l.b16 %v605
      %v670 = vunpack.c.l.b16 %v606
      %v671 = vunpack.c.l.b16 %v607
      %v672 = vunpack.c.l.b16 %v608
      %v673 = vunpack.c.l.b16 %v609
      %v674 = vunpack.c.l.b16 %v610
      %v675 = vunpack.c.l.b16 %v611
      %v676 = vunpack.c.l.b16 %v612
      %v677 = vunpack.c.l.b16 %v613
      %v678 = vunpack.c.l.b16 %v614
      %v679 = vunpack.c.l.b16 %v615
      %v680 = vunpack.c.l.b16 %v616
      %v681 = vunpack.c.l.b16 %v617
      %v682 = vunpack.c.l.b16 %v618
      %v683 = vunpack.c.l.b16 %v619
      %v684 = vunpack.c.l.b16 %v620
      %v685 = vunpack.c.l.b16 %v621
      %v686 = vunpack.c.l.b16 %v622
      %v687 = vunpack.c.l.b16 %v623
      %v688 = vpack.c.b16 %v657, %v656
      %v689 = vpack.c.b16 %v659, %v658
      %v690 = vpack.c.b16 %v661, %v660
      %v691 = vpack.c.b16 %v663, %v662
      %v692 = vpack.c.b16 %v665, %v664
      %v693 = vpack.c.b16 %v667, %v666
      %v694 = vpack.c.b16 %v669, %v668
      %v695 = vpack.c.b16 %v671, %v670
      %v696 = vpack.c.b16 %v673, %v672
      %v697 = vpack.c.b16 %v675, %v674
      %v698 = vpack.c.b16 %v677, %v676
      %v699 = vpack.c.b16 %v679, %v678
      %v700 = vpack.c.b16 %v681, %v680
      %v701 = vpack.c.b16 %v683, %v682
      %v702 = vpack.c.b16 %v685, %v684
      %v703 = vpack.c.b16 %v687, %v686
      %720 = vmatprep.subr.bf16.mxu0 0
      %721 = vmatpush1.bf16.msra.mxu0 %v695
      %722 = vmatprep.subr.bf16.mxu0 0
      %723 = vmatpush1.bf16.msra.mxu0 %v694
      %724 = vmatprep.subr.bf16.mxu0 0
      %725 = vmatpush1.bf16.msra.mxu0 %v693
      %726 = vmatprep.subr.bf16.mxu0 0
      %727 = vmatpush1.bf16.msra.mxu0 %v692
      %728 = vmatprep.subr.bf16.mxu0 0
      %729 = vmatpush1.bf16.msra.mxu0 %v691
      %730 = vmatprep.subr.bf16.mxu0 0
      %731 = vmatpush1.bf16.msra.mxu0 %v690
      %732 = vmatprep.subr.bf16.mxu0 0
      %733 = vmatpush1.bf16.msra.mxu0 %v689
      %734 = vmatprep.subr.bf16.mxu0 0
      %735 = vmatpush1.bf16.msra.mxu0 %v688
      %736 = vmatprep.subr.bf16.mxu0 0
      %737 = vmatpush2.bf16.msra.mxu0 %v703
      %738 = vmatprep.subr.bf16.mxu0 0
      %739 = vmatpush2.bf16.msra.mxu0 %v702
      %740 = vmatprep.subr.bf16.mxu0 0
      %741 = vmatpush2.bf16.msra.mxu0 %v701
      %742 = vmatprep.subr.bf16.mxu0 0
      %743 = vmatpush2.bf16.msra.mxu0 %v700
      %744 = vmatprep.subr.bf16.mxu0 0
      %745 = vmatpush2.bf16.msra.mxu0 %v699
      %746 = vmatprep.subr.bf16.mxu0 0
      %747 = vmatpush2.bf16.msra.mxu0 %v698
      %748 = vmatprep.subr.bf16.mxu0 0
      %749 = vmatpush2.bf16.msra.mxu0 %v697
      %750 = vmatprep.subr.bf16.mxu0 0
      %751 = vmatpush2.bf16.msra.mxu0 %v696
      %752 = vmatprep.mubr.bf16.mxu0 %v450
      %753 = vmatmul.mubr.bf16.gmra.mxu0 %v449
      %v754 = vpop.f32.mrf.mxu0
      %v755 = vadd.f32 0.0, %v754
      %v756 = vpop.f32.mrf.mxu0
      %v757 = vpop.f32.mrf.mxu0
      %v758 = vpop.f32.mrf.mxu0
      %759 = vdwg.mxu0
      %760 = vst.msk [vmem:[#allocation2 + $0x8] sm:$0xff] %vm589, %v755
      %s761 = scalar_lea.vmem %s1, 256
      %v762 = vld [vmem:[%s761] sm:$0xf]
      %v763 = vld [vmem:[%s761 + $0x4] sm:$0xf]
      %v764 = vld [vmem:[%s761 + $0x8] sm:$0xf]
      %v765 = vld [vmem:[%s761 + $0xc] sm:$0xf]
      %v766 = vld [vmem:[%s761 + $0x10] sm:$0xf]
      %v767 = vld [vmem:[%s761 + $0x14] sm:$0xf]
      %v768 = vld [vmem:[%s761 + $0x18] sm:$0xf]
      %v769 = vld [vmem:[%s761 + $0x1c] sm:$0xf]
      %v770 = vld [vmem:[%s761 + $0x20] sm:$0xf]
      %v771 = vld [vmem:[%s761 + $0x24] sm:$0xf]
      %v772 = vld [vmem:[%s761 + $0x28] sm:$0xf]
      %v773 = vld [vmem:[%s761 + $0x2c] sm:$0xf]
      %v774 = vld [vmem:[%s761 + $0x30] sm:$0xf]
      %v775 = vld [vmem:[%s761 + $0x34] sm:$0xf]
      %v776 = vld [vmem:[%s761 + $0x38] sm:$0xf]
      %v777 = vld [vmem:[%s761 + $0x3c] sm:$0xf]
      %v778 = vld [vmem:[%s761 + $0x40] sm:$0xf]
      %v779 = vld [vmem:[%s761 + $0x44] sm:$0xf]
      %v780 = vld [vmem:[%s761 + $0x48] sm:$0xf]
      %v781 = vld [vmem:[%s761 + $0x4c] sm:$0xf]
      %v782 = vld [vmem:[%s761 + $0x50] sm:$0xf]
      %v783 = vld [vmem:[%s761 + $0x54] sm:$0xf]
      %v784 = vld [vmem:[%s761 + $0x58] sm:$0xf]
      %v785 = vld [vmem:[%s761 + $0x5c] sm:$0xf]
      %v786 = vld [vmem:[%s761 + $0x60] sm:$0xf]
      %v787 = vld [vmem:[%s761 + $0x64] sm:$0xf]
      %v788 = vld [vmem:[%s761 + $0x68] sm:$0xf]
      %v789 = vld [vmem:[%s761 + $0x6c] sm:$0xf]
      %v790 = vld [vmem:[%s761 + $0x70] sm:$0xf]
      %v791 = vld [vmem:[%s761 + $0x74] sm:$0xf]
      %v792 = vld [vmem:[%s761 + $0x78] sm:$0xf]
      %v793 = vld [vmem:[%s761 + $0x7c] sm:$0xf]
      %v826 = vunpack.c.l.b16 %v762
      %v827 = vunpack.c.l.b16 %v763
      %v828 = vunpack.c.l.b16 %v764
      %v829 = vunpack.c.l.b16 %v765
      %v830 = vunpack.c.l.b16 %v766
      %v831 = vunpack.c.l.b16 %v767
      %v832 = vunpack.c.l.b16 %v768
      %v833 = vunpack.c.l.b16 %v769
      %v834 = vunpack.c.l.b16 %v770
      %v835 = vunpack.c.l.b16 %v771
      %v836 = vunpack.c.l.b16 %v772
      %v837 = vunpack.c.l.b16 %v773
      %v838 = vunpack.c.l.b16 %v774
      %v839 = vunpack.c.l.b16 %v775
      %v840 = vunpack.c.l.b16 %v776
      %v841 = vunpack.c.l.b16 %v777
      %v842 = vunpack.c.l.b16 %v778
      %v843 = vunpack.c.l.b16 %v779
      %v844 = vunpack.c.l.b16 %v780
      %v845 = vunpack.c.l.b16 %v781
      %v846 = vunpack.c.l.b16 %v782
      %v847 = vunpack.c.l.b16 %v783
      %v848 = vunpack.c.l.b16 %v784
      %v849 = vunpack.c.l.b16 %v785
      %v850 = vunpack.c.l.b16 %v786
      %v851 = vunpack.c.l.b16 %v787
      %v852 = vunpack.c.l.b16 %v788
      %v853 = vunpack.c.l.b16 %v789
      %v854 = vunpack.c.l.b16 %v790
      %v855 = vunpack.c.l.b16 %v791
      %v856 = vunpack.c.l.b16 %v792
      %v857 = vunpack.c.l.b16 %v793
      %v858 = vpack.c.b16 %v827, %v826
      %v859 = vpack.c.b16 %v829, %v828
      %v860 = vpack.c.b16 %v831, %v830
      %v861 = vpack.c.b16 %v833, %v832
      %v862 = vpack.c.b16 %v835, %v834
      %v863 = vpack.c.b16 %v837, %v836
      %v864 = vpack.c.b16 %v839, %v838
      %v865 = vpack.c.b16 %v841, %v840
      %v866 = vpack.c.b16 %v843, %v842
      %v867 = vpack.c.b16 %v845, %v844
      %v868 = vpack.c.b16 %v847, %v846
      %v869 = vpack.c.b16 %v849, %v848
      %v870 = vpack.c.b16 %v851, %v850
      %v871 = vpack.c.b16 %v853, %v852
      %v872 = vpack.c.b16 %v855, %v854
      %v873 = vpack.c.b16 %v857, %v856
      %890 = vmatprep.subr.bf16.mxu0 0
      %891 = vmatpush1.bf16.msra.mxu0 %v865
      %892 = vmatprep.subr.bf16.mxu0 0
      %893 = vmatpush1.bf16.msra.mxu0 %v864
      %894 = vmatprep.subr.bf16.mxu0 0
      %895 = vmatpush1.bf16.msra.mxu0 %v863
      %896 = vmatprep.subr.bf16.mxu0 0
      %897 = vmatpush1.bf16.msra.mxu0 %v862
      %898 = vmatprep.subr.bf16.mxu0 0
      %899 = vmatpush1.bf16.msra.mxu0 %v861
      %900 = vmatprep.subr.bf16.mxu0 0
      %901 = vmatpush1.bf16.msra.mxu0 %v860
      %902 = vmatprep.subr.bf16.mxu0 0
      %903 = vmatpush1.bf16.msra.mxu0 %v859
      %904 = vmatprep.subr.bf16.mxu0 0
      %905 = vmatpush1.bf16.msra.mxu0 %v858
      %906 = vmatprep.subr.bf16.mxu0 0
      %907 = vmatpush2.bf16.msra.mxu0 %v873
      %908 = vmatprep.subr.bf16.mxu0 0
      %909 = vmatpush2.bf16.msra.mxu0 %v872
      %910 = vmatprep.subr.bf16.mxu0 0
      %911 = vmatpush2.bf16.msra.mxu0 %v871
      %912 = vmatprep.subr.bf16.mxu0 0
      %913 = vmatpush2.bf16.msra.mxu0 %v870
      %914 = vmatprep.subr.bf16.mxu0 0
      %915 = vmatpush2.bf16.msra.mxu0 %v869
      %916 = vmatprep.subr.bf16.mxu0 0
      %917 = vmatpush2.bf16.msra.mxu0 %v868
      %918 = vmatprep.subr.bf16.mxu0 0
      %919 = vmatpush2.bf16.msra.mxu0 %v867
      %920 = vmatprep.subr.bf16.mxu0 0
      %921 = vmatpush2.bf16.msra.mxu0 %v866
      %922 = vmatprep.mubr.bf16.mxu0 %v450
      %923 = vmatmul.mubr.bf16.gmra.mxu0 %v449
      %v924 = vpop.f32.mrf.mxu0
      %v925 = vadd.f32 0.0, %v924
      %v926 = vpop.f32.mrf.mxu0
      %v927 = vpop.f32.mrf.mxu0
      %v928 = vpop.f32.mrf.mxu0
      %929 = vdwg.mxu0
      %930 = vst.msk [vmem:[#allocation2 + $0x10] sm:$0xff] %vm589, %v925
      %s931 = scalar_lea.vmem %s1, 384
      %v932 = vld [vmem:[%s931] sm:$0xf]
      %v933 = vld [vmem:[%s931 + $0x4] sm:$0xf]
      %v934 = vld [vmem:[%s931 + $0x8] sm:$0xf]
      %v935 = vld [vmem:[%s931 + $0xc] sm:$0xf]
      %v936 = vld [vmem:[%s931 + $0x10] sm:$0xf]
      %v937 = vld [vmem:[%s931 + $0x14] sm:$0xf]
      %v938 = vld [vmem:[%s931 + $0x18] sm:$0xf]
      %v939 = vld [vmem:[%s931 + $0x1c] sm:$0xf]
      %v940 = vld [vmem:[%s931 + $0x20] sm:$0xf]
      %v941 = vld [vmem:[%s931 + $0x24] sm:$0xf]
      %v942 = vld [vmem:[%s931 + $0x28] sm:$0xf]
      %v943 = vld [vmem:[%s931 + $0x2c] sm:$0xf]
      %v944 = vld [vmem:[%s931 + $0x30] sm:$0xf]
      %v945 = vld [vmem:[%s931 + $0x34] sm:$0xf]
      %v946 = vld [vmem:[%s931 + $0x38] sm:$0xf]
      %v947 = vld [vmem:[%s931 + $0x3c] sm:$0xf]
      %v948 = vld [vmem:[%s931 + $0x40] sm:$0xf]
      %v949 = vld [vmem:[%s931 + $0x44] sm:$0xf]
      %v950 = vld [vmem:[%s931 + $0x48] sm:$0xf]
      %v951 = vld [vmem:[%s931 + $0x4c] sm:$0xf]
      %v952 = vld [vmem:[%s931 + $0x50] sm:$0xf]
      %v953 = vld [vmem:[%s931 + $0x54] sm:$0xf]
      %v954 = vld [vmem:[%s931 + $0x58] sm:$0xf]
      %v955 = vld [vmem:[%s931 + $0x5c] sm:$0xf]
      %v956 = vld [vmem:[%s931 + $0x60] sm:$0xf]
      %v957 = vld [vmem:[%s931 + $0x64] sm:$0xf]
      %v958 = vld [vmem:[%s931 + $0x68] sm:$0xf]
      %v959 = vld [vmem:[%s931 + $0x6c] sm:$0xf]
      %v960 = vld [vmem:[%s931 + $0x70] sm:$0xf]
      %v961 = vld [vmem:[%s931 + $0x74] sm:$0xf]
      %v962 = vld [vmem:[%s931 + $0x78] sm:$0xf]
      %v963 = vld [vmem:[%s931 + $0x7c] sm:$0xf]
      %v996 = vunpack.c.l.b16 %v932
      %v997 = vunpack.c.l.b16 %v933
      %v998 = vunpack.c.l.b16 %v934
      %v999 = vunpack.c.l.b16 %v935
      %v1000 = vunpack.c.l.b16 %v936
      %v1001 = vunpack.c.l.b16 %v937
      %v1002 = vunpack.c.l.b16 %v938
      %v1003 = vunpack.c.l.b16 %v939
      %v1004 = vunpack.c.l.b16 %v940
      %v1005 = vunpack.c.l.b16 %v941
      %v1006 = vunpack.c.l.b16 %v942
      %v1007 = vunpack.c.l.b16 %v943
      %v1008 = vunpack.c.l.b16 %v944
      %v1009 = vunpack.c.l.b16 %v945
      %v1010 = vunpack.c.l.b16 %v946
      %v1011 = vunpack.c.l.b16 %v947
      %v1012 = vunpack.c.l.b16 %v948
      %v1013 = vunpack.c.l.b16 %v949
      %v1014 = vunpack.c.l.b16 %v950
      %v1015 = vunpack.c.l.b16 %v951
      %v1016 = vunpack.c.l.b16 %v952
      %v1017 = vunpack.c.l.b16 %v953
      %v1018 = vunpack.c.l.b16 %v954
      %v1019 = vunpack.c.l.b16 %v955
      %v1020 = vunpack.c.l.b16 %v956
      %v1021 = vunpack.c.l.b16 %v957
      %v1022 = vunpack.c.l.b16 %v958
      %v1023 = vunpack.c.l.b16 %v959
      %v1024 = vunpack.c.l.b16 %v960
      %v1025 = vunpack.c.l.b16 %v961
      %v1026 = vunpack.c.l.b16 %v962
      %v1027 = vunpack.c.l.b16 %v963
      %v1028 = vpack.c.b16 %v997, %v996
      %v1029 = vpack.c.b16 %v999, %v998
      %v1030 = vpack.c.b16 %v1001, %v1000
      %v1031 = vpack.c.b16 %v1003, %v1002
      %v1032 = vpack.c.b16 %v1005, %v1004
      %v1033 = vpack.c.b16 %v1007, %v1006
      %v1034 = vpack.c.b16 %v1009, %v1008
      %v1035 = vpack.c.b16 %v1011, %v1010
      %v1036 = vpack.c.b16 %v1013, %v1012
      %v1037 = vpack.c.b16 %v1015, %v1014
      %v1038 = vpack.c.b16 %v1017, %v1016
      %v1039 = vpack.c.b16 %v1019, %v1018
      %v1040 = vpack.c.b16 %v1021, %v1020
      %v1041 = vpack.c.b16 %v1023, %v1022
      %v1042 = vpack.c.b16 %v1025, %v1024
      %v1043 = vpack.c.b16 %v1027, %v1026
      %1060 = vmatprep.subr.bf16.mxu0 0
      %1061 = vmatpush1.bf16.msra.mxu0 %v1035
      %1062 = vmatprep.subr.bf16.mxu0 0
      %1063 = vmatpush1.bf16.msra.mxu0 %v1034
      %1064 = vmatprep.subr.bf16.mxu0 0
      %1065 = vmatpush1.bf16.msra.mxu0 %v1033
      %1066 = vmatprep.subr.bf16.mxu0 0
      %1067 = vmatpush1.bf16.msra.mxu0 %v1032
      %1068 = vmatprep.subr.bf16.mxu0 0
      %1069 = vmatpush1.bf16.msra.mxu0 %v1031
      %1070 = vmatprep.subr.bf16.mxu0 0
      %1071 = vmatpush1.bf16.msra.mxu0 %v1030
      %1072 = vmatprep.subr.bf16.mxu0 0
      %1073 = vmatpush1.bf16.msra.mxu0 %v1029
      %1074 = vmatprep.subr.bf16.mxu0 0
      %1075 = vmatpush1.bf16.msra.mxu0 %v1028
      %1076 = vmatprep.subr.bf16.mxu0 0
      %1077 = vmatpush2.bf16.msra.mxu0 %v1043
      %1078 = vmatprep.subr.bf16.mxu0 0
      %1079 = vmatpush2.bf16.msra.mxu0 %v1042
      %1080 = vmatprep.subr.bf16.mxu0 0
      %1081 = vmatpush2.bf16.msra.mxu0 %v1041
      %1082 = vmatprep.subr.bf16.mxu0 0
      %1083 = vmatpush2.bf16.msra.mxu0 %v1040
      %1084 = vmatprep.subr.bf16.mxu0 0
      %1085 = vmatpush2.bf16.msra.mxu0 %v1039
      %1086 = vmatprep.subr.bf16.mxu0 0
      %1087 = vmatpush2.bf16.msra.mxu0 %v1038
      %1088 = vmatprep.subr.bf16.mxu0 0
      %1089 = vmatpush2.bf16.msra.mxu0 %v1037
      %1090 = vmatprep.subr.bf16.mxu0 0
      %1091 = vmatpush2.bf16.msra.mxu0 %v1036
      %1092 = vmatprep.mubr.bf16.mxu0 %v450
      %1093 = vmatmul.mubr.bf16.gmra.mxu0 %v449
      %v1094 = vpop.f32.mrf.mxu0
      %v1095 = vadd.f32 0.0, %v1094
      %v1096 = vpop.f32.mrf.mxu0
      %v1097 = vpop.f32.mrf.mxu0
      %v1098 = vpop.f32.mrf.mxu0
      %1099 = vdwg.mxu0
      %1100 = vst.msk [vmem:[#allocation2 + $0x18] sm:$0xff] %vm589, %v1095
      %s1101 = scalar_lea.vmem %s1, 512
      %v1102 = vld [vmem:[%s1101] sm:$0xf]
      %v1103 = vld [vmem:[%s1101 + $0x4] sm:$0xf]
      %v1104 = vld [vmem:[%s1101 + $0x8] sm:$0xf]
      %v1105 = vld [vmem:[%s1101 + $0xc] sm:$0xf]
      %v1106 = vld [vmem:[%s1101 + $0x10] sm:$0xf]
      %v1107 = vld [vmem:[%s1101 + $0x14] sm:$0xf]
      %v1108 = vld [vmem:[%s1101 + $0x18] sm:$0xf]
      %v1109 = vld [vmem:[%s1101 + $0x1c] sm:$0xf]
      %v1110 = vld [vmem:[%s1101 + $0x20] sm:$0xf]
      %v1111 = vld [vmem:[%s1101 + $0x24] sm:$0xf]
      %v1112 = vld [vmem:[%s1101 + $0x28] sm:$0xf]
      %v1113 = vld [vmem:[%s1101 + $0x2c] sm:$0xf]
      %v1114 = vld [vmem:[%s1101 + $0x30] sm:$0xf]
      %v1115 = vld [vmem:[%s1101 + $0x34] sm:$0xf]
      %v1116 = vld [vmem:[%s1101 + $0x38] sm:$0xf]
      %v1117 = vld [vmem:[%s1101 + $0x3c] sm:$0xf]
      %v1118 = vld [vmem:[%s1101 + $0x40] sm:$0xf]
      %v1119 = vld [vmem:[%s1101 + $0x44] sm:$0xf]
      %v1120 = vld [vmem:[%s1101 + $0x48] sm:$0xf]
      %v1121 = vld [vmem:[%s1101 + $0x4c] sm:$0xf]
      %v1122 = vld [vmem:[%s1101 + $0x50] sm:$0xf]
      %v1123 = vld [vmem:[%s1101 + $0x54] sm:$0xf]
      %v1124 = vld [vmem:[%s1101 + $0x58] sm:$0xf]
      %v1125 = vld [vmem:[%s1101 + $0x5c] sm:$0xf]
      %v1126 = vld [vmem:[%s1101 + $0x60] sm:$0xf]
      %v1127 = vld [vmem:[%s1101 + $0x64] sm:$0xf]
      %v1128 = vld [vmem:[%s1101 + $0x68] sm:$0xf]
      %v1129 = vld [vmem:[%s1101 + $0x6c] sm:$0xf]
      %v1130 = vld [vmem:[%s1101 + $0x70] sm:$0xf]
      %v1131 = vld [vmem:[%s1101 + $0x74] sm:$0xf]
      %v1132 = vld [vmem:[%s1101 + $0x78] sm:$0xf]
      %v1133 = vld [vmem:[%s1101 + $0x7c] sm:$0xf]
      %v1166 = vunpack.c.l.b16 %v1102
      %v1167 = vunpack.c.l.b16 %v1103
      %v1168 = vunpack.c.l.b16 %v1104
      %v1169 = vunpack.c.l.b16 %v1105
      %v1170 = vunpack.c.l.b16 %v1106
      %v1171 = vunpack.c.l.b16 %v1107
      %v1172 = vunpack.c.l.b16 %v1108
      %v1173 = vunpack.c.l.b16 %v1109
      %v1174 = vunpack.c.l.b16 %v1110
      %v1175 = vunpack.c.l.b16 %v1111
      %v1176 = vunpack.c.l.b16 %v1112
      %v1177 = vunpack.c.l.b16 %v1113
      %v1178 = vunpack.c.l.b16 %v1114
      %v1179 = vunpack.c.l.b16 %v1115
      %v1180 = vunpack.c.l.b16 %v1116
      %v1181 = vunpack.c.l.b16 %v1117
      %v1182 = vunpack.c.l.b16 %v1118
      %v1183 = vunpack.c.l.b16 %v1119
      %v1184 = vunpack.c.l.b16 %v1120
      %v1185 = vunpack.c.l.b16 %v1121
      %v1186 = vunpack.c.l.b16 %v1122
      %v1187 = vunpack.c.l.b16 %v1123
      %v1188 = vunpack.c.l.b16 %v1124
      %v1189 = vunpack.c.l.b16 %v1125
      %v1190 = vunpack.c.l.b16 %v1126
      %v1191 = vunpack.c.l.b16 %v1127
      %v1192 = vunpack.c.l.b16 %v1128
      %v1193 = vunpack.c.l.b16 %v1129
      %v1194 = vunpack.c.l.b16 %v1130
      %v1195 = vunpack.c.l.b16 %v1131
      %v1196 = vunpack.c.l.b16 %v1132
      %v1197 = vunpack.c.l.b16 %v1133
      %v1198 = vpack.c.b16 %v1167, %v1166
      %v1199 = vpack.c.b16 %v1169, %v1168
      %v1200 = vpack.c.b16 %v1171, %v1170
      %v1201 = vpack.c.b16 %v1173, %v1172
      %v1202 = vpack.c.b16 %v1175, %v1174
      %v1203 = vpack.c.b16 %v1177, %v1176
      %v1204 = vpack.c.b16 %v1179, %v1178
      %v1205 = vpack.c.b16 %v1181, %v1180
      %v1206 = vpack.c.b16 %v1183, %v1182
      %v1207 = vpack.c.b16 %v1185, %v1184
      %v1208 = vpack.c.b16 %v1187, %v1186
      %v1209 = vpack.c.b16 %v1189, %v1188
      %v1210 = vpack.c.b16 %v1191, %v1190
      %v1211 = vpack.c.b16 %v1193, %v1192
      %v1212 = vpack.c.b16 %v1195, %v1194
      %v1213 = vpack.c.b16 %v1197, %v1196
      %1230 = vmatprep.subr.bf16.mxu0 0
      %1231 = vmatpush1.bf16.msra.mxu0 %v1205
      %1232 = vmatprep.subr.bf16.mxu0 0
      %1233 = vmatpush1.bf16.msra.mxu0 %v1204
      %1234 = vmatprep.subr.bf16.mxu0 0
      %1235 = vmatpush1.bf16.msra.mxu0 %v1203
      %1236 = vmatprep.subr.bf16.mxu0 0
      %1237 = vmatpush1.bf16.msra.mxu0 %v1202
      %1238 = vmatprep.subr.bf16.mxu0 0
      %1239 = vmatpush1.bf16.msra.mxu0 %v1201
      %1240 = vmatprep.subr.bf16.mxu0 0
      %1241 = vmatpush1.bf16.msra.mxu0 %v1200
      %1242 = vmatprep.subr.bf16.mxu0 0
      %1243 = vmatpush1.bf16.msra.mxu0 %v1199
      %1244 = vmatprep.subr.bf16.mxu0 0
      %1245 = vmatpush1.bf16.msra.mxu0 %v1198
      %1246 = vmatprep.subr.bf16.mxu0 0
      %1247 = vmatpush2.bf16.msra.mxu0 %v1213
      %1248 = vmatprep.subr.bf16.mxu0 0
      %1249 = vmatpush2.bf16.msra.mxu0 %v1212
      %1250 = vmatprep.subr.bf16.mxu0 0
      %1251 = vmatpush2.bf16.msra.mxu0 %v1211
      %1252 = vmatprep.subr.bf16.mxu0 0
      %1253 = vmatpush2.bf16.msra.mxu0 %v1210
      %1254 = vmatprep.subr.bf16.mxu0 0
      %1255 = vmatpush2.bf16.msra.mxu0 %v1209
      %1256 = vmatprep.subr.bf16.mxu0 0
      %1257 = vmatpush2.bf16.msra.mxu0 %v1208
      %1258 = vmatprep.subr.bf16.mxu0 0
      %1259 = vmatpush2.bf16.msra.mxu0 %v1207
      %1260 = vmatprep.subr.bf16.mxu0 0
      %1261 = vmatpush2.bf16.msra.mxu0 %v1206
      %1262 = vmatprep.mubr.bf16.mxu0 %v450
      %1263 = vmatmul.mubr.bf16.gmra.mxu0 %v449
      %v1264 = vpop.f32.mrf.mxu0
      %v1265 = vadd.f32 0.0, %v1264
      %v1266 = vpop.f32.mrf.mxu0
      %v1267 = vpop.f32.mrf.mxu0
      %v1268 = vpop.f32.mrf.mxu0
      %1269 = vdwg.mxu0
      %1270 = vst.msk [vmem:[#allocation2 + $0x20] sm:$0xff] %vm589, %v1265
      %s1271 = scalar_lea.vmem %s1, 640
      %v1272 = vld [vmem:[%s1271] sm:$0xf]
      %v1273 = vld [vmem:[%s1271 + $0x4] sm:$0xf]
      %v1274 = vld [vmem:[%s1271 + $0x8] sm:$0xf]
      %v1275 = vld [vmem:[%s1271 + $0xc] sm:$0xf]
      %v1276 = vld [vmem:[%s1271 + $0x10] sm:$0xf]
      %v1277 = vld [vmem:[%s1271 + $0x14] sm:$0xf]
      %v1278 = vld [vmem:[%s1271 + $0x18] sm:$0xf]
      %v1279 = vld [vmem:[%s1271 + $0x1c] sm:$0xf]
      %v1280 = vld [vmem:[%s1271 + $0x20] sm:$0xf]
      %v1281 = vld [vmem:[%s1271 + $0x24] sm:$0xf]
      %v1282 = vld [vmem:[%s1271 + $0x28] sm:$0xf]
      %v1283 = vld [vmem:[%s1271 + $0x2c] sm:$0xf]
      %v1284 = vld [vmem:[%s1271 + $0x30] sm:$0xf]
      %v1285 = vld [vmem:[%s1271 + $0x34] sm:$0xf]
      %v1286 = vld [vmem:[%s1271 + $0x38] sm:$0xf]
      %v1287 = vld [vmem:[%s1271 + $0x3c] sm:$0xf]
      %v1288 = vld [vmem:[%s1271 + $0x40] sm:$0xf]
      %v1289 = vld [vmem:[%s1271 + $0x44] sm:$0xf]
      %v1290 = vld [vmem:[%s1271 + $0x48] sm:$0xf]
      %v1291 = vld [vmem:[%s1271 + $0x4c] sm:$0xf]
      %v1292 = vld [vmem:[%s1271 + $0x50] sm:$0xf]
      %v1293 = vld [vmem:[%s1271 + $0x54] sm:$0xf]
      %v1294 = vld [vmem:[%s1271 + $0x58] sm:$0xf]
      %v1295 = vld [vmem:[%s1271 + $0x5c] sm:$0xf]
      %v1296 = vld [vmem:[%s1271 + $0x60] sm:$0xf]
      %v1297 = vld [vmem:[%s1271 + $0x64] sm:$0xf]
      %v1298 = vld [vmem:[%s1271 + $0x68] sm:$0xf]
      %v1299 = vld [vmem:[%s1271 + $0x6c] sm:$0xf]
      %v1300 = vld [vmem:[%s1271 + $0x70] sm:$0xf]
      %v1301 = vld [vmem:[%s1271 + $0x74] sm:$0xf]
      %v1302 = vld [vmem:[%s1271 + $0x78] sm:$0xf]
      %v1303 = vld [vmem:[%s1271 + $0x7c] sm:$0xf]
      %v1336 = vunpack.c.l.b16 %v1272
      %v1337 = vunpack.c.l.b16 %v1273
      %v1338 = vunpack.c.l.b16 %v1274
      %v1339 = vunpack.c.l.b16 %v1275
      %v1340 = vunpack.c.l.b16 %v1276
      %v1341 = vunpack.c.l.b16 %v1277
      %v1342 = vunpack.c.l.b16 %v1278
      %v1343 = vunpack.c.l.b16 %v1279
      %v1344 = vunpack.c.l.b16 %v1280
      %v1345 = vunpack.c.l.b16 %v1281
      %v1346 = vunpack.c.l.b16 %v1282
      %v1347 = vunpack.c.l.b16 %v1283
      %v1348 = vunpack.c.l.b16 %v1284
      %v1349 = vunpack.c.l.b16 %v1285
      %v1350 = vunpack.c.l.b16 %v1286
      %v1351 = vunpack.c.l.b16 %v1287
      %v1352 = vunpack.c.l.b16 %v1288
      %v1353 = vunpack.c.l.b16 %v1289
      %v1354 = vunpack.c.l.b16 %v1290
      %v1355 = vunpack.c.l.b16 %v1291
      %v1356 = vunpack.c.l.b16 %v1292
      %v1357 = vunpack.c.l.b16 %v1293
      %v1358 = vunpack.c.l.b16 %v1294
      %v1359 = vunpack.c.l.b16 %v1295
      %v1360 = vunpack.c.l.b16 %v1296
      %v1361 = vunpack.c.l.b16 %v1297
      %v1362 = vunpack.c.l.b16 %v1298
      %v1363 = vunpack.c.l.b16 %v1299
      %v1364 = vunpack.c.l.b16 %v1300
      %v1365 = vunpack.c.l.b16 %v1301
      %v1366 = vunpack.c.l.b16 %v1302
      %v1367 = vunpack.c.l.b16 %v1303
      %v1368 = vpack.c.b16 %v1337, %v1336
      %v1369 = vpack.c.b16 %v1339, %v1338
      %v1370 = vpack.c.b16 %v1341, %v1340
      %v1371 = vpack.c.b16 %v1343, %v1342
      %v1372 = vpack.c.b16 %v1345, %v1344
      %v1373 = vpack.c.b16 %v1347, %v1346
      %v1374 = vpack.c.b16 %v1349, %v1348
      %v1375 = vpack.c.b16 %v1351, %v1350
      %v1376 = vpack.c.b16 %v1353, %v1352
      %v1377 = vpack.c.b16 %v1355, %v1354
      %v1378 = vpack.c.b16 %v1357, %v1356
      %v1379 = vpack.c.b16 %v1359, %v1358
      %v1380 = vpack.c.b16 %v1361, %v1360
      %v1381 = vpack.c.b16 %v1363, %v1362
      %v1382 = vpack.c.b16 %v1365, %v1364
      %v1383 = vpack.c.b16 %v1367, %v1366
      %1400 = vmatprep.subr.bf16.mxu0 0
      %1401 = vmatpush1.bf16.msra.mxu0 %v1375
      %1402 = vmatprep.subr.bf16.mxu0 0
      %1403 = vmatpush1.bf16.msra.mxu0 %v1374
      %1404 = vmatprep.subr.bf16.mxu0 0
      %1405 = vmatpush1.bf16.msra.mxu0 %v1373
      %1406 = vmatprep.subr.bf16.mxu0 0
      %1407 = vmatpush1.bf16.msra.mxu0 %v1372
      %1408 = vmatprep.subr.bf16.mxu0 0
      %1409 = vmatpush1.bf16.msra.mxu0 %v1371
      %1410 = vmatprep.subr.bf16.mxu0 0
      %1411 = vmatpush1.bf16.msra.mxu0 %v1370
      %1412 = vmatprep.subr.bf16.mxu0 0
      %1413 = vmatpush1.bf16.msra.mxu0 %v1369
      %1414 = vmatprep.subr.bf16.mxu0 0
      %1415 = vmatpush1.bf16.msra.mxu0 %v1368
      %1416 = vmatprep.subr.bf16.mxu0 0
      %1417 = vmatpush2.bf16.msra.mxu0 %v1383
      %1418 = vmatprep.subr.bf16.mxu0 0
      %1419 = vmatpush2.bf16.msra.mxu0 %v1382
      %1420 = vmatprep.subr.bf16.mxu0 0
      %1421 = vmatpush2.bf16.msra.mxu0 %v1381
      %1422 = vmatprep.subr.bf16.mxu0 0
      %1423 = vmatpush2.bf16.msra.mxu0 %v1380
      %1424 = vmatprep.subr.bf16.mxu0 0
      %1425 = vmatpush2.bf16.msra.mxu0 %v1379
      %1426 = vmatprep.subr.bf16.mxu0 0
      %1427 = vmatpush2.bf16.msra.mxu0 %v1378
      %1428 = vmatprep.subr.bf16.mxu0 0
      %1429 = vmatpush2.bf16.msra.mxu0 %v1377
      %1430 = vmatprep.subr.bf16.mxu0 0
      %1431 = vmatpush2.bf16.msra.mxu0 %v1376
      %1432 = vmatprep.mubr.bf16.mxu0 %v450
      %1433 = vmatmul.mubr.bf16.gmra.mxu0 %v449
      %v1434 = vpop.f32.mrf.mxu0
      %v1435 = vadd.f32 0.0, %v1434
      %v1436 = vpop.f32.mrf.mxu0
      %v1437 = vpop.f32.mrf.mxu0
      %v1438 = vpop.f32.mrf.mxu0
      %1439 = vdwg.mxu0
      %1440 = vst.msk [vmem:[#allocation2 + $0x28] sm:$0xff] %vm589, %v1435
      %s1441 = scalar_lea.vmem %s1, 768
      %v1442 = vld [vmem:[%s1441] sm:$0xf]
      %v1443 = vld [vmem:[%s1441 + $0x4] sm:$0xf]
      %v1444 = vld [vmem:[%s1441 + $0x8] sm:$0xf]
      %v1445 = vld [vmem:[%s1441 + $0xc] sm:$0xf]
      %v1446 = vld [vmem:[%s1441 + $0x10] sm:$0xf]
      %v1447 = vld [vmem:[%s1441 + $0x14] sm:$0xf]
      %v1448 = vld [vmem:[%s1441 + $0x18] sm:$0xf]
      %v1449 = vld [vmem:[%s1441 + $0x1c] sm:$0xf]
      %v1450 = vld [vmem:[%s1441 + $0x20] sm:$0xf]
      %v1451 = vld [vmem:[%s1441 + $0x24] sm:$0xf]
      %v1452 = vld [vmem:[%s1441 + $0x28] sm:$0xf]
      %v1453 = vld [vmem:[%s1441 + $0x2c] sm:$0xf]
      %v1454 = vld [vmem:[%s1441 + $0x30] sm:$0xf]
      %v1455 = vld [vmem:[%s1441 + $0x34] sm:$0xf]
      %v1456 = vld [vmem:[%s1441 + $0x38] sm:$0xf]
      %v1457 = vld [vmem:[%s1441 + $0x3c] sm:$0xf]
      %v1458 = vld [vmem:[%s1441 + $0x40] sm:$0xf]
      %v1459 = vld [vmem:[%s1441 + $0x44] sm:$0xf]
      %v1460 = vld [vmem:[%s1441 + $0x48] sm:$0xf]
      %v1461 = vld [vmem:[%s1441 + $0x4c] sm:$0xf]
      %v1462 = vld [vmem:[%s1441 + $0x50] sm:$0xf]
      %v1463 = vld [vmem:[%s1441 + $0x54] sm:$0xf]
      %v1464 = vld [vmem:[%s1441 + $0x58] sm:$0xf]
      %v1465 = vld [vmem:[%s1441 + $0x5c] sm:$0xf]
      %v1466 = vld [vmem:[%s1441 + $0x60] sm:$0xf]
      %v1467 = vld [vmem:[%s1441 + $0x64] sm:$0xf]
      %v1468 = vld [vmem:[%s1441 + $0x68] sm:$0xf]
      %v1469 = vld [vmem:[%s1441 + $0x6c] sm:$0xf]
      %v1470 = vld [vmem:[%s1441 + $0x70] sm:$0xf]
      %v1471 = vld [vmem:[%s1441 + $0x74] sm:$0xf]
      %v1472 = vld [vmem:[%s1441 + $0x78] sm:$0xf]
      %v1473 = vld [vmem:[%s1441 + $0x7c] sm:$0xf]
      %v1506 = vunpack.c.l.b16 %v1442
      %v1507 = vunpack.c.l.b16 %v1443
      %v1508 = vunpack.c.l.b16 %v1444
      %v1509 = vunpack.c.l.b16 %v1445
      %v1510 = vunpack.c.l.b16 %v1446
      %v1511 = vunpack.c.l.b16 %v1447
      %v1512 = vunpack.c.l.b16 %v1448
      %v1513 = vunpack.c.l.b16 %v1449
      %v1514 = vunpack.c.l.b16 %v1450
      %v1515 = vunpack.c.l.b16 %v1451
      %v1516 = vunpack.c.l.b16 %v1452
      %v1517 = vunpack.c.l.b16 %v1453
      %v1518 = vunpack.c.l.b16 %v1454
      %v1519 = vunpack.c.l.b16 %v1455
      %v1520 = vunpack.c.l.b16 %v1456
      %v1521 = vunpack.c.l.b16 %v1457
      %v1522 = vunpack.c.l.b16 %v1458
      %v1523 = vunpack.c.l.b16 %v1459
      %v1524 = vunpack.c.l.b16 %v1460
      %v1525 = vunpack.c.l.b16 %v1461
      %v1526 = vunpack.c.l.b16 %v1462
      %v1527 = vunpack.c.l.b16 %v1463
      %v1528 = vunpack.c.l.b16 %v1464
      %v1529 = vunpack.c.l.b16 %v1465
      %v1530 = vunpack.c.l.b16 %v1466
      %v1531 = vunpack.c.l.b16 %v1467
      %v1532 = vunpack.c.l.b16 %v1468
      %v1533 = vunpack.c.l.b16 %v1469
      %v1534 = vunpack.c.l.b16 %v1470
      %v1535 = vunpack.c.l.b16 %v1471
      %v1536 = vunpack.c.l.b16 %v1472
      %v1537 = vunpack.c.l.b16 %v1473
      %v1538 = vpack.c.b16 %v1507, %v1506
      %v1539 = vpack.c.b16 %v1509, %v1508
      %v1540 = vpack.c.b16 %v1511, %v1510
      %v1541 = vpack.c.b16 %v1513, %v1512
      %v1542 = vpack.c.b16 %v1515, %v1514
      %v1543 = vpack.c.b16 %v1517, %v1516
      %v1544 = vpack.c.b16 %v1519, %v1518
      %v1545 = vpack.c.b16 %v1521, %v1520
      %v1546 = vpack.c.b16 %v1523, %v1522
      %v1547 = vpack.c.b16 %v1525, %v1524
      %v1548 = vpack.c.b16 %v1527, %v1526
      %v1549 = vpack.c.b16 %v1529, %v1528
      %v1550 = vpack.c.b16 %v1531, %v1530
      %v1551 = vpack.c.b16 %v1533, %v1532
      %v1552 = vpack.c.b16 %v1535, %v1534
      %v1553 = vpack.c.b16 %v1537, %v1536
      %1570 = vmatprep.subr.bf16.mxu0 0
      %1571 = vmatpush1.bf16.msra.mxu0 %v1545
      %1572 = vmatprep.subr.bf16.mxu0 0
      %1573 = vmatpush1.bf16.msra.mxu0 %v1544
      %1574 = vmatprep.subr.bf16.mxu0 0
      %1575 = vmatpush1.bf16.msra.mxu0 %v1543
      %1576 = vmatprep.subr.bf16.mxu0 0
      %1577 = vmatpush1.bf16.msra.mxu0 %v1542
      %1578 = vmatprep.subr.bf16.mxu0 0
      %1579 = vmatpush1.bf16.msra.mxu0 %v1541
      %1580 = vmatprep.subr.bf16.mxu0 0
      %1581 = vmatpush1.bf16.msra.mxu0 %v1540
      %1582 = vmatprep.subr.bf16.mxu0 0
      %1583 = vmatpush1.bf16.msra.mxu0 %v1539
      %1584 = vmatprep.subr.bf16.mxu0 0
      %1585 = vmatpush1.bf16.msra.mxu0 %v1538
      %1586 = vmatprep.subr.bf16.mxu0 0
      %1587 = vmatpush2.bf16.msra.mxu0 %v1553
      %1588 = vmatprep.subr.bf16.mxu0 0
      %1589 = vmatpush2.bf16.msra.mxu0 %v1552
      %1590 = vmatprep.subr.bf16.mxu0 0
      %1591 = vmatpush2.bf16.msra.mxu0 %v1551
      %1592 = vmatprep.subr.bf16.mxu0 0
      %1593 = vmatpush2.bf16.msra.mxu0 %v1550
      %1594 = vmatprep.subr.bf16.mxu0 0
      %1595 = vmatpush2.bf16.msra.mxu0 %v1549
      %1596 = vmatprep.subr.bf16.mxu0 0
      %1597 = vmatpush2.bf16.msra.mxu0 %v1548
      %1598 = vmatprep.subr.bf16.mxu0 0
      %1599 = vmatpush2.bf16.msra.mxu0 %v1547
      %1600 = vmatprep.subr.bf16.mxu0 0
      %1601 = vmatpush2.bf16.msra.mxu0 %v1546
      %1602 = vmatprep.mubr.bf16.mxu0 %v450
      %1603 = vmatmul.mubr.bf16.gmra.mxu0 %v449
      %v1604 = vpop.f32.mrf.mxu0
      %v1605 = vadd.f32 0.0, %v1604
      %v1606 = vpop.f32.mrf.mxu0
      %v1607 = vpop.f32.mrf.mxu0
      %v1608 = vpop.f32.mrf.mxu0
      %1609 = vdwg.mxu0
      %1610 = vst.msk [vmem:[#allocation2 + $0x30] sm:$0xff] %vm589, %v1605
      %s1611 = scalar_lea.vmem %s1, 896
      %v1612 = vld [vmem:[%s1611] sm:$0xf]
      %v1613 = vld [vmem:[%s1611 + $0x4] sm:$0xf]
      %v1614 = vld [vmem:[%s1611 + $0x8] sm:$0xf]
      %v1615 = vld [vmem:[%s1611 + $0xc] sm:$0xf]
      %v1616 = vld [vmem:[%s1611 + $0x10] sm:$0xf]
      %v1617 = vld [vmem:[%s1611 + $0x14] sm:$0xf]
      %v1618 = vld [vmem:[%s1611 + $0x18] sm:$0xf]
      %v1619 = vld [vmem:[%s1611 + $0x1c] sm:$0xf]
      %v1620 = vld [vmem:[%s1611 + $0x20] sm:$0xf]
      %v1621 = vld [vmem:[%s1611 + $0x24] sm:$0xf]
      %v1622 = vld [vmem:[%s1611 + $0x28] sm:$0xf]
      %v1623 = vld [vmem:[%s1611 + $0x2c] sm:$0xf]
      %v1624 = vld [vmem:[%s1611 + $0x30] sm:$0xf]
      %v1625 = vld [vmem:[%s1611 + $0x34] sm:$0xf]
      %v1626 = vld [vmem:[%s1611 + $0x38] sm:$0xf]
      %v1627 = vld [vmem:[%s1611 + $0x3c] sm:$0xf]
      %v1628 = vld [vmem:[%s1611 + $0x40] sm:$0xf]
      %v1629 = vld [vmem:[%s1611 + $0x44] sm:$0xf]
      %v1630 = vld [vmem:[%s1611 + $0x48] sm:$0xf]
      %v1631 = vld [vmem:[%s1611 + $0x4c] sm:$0xf]
      %v1632 = vld [vmem:[%s1611 + $0x50] sm:$0xf]
      %v1633 = vld [vmem:[%s1611 + $0x54] sm:$0xf]
      %v1634 = vld [vmem:[%s1611 + $0x58] sm:$0xf]
      %v1635 = vld [vmem:[%s1611 + $0x5c] sm:$0xf]
      %v1636 = vld [vmem:[%s1611 + $0x60] sm:$0xf]
      %v1637 = vld [vmem:[%s1611 + $0x64] sm:$0xf]
      %v1638 = vld [vmem:[%s1611 + $0x68] sm:$0xf]
      %v1639 = vld [vmem:[%s1611 + $0x6c] sm:$0xf]
      %v1640 = vld [vmem:[%s1611 + $0x70] sm:$0xf]
      %v1641 = vld [vmem:[%s1611 + $0x74] sm:$0xf]
      %v1642 = vld [vmem:[%s1611 + $0x78] sm:$0xf]
      %v1643 = vld [vmem:[%s1611 + $0x7c] sm:$0xf]
      %v1676 = vunpack.c.l.b16 %v1612
      %v1677 = vunpack.c.l.b16 %v1613
      %v1678 = vunpack.c.l.b16 %v1614
      %v1679 = vunpack.c.l.b16 %v1615
      %v1680 = vunpack.c.l.b16 %v1616
      %v1681 = vunpack.c.l.b16 %v1617
      %v1682 = vunpack.c.l.b16 %v1618
      %v1683 = vunpack.c.l.b16 %v1619
      %v1684 = vunpack.c.l.b16 %v1620
      %v1685 = vunpack.c.l.b16 %v1621
      %v1686 = vunpack.c.l.b16 %v1622
      %v1687 = vunpack.c.l.b16 %v1623
      %v1688 = vunpack.c.l.b16 %v1624
      %v1689 = vunpack.c.l.b16 %v1625
      %v1690 = vunpack.c.l.b16 %v1626
      %v1691 = vunpack.c.l.b16 %v1627
      %v1692 = vunpack.c.l.b16 %v1628
      %v1693 = vunpack.c.l.b16 %v1629
      %v1694 = vunpack.c.l.b16 %v1630
      %v1695 = vunpack.c.l.b16 %v1631
      %v1696 = vunpack.c.l.b16 %v1632
      %v1697 = vunpack.c.l.b16 %v1633
      %v1698 = vunpack.c.l.b16 %v1634
      %v1699 = vunpack.c.l.b16 %v1635
      %v1700 = vunpack.c.l.b16 %v1636
      %v1701 = vunpack.c.l.b16 %v1637
      %v1702 = vunpack.c.l.b16 %v1638
      %v1703 = vunpack.c.l.b16 %v1639
      %v1704 = vunpack.c.l.b16 %v1640
      %v1705 = vunpack.c.l.b16 %v1641
      %v1706 = vunpack.c.l.b16 %v1642
      %v1707 = vunpack.c.l.b16 %v1643
      %v1708 = vpack.c.b16 %v1677, %v1676
      %v1709 = vpack.c.b16 %v1679, %v1678
      %v1710 = vpack.c.b16 %v1681, %v1680
      %v1711 = vpack.c.b16 %v1683, %v1682
      %v1712 = vpack.c.b16 %v1685, %v1684
      %v1713 = vpack.c.b16 %v1687, %v1686
      %v1714 = vpack.c.b16 %v1689, %v1688
      %v1715 = vpack.c.b16 %v1691, %v1690
      %v1716 = vpack.c.b16 %v1693, %v1692
      %v1717 = vpack.c.b16 %v1695, %v1694
      %v1718 = vpack.c.b16 %v1697, %v1696
      %v1719 = vpack.c.b16 %v1699, %v1698
      %v1720 = vpack.c.b16 %v1701, %v1700
      %v1721 = vpack.c.b16 %v1703, %v1702
      %v1722 = vpack.c.b16 %v1705, %v1704
      %v1723 = vpack.c.b16 %v1707, %v1706
      %1740 = vmatprep.subr.bf16.mxu0 0
      %1741 = vmatpush1.bf16.msra.mxu0 %v1715
      %1742 = vmatprep.subr.bf16.mxu0 0
      %1743 = vmatpush1.bf16.msra.mxu0 %v1714
      %1744 = vmatprep.subr.bf16.mxu0 0
      %1745 = vmatpush1.bf16.msra.mxu0 %v1713
      %1746 = vmatprep.subr.bf16.mxu0 0
      %1747 = vmatpush1.bf16.msra.mxu0 %v1712
      %1748 = vmatprep.subr.bf16.mxu0 0
      %1749 = vmatpush1.bf16.msra.mxu0 %v1711
      %1750 = vmatprep.subr.bf16.mxu0 0
      %1751 = vmatpush1.bf16.msra.mxu0 %v1710
      %1752 = vmatprep.subr.bf16.mxu0 0
      %1753 = vmatpush1.bf16.msra.mxu0 %v1709
      %1754 = vmatprep.subr.bf16.mxu0 0
      %1755 = vmatpush1.bf16.msra.mxu0 %v1708
      %1756 = vmatprep.subr.bf16.mxu0 0
      %1757 = vmatpush2.bf16.msra.mxu0 %v1723
      %1758 = vmatprep.subr.bf16.mxu0 0
      %1759 = vmatpush2.bf16.msra.mxu0 %v1722
      %1760 = vmatprep.subr.bf16.mxu0 0
      %1761 = vmatpush2.bf16.msra.mxu0 %v1721
      %1762 = vmatprep.subr.bf16.mxu0 0
      %1763 = vmatpush2.bf16.msra.mxu0 %v1720
      %1764 = vmatprep.subr.bf16.mxu0 0
      %1765 = vmatpush2.bf16.msra.mxu0 %v1719
      %1766 = vmatprep.subr.bf16.mxu0 0
      %1767 = vmatpush2.bf16.msra.mxu0 %v1718
      %1768 = vmatprep.subr.bf16.mxu0 0
      %1769 = vmatpush2.bf16.msra.mxu0 %v1717
      %1770 = vmatprep.subr.bf16.mxu0 0
      %1771 = vmatpush2.bf16.msra.mxu0 %v1716
      %1772 = vmatprep.mubr.bf16.mxu0 %v450
      %1773 = vmatmul.mubr.bf16.gmra.mxu0 %v449
      %v1774 = vpop.f32.mrf.mxu0
      %v1775 = vadd.f32 0.0, %v1774
      %v1776 = vpop.f32.mrf.mxu0
      %v1777 = vpop.f32.mrf.mxu0
      %v1778 = vpop.f32.mrf.mxu0
      %1779 = vdwg.mxu0
      %1780 = vst.msk [vmem:[#allocation2 + $0x38] sm:$0xff] %vm589, %v1775
      %s1781 = scalar_lea.vmem %s1, 1024
      %v1782 = vld [vmem:[%s1781] sm:$0xf]
      %v1783 = vld [vmem:[%s1781 + $0x4] sm:$0xf]
      %v1784 = vld [vmem:[%s1781 + $0x8] sm:$0xf]
      %v1785 = vld [vmem:[%s1781 + $0xc] sm:$0xf]
      %v1786 = vld [vmem:[%s1781 + $0x10] sm:$0xf]
      %v1787 = vld [vmem:[%s1781 + $0x14] sm:$0xf]
      %v1788 = vld [vmem:[%s1781 + $0x18] sm:$0xf]
      %v1789 = vld [vmem:[%s1781 + $0x1c] sm:$0xf]
      %v1790 = vld [vmem:[%s1781 + $0x20] sm:$0xf]
      %v1791 = vld [vmem:[%s1781 + $0x24] sm:$0xf]
      %v1792 = vld [vmem:[%s1781 + $0x28] sm:$0xf]
      %v1793 = vld [vmem:[%s1781 + $0x2c] sm:$0xf]
      %v1794 = vld [vmem:[%s1781 + $0x30] sm:$0xf]
      %v1795 = vld [vmem:[%s1781 + $0x34] sm:$0xf]
      %v1796 = vld [vmem:[%s1781 + $0x38] sm:$0xf]
      %v1797 = vld [vmem:[%s1781 + $0x3c] sm:$0xf]
      %v1798 = vld [vmem:[%s1781 + $0x40] sm:$0xf]
      %v1799 = vld [vmem:[%s1781 + $0x44] sm:$0xf]
      %v1800 = vld [vmem:[%s1781 + $0x48] sm:$0xf]
      %v1801 = vld [vmem:[%s1781 + $0x4c] sm:$0xf]
      %v1802 = vld [vmem:[%s1781 + $0x50] sm:$0xf]
      %v1803 = vld [vmem:[%s1781 + $0x54] sm:$0xf]
      %v1804 = vld [vmem:[%s1781 + $0x58] sm:$0xf]
      %v1805 = vld [vmem:[%s1781 + $0x5c] sm:$0xf]
      %v1806 = vld [vmem:[%s1781 + $0x60] sm:$0xf]
      %v1807 = vld [vmem:[%s1781 + $0x64] sm:$0xf]
      %v1808 = vld [vmem:[%s1781 + $0x68] sm:$0xf]
      %v1809 = vld [vmem:[%s1781 + $0x6c] sm:$0xf]
      %v1810 = vld [vmem:[%s1781 + $0x70] sm:$0xf]
      %v1811 = vld [vmem:[%s1781 + $0x74] sm:$0xf]
      %v1812 = vld [vmem:[%s1781 + $0x78] sm:$0xf]
      %v1813 = vld [vmem:[%s1781 + $0x7c] sm:$0xf]
      %v1846 = vunpack.c.l.b16 %v1782
      %v1847 = vunpack.c.l.b16 %v1783
      %v1848 = vunpack.c.l.b16 %v1784
      %v1849 = vunpack.c.l.b16 %v1785
      %v1850 = vunpack.c.l.b16 %v1786
      %v1851 = vunpack.c.l.b16 %v1787
      %v1852 = vunpack.c.l.b16 %v1788
      %v1853 = vunpack.c.l.b16 %v1789
      %v1854 = vunpack.c.l.b16 %v1790
      %v1855 = vunpack.c.l.b16 %v1791
      %v1856 = vunpack.c.l.b16 %v1792
      %v1857 = vunpack.c.l.b16 %v1793
      %v1858 = vunpack.c.l.b16 %v1794
      %v1859 = vunpack.c.l.b16 %v1795
      %v1860 = vunpack.c.l.b16 %v1796
      %v1861 = vunpack.c.l.b16 %v1797
      %v1862 = vunpack.c.l.b16 %v1798
      %v1863 = vunpack.c.l.b16 %v1799
      %v1864 = vunpack.c.l.b16 %v1800
      %v1865 = vunpack.c.l.b16 %v1801
      %v1866 = vunpack.c.l.b16 %v1802
      %v1867 = vunpack.c.l.b16 %v1803
      %v1868 = vunpack.c.l.b16 %v1804
      %v1869 = vunpack.c.l.b16 %v1805
      %v1870 = vunpack.c.l.b16 %v1806
      %v1871 = vunpack.c.l.b16 %v1807
      %v1872 = vunpack.c.l.b16 %v1808
      %v1873 = vunpack.c.l.b16 %v1809
      %v1874 = vunpack.c.l.b16 %v1810
      %v1875 = vunpack.c.l.b16 %v1811
      %v1876 = vunpack.c.l.b16 %v1812
      %v1877 = vunpack.c.l.b16 %v1813
      %v1878 = vpack.c.b16 %v1847, %v1846
      %v1879 = vpack.c.b16 %v1849, %v1848
      %v1880 = vpack.c.b16 %v1851, %v1850
      %v1881 = vpack.c.b16 %v1853, %v1852
      %v1882 = vpack.c.b16 %v1855, %v1854
      %v1883 = vpack.c.b16 %v1857, %v1856
      %v1884 = vpack.c.b16 %v1859, %v1858
      %v1885 = vpack.c.b16 %v1861, %v1860
      %v1886 = vpack.c.b16 %v1863, %v1862
      %v1887 = vpack.c.b16 %v1865, %v1864
      %v1888 = vpack.c.b16 %v1867, %v1866
      %v1889 = vpack.c.b16 %v1869, %v1868
      %v1890 = vpack.c.b16 %v1871, %v1870
      %v1891 = vpack.c.b16 %v1873, %v1872
      %v1892 = vpack.c.b16 %v1875, %v1874
      %v1893 = vpack.c.b16 %v1877, %v1876
      %1910 = vmatprep.subr.bf16.mxu0 0
      %1911 = vmatpush1.bf16.msra.mxu0 %v1885
      %1912 = vmatprep.subr.bf16.mxu0 0
      %1913 = vmatpush1.bf16.msra.mxu0 %v1884
      %1914 = vmatprep.subr.bf16.mxu0 0
      %1915 = vmatpush1.bf16.msra.mxu0 %v1883
      %1916 = vmatprep.subr.bf16.mxu0 0
      %1917 = vmatpush1.bf16.msra.mxu0 %v1882
      %1918 = vmatprep.subr.bf16.mxu0 0
      %1919 = vmatpush1.bf16.msra.mxu0 %v1881
      %1920 = vmatprep.subr.bf16.mxu0 0
      %1921 = vmatpush1.bf16.msra.mxu0 %v1880
      %1922 = vmatprep.subr.bf16.mxu0 0
      %1923 = vmatpush1.bf16.msra.mxu0 %v1879
      %1924 = vmatprep.subr.bf16.mxu0 0
      %1925 = vmatpush1.bf16.msra.mxu0 %v1878
      %1926 = vmatprep.subr.bf16.mxu0 0
      %1927 = vmatpush2.bf16.msra.mxu0 %v1893
      %1928 = vmatprep.subr.bf16.mxu0 0
      %1929 = vmatpush2.bf16.msra.mxu0 %v1892
      %1930 = vmatprep.subr.bf16.mxu0 0
      %1931 = vmatpush2.bf16.msra.mxu0 %v1891
      %1932 = vmatprep.subr.bf16.mxu0 0
      %1933 = vmatpush2.bf16.msra.mxu0 %v1890
      %1934 = vmatprep.subr.bf16.mxu0 0
      %1935 = vmatpush2.bf16.msra.mxu0 %v1889
      %1936 = vmatprep.subr.bf16.mxu0 0
      %1937 = vmatpush2.bf16.msra.mxu0 %v1888
      %1938 = vmatprep.subr.bf16.mxu0 0
      %1939 = vmatpush2.bf16.msra.mxu0 %v1887
      %1940 = vmatprep.subr.bf16.mxu0 0
      %1941 = vmatpush2.bf16.msra.mxu0 %v1886
      %1942 = vmatprep.mubr.bf16.mxu0 %v450
      %1943 = vmatmul.mubr.bf16.gmra.mxu0 %v449
      %v1944 = vpop.f32.mrf.mxu0
      %v1945 = vadd.f32 0.0, %v1944
      %v1946 = vpop.f32.mrf.mxu0
      %v1947 = vpop.f32.mrf.mxu0
      %v1948 = vpop.f32.mrf.mxu0
      %1949 = vdwg.mxu0
      %1950 = vst.msk [vmem:[#allocation2 + $0x40] sm:$0xff] %vm589, %v1945
      %v1951 = vld [vmem:[%s2] sm:$0xff]
      %v1952 = vld [vmem:[%s2 + $0x8] sm:$0xff]
      %v1953 = vld [vmem:[#allocation2] sm:$0xff]
      %v1954 = vld [vmem:[#allocation2 + $0x8] sm:$0xff]
      %v1955 = vld [vmem:[#allocation2 + $0x10] sm:$0xff]
      %v1956 = vld [vmem:[#allocation2 + $0x18] sm:$0xff]
      %v1957 = vld [vmem:[#allocation2 + $0x20] sm:$0xff]
      %v1958 = vld [vmem:[#allocation2 + $0x28] sm:$0xff]
      %v1959 = vld [vmem:[#allocation2 + $0x30] sm:$0xff]
      %v1960 = vld [vmem:[#allocation2 + $0x38] sm:$0xff]
      %v1961 = vld [vmem:[#allocation2 + $0x40] sm:$0xff]
      %v1962 = vld [vmem:[%s3] sm:$0xff]
      %v1963 = vld [vmem:[%s3 + $0x8] sm:$0xff]
      %1965 = vset.pattern.permute.xlu0 0
      %1966 = vperm.xlu0 %1965, %v1962
      %v1967 = vpop.permute.xlu0 %1966
      %1970 = vset.pattern.permute.xlu0 0
      %1971 = vperm.xlu0 %1970, %v1963
      %v1972 = vpop.permute.xlu0 %1971
      %vm1974 = vcmask 588800
      %v1976 = vsel %vm1974, %v1951, 0
      %v1979 = vsel %vm1974, %v1952, 0
      %1981 = vmatprep.subr.mxu0 0.0
      %1982 = vmatpush1.msra.mxu0 0.0
      %1983 = vmatprep.subr.mxu0 0.0
      %1984 = vmatpush1.msra.mxu0 0.0
      %1985 = vmatprep.subr.mxu0 0.0
      %1986 = vmatpush1.msra.mxu0 0.0
      %1987 = vmatprep.subr.mxu0 0.0
      %1988 = vmatpush1.msra.mxu0 0.0
      %1989 = vmatprep.subr.mxu0 0.0
      %1990 = vmatpush1.msra.mxu0 0.0
      %1991 = vmatprep.subr.mxu0 0.0
      %1992 = vmatpush1.msra.mxu0 0.0
      %1993 = vmatprep.subr.mxu0 0.0
      %1994 = vmatpush1.msra.mxu0 0.0
      %1995 = vmatprep.subr.mxu0 0.0
      %1996 = vmatpush1.msra.mxu0 %v1961
      %1997 = vmatprep.subr.mxu0 0.0
      %1998 = vmatpush1.msra.mxu0 %v1960
      %1999 = vmatprep.subr.mxu0 0.0
      %2000 = vmatpush1.msra.mxu0 %v1959
      %2001 = vmatprep.subr.mxu0 0.0
      %2002 = vmatpush1.msra.mxu0 %v1958
      %2003 = vmatprep.subr.mxu0 0.0
      %2004 = vmatpush1.msra.mxu0 %v1957
      %2005 = vmatprep.subr.mxu0 0.0
      %2006 = vmatpush1.msra.mxu0 %v1956
      %2007 = vmatprep.subr.mxu0 0.0
      %2008 = vmatpush1.msra.mxu0 %v1955
      %2009 = vmatprep.subr.mxu0 0.0
      %2010 = vmatpush1.msra.mxu0 %v1954
      %2011 = vmatprep.subr.mxu0 0.0
      %2012 = vmatpush1.msra.mxu0 %v1953
      %2013 = vmatprep.subr.mxu0 0.0
      %2014 = vmatpush2.msra.mxu0 0.0
      %2015 = vmatprep.subr.mxu0 0.0
      %2016 = vmatpush2.msra.mxu0 0.0
      %2017 = vmatprep.subr.mxu0 0.0
      %2018 = vmatpush2.msra.mxu0 0.0
      %2019 = vmatprep.subr.mxu0 0.0
      %2020 = vmatpush2.msra.mxu0 0.0
      %2021 = vmatprep.subr.mxu0 0.0
      %2022 = vmatpush2.msra.mxu0 0.0
      %2023 = vmatprep.subr.mxu0 0.0
      %2024 = vmatpush2.msra.mxu0 0.0
      %2025 = vmatprep.subr.mxu0 0.0
      %2026 = vmatpush2.msra.mxu0 0.0
      %2027 = vmatprep.subr.mxu0 0.0
      %2028 = vmatpush2.msra.mxu0 0.0
      %2029 = vmatprep.subr.mxu0 0.0
      %2030 = vmatpush2.msra.mxu0 0.0
      %2031 = vmatprep.subr.mxu0 0.0
      %2032 = vmatpush2.msra.mxu0 0.0
      %2033 = vmatprep.subr.mxu0 0.0
      %2034 = vmatpush2.msra.mxu0 0.0
      %2035 = vmatprep.subr.mxu0 0.0
      %2036 = vmatpush2.msra.mxu0 0.0
      %2037 = vmatprep.subr.mxu0 0.0
      %2038 = vmatpush2.msra.mxu0 0.0
      %2039 = vmatprep.subr.mxu0 0.0
      %2040 = vmatpush2.msra.mxu0 0.0
      %2041 = vmatprep.subr.mxu0 0.0
      %2042 = vmatpush2.msra.mxu0 0.0
      %2043 = vmatprep.subr.mxu0 0.0
      %2044 = vmatpush2.msra.mxu0 0.0
      %2045 = vmatprep.mubr.f32.mxu0 0.0
      %2046 = vmatmul.mubr.f32.gmra.mxu0 %v1976
      %v2047 = vpop.f32.mrf.mxu0
      %v2048 = vadd.f32 %v1967, %v2047
      %v2049 = vpop.f32.mrf.mxu0
      %2050 = vmatprep.mubr.f32.mxu0 0.0
      %2051 = vmatmul.mubr.f32.gmra.mxu0 %v1979
      %v2052 = vpop.f32.mrf.mxu0
      %v2053 = vadd.f32 %v1972, %v2052
      %v2054 = vpop.f32.mrf.mxu0
      %2055 = vdwg.mxu0
      %v2056 = vmax.f32 %v2048, 0.0
      %v2057 = vmax.f32 %v2053, 0.0
      %v2058 = vpack.c.bf16 %v2057, %v2056
      %v2059 = vld [vmem:[%s4] sm:$0xf]
      %v2060 = vld [vmem:[%s4 + $0x4] sm:$0xf]
      %v2061 = vld [vmem:[%s4 + $0x8] sm:$0xf]
      %v2062 = vld [vmem:[%s4 + $0xc] sm:$0xf]
      %v2063 = vld [vmem:[%s4 + $0x10] sm:$0xf]
      %v2064 = vld [vmem:[%s4 + $0x14] sm:$0xf]
      %v2065 = vld [vmem:[%s4 + $0x18] sm:$0xf]
      %v2066 = vld [vmem:[%s4 + $0x1c] sm:$0xf]
      %v2075 = vunpack.c.l.b16 %v2059
      %v2076 = vunpack.c.l.b16 %v2060
      %v2077 = vunpack.c.l.b16 %v2061
      %v2078 = vunpack.c.l.b16 %v2062
      %v2079 = vunpack.c.l.b16 %v2063
      %v2080 = vunpack.c.l.b16 %v2064
      %v2081 = vunpack.c.l.b16 %v2065
      %v2082 = vunpack.c.l.b16 %v2066
      %v2083 = vpack.c.b16 %v2076, %v2075
      %v2084 = vpack.c.b16 %v2078, %v2077
      %v2085 = vpack.c.b16 %v2080, %v2079
      %v2086 = vpack.c.b16 %v2082, %v2081
      %v2092 = vsel %vm589, %v2058, 0
      %2094 = vmatprep.subr.bf16.mxu0 0
      %2095 = vmatpush1.bf16.msra.mxu0 0
      %2096 = vmatprep.subr.bf16.mxu0 0
      %2097 = vmatpush1.bf16.msra.mxu0 0
      %2098 = vmatprep.subr.bf16.mxu0 0
      %2099 = vmatpush1.bf16.msra.mxu0 0
      %2100 = vmatprep.subr.bf16.mxu0 0
      %2101 = vmatpush1.bf16.msra.mxu0 0
      %2102 = vmatprep.subr.bf16.mxu0 0
      %2103 = vmatpush1.bf16.msra.mxu0 %v2086
      %2104 = vmatprep.subr.bf16.mxu0 0
      %2105 = vmatpush1.bf16.msra.mxu0 %v2085
      %2106 = vmatprep.subr.bf16.mxu0 0
      %2107 = vmatpush1.bf16.msra.mxu0 %v2084
      %2108 = vmatprep.subr.bf16.mxu0 0
      %2109 = vmatpush1.bf16.msra.mxu0 %v2083
      %2110 = vmatprep.subr.bf16.mxu0 0
      %2111 = vmatpush2.bf16.msra.mxu0 0
      %2112 = vmatprep.subr.bf16.mxu0 0
      %2113 = vmatpush2.bf16.msra.mxu0 0
      %2114 = vmatprep.subr.bf16.mxu0 0
      %2115 = vmatpush2.bf16.msra.mxu0 0
      %2116 = vmatprep.subr.bf16.mxu0 0
      %2117 = vmatpush2.bf16.msra.mxu0 0
      %2118 = vmatprep.subr.bf16.mxu0 0
      %2119 = vmatpush2.bf16.msra.mxu0 0
      %2120 = vmatprep.subr.bf16.mxu0 0
      %2121 = vmatpush2.bf16.msra.mxu0 0
      %2122 = vmatprep.subr.bf16.mxu0 0
      %2123 = vmatpush2.bf16.msra.mxu0 0
      %2124 = vmatprep.subr.bf16.mxu0 0
      %2125 = vmatpush2.bf16.msra.mxu0 0
      %2126 = vmatprep.mubr.bf16.mxu0 0
      %2127 = vmatmul.mubr.bf16.gmra.mxu0 %v2092
      %v2128 = vpop.f32.mrf.mxu0
      %v2129 = vadd.f32 0.0, %v2128
      %v2130 = vpop.f32.mrf.mxu0
      %v2131 = vpop.f32.mrf.mxu0
      %v2132 = vadd.f32 0.0, %v2131
      %v2133 = vpop.f32.mrf.mxu0
      %2134 = vdwg.mxu0
      %vm2135 = vcmask 130048
      %2136 = vst.msk [vmem:[#allocation3] sm:$0xff] %vm2135, %v2129
      %2137 = vst.msk [vmem:[#allocation3 + $0x8] sm:$0xff] %vm2135, %v2132
      %s2138 = scalar_lea.vmem %s4, 32
      %v2139 = vld [vmem:[%s2138] sm:$0xf]
      %v2140 = vld [vmem:[%s2138 + $0x4] sm:$0xf]
      %v2141 = vld [vmem:[%s2138 + $0x8] sm:$0xf]
      %v2142 = vld [vmem:[%s2138 + $0xc] sm:$0xf]
      %v2143 = vld [vmem:[%s2138 + $0x10] sm:$0xf]
      %v2144 = vld [vmem:[%s2138 + $0x14] sm:$0xf]
      %v2145 = vld [vmem:[%s2138 + $0x18] sm:$0xf]
      %v2146 = vld [vmem:[%s2138 + $0x1c] sm:$0xf]
      %v2155 = vunpack.c.l.b16 %v2139
      %v2156 = vunpack.c.l.b16 %v2140
      %v2157 = vunpack.c.l.b16 %v2141
      %v2158 = vunpack.c.l.b16 %v2142
      %v2159 = vunpack.c.l.b16 %v2143
      %v2160 = vunpack.c.l.b16 %v2144
      %v2161 = vunpack.c.l.b16 %v2145
      %v2162 = vunpack.c.l.b16 %v2146
      %v2163 = vpack.c.b16 %v2156, %v2155
      %v2164 = vpack.c.b16 %v2158, %v2157
      %v2165 = vpack.c.b16 %v2160, %v2159
      %v2166 = vpack.c.b16 %v2162, %v2161
      %2171 = vmatprep.subr.bf16.mxu0 0
      %2172 = vmatpush1.bf16.msra.mxu0 0
      %2173 = vmatprep.subr.bf16.mxu0 0
      %2174 = vmatpush1.bf16.msra.mxu0 0
      %2175 = vmatprep.subr.bf16.mxu0 0
      %2176 = vmatpush1.bf16.msra.mxu0 0
      %2177 = vmatprep.subr.bf16.mxu0 0
      %2178 = vmatpush1.bf16.msra.mxu0 0
      %2179 = vmatprep.subr.bf16.mxu0 0
      %2180 = vmatpush1.bf16.msra.mxu0 %v2166
      %2181 = vmatprep.subr.bf16.mxu0 0
      %2182 = vmatpush1.bf16.msra.mxu0 %v2165
      %2183 = vmatprep.subr.bf16.mxu0 0
      %2184 = vmatpush1.bf16.msra.mxu0 %v2164
      %2185 = vmatprep.subr.bf16.mxu0 0
      %2186 = vmatpush1.bf16.msra.mxu0 %v2163
      %2187 = vmatprep.subr.bf16.mxu0 0
      %2188 = vmatpush2.bf16.msra.mxu0 0
      %2189 = vmatprep.subr.bf16.mxu0 0
      %2190 = vmatpush2.bf16.msra.mxu0 0
      %2191 = vmatprep.subr.bf16.mxu0 0
      %2192 = vmatpush2.bf16.msra.mxu0 0
      %2193 = vmatprep.subr.bf16.mxu0 0
      %2194 = vmatpush2.bf16.msra.mxu0 0
      %2195 = vmatprep.subr.bf16.mxu0 0
      %2196 = vmatpush2.bf16.msra.mxu0 0
      %2197 = vmatprep.subr.bf16.mxu0 0
      %2198 = vmatpush2.bf16.msra.mxu0 0
      %2199 = vmatprep.subr.bf16.mxu0 0
      %2200 = vmatpush2.bf16.msra.mxu0 0
      %2201 = vmatprep.subr.bf16.mxu0 0
      %2202 = vmatpush2.bf16.msra.mxu0 0
      %2203 = vmatprep.mubr.bf16.mxu0 0
      %2204 = vmatmul.mubr.bf16.gmra.mxu0 %v2092
      %v2205 = vpop.f32.mrf.mxu0
      %v2206 = vadd.f32 0.0, %v2205
      %v2207 = vpop.f32.mrf.mxu0
      %v2208 = vpop.f32.mrf.mxu0
      %v2209 = vadd.f32 0.0, %v2208
      %v2210 = vpop.f32.mrf.mxu0
      %2211 = vdwg.mxu0
      %2212 = vst.msk [vmem:[#allocation3 + $0x10] sm:$0xff] %vm2135, %v2206
      %2213 = vst.msk [vmem:[#allocation3 + $0x18] sm:$0xff] %vm2135, %v2209
      %s2214 = scalar_lea.vmem %s4, 64
      %v2215 = vld [vmem:[%s2214] sm:$0xf]
      %v2216 = vld [vmem:[%s2214 + $0x4] sm:$0xf]
      %v2217 = vld [vmem:[%s2214 + $0x8] sm:$0xf]
      %v2218 = vld [vmem:[%s2214 + $0xc] sm:$0xf]
      %v2219 = vld [vmem:[%s2214 + $0x10] sm:$0xf]
      %v2220 = vld [vmem:[%s2214 + $0x14] sm:$0xf]
      %v2221 = vld [vmem:[%s2214 + $0x18] sm:$0xf]
      %v2222 = vld [vmem:[%s2214 + $0x1c] sm:$0xf]
      %v2231 = vunpack.c.l.b16 %v2215
      %v2232 = vunpack.c.l.b16 %v2216
      %v2233 = vunpack.c.l.b16 %v2217
      %v2234 = vunpack.c.l.b16 %v2218
      %v2235 = vunpack.c.l.b16 %v2219
      %v2236 = vunpack.c.l.b16 %v2220
      %v2237 = vunpack.c.l.b16 %v2221
      %v2238 = vunpack.c.l.b16 %v2222
      %v2239 = vpack.c.b16 %v2232, %v2231
      %v2240 = vpack.c.b16 %v2234, %v2233
      %v2241 = vpack.c.b16 %v2236, %v2235
      %v2242 = vpack.c.b16 %v2238, %v2237
      %2247 = vmatprep.subr.bf16.mxu0 0
      %2248 = vmatpush1.bf16.msra.mxu0 0
      %2249 = vmatprep.subr.bf16.mxu0 0
      %2250 = vmatpush1.bf16.msra.mxu0 0
      %2251 = vmatprep.subr.bf16.mxu0 0
      %2252 = vmatpush1.bf16.msra.mxu0 0
      %2253 = vmatprep.subr.bf16.mxu0 0
      %2254 = vmatpush1.bf16.msra.mxu0 0
      %2255 = vmatprep.subr.bf16.mxu0 0
      %2256 = vmatpush1.bf16.msra.mxu0 %v2242
      %2257 = vmatprep.subr.bf16.mxu0 0
      %2258 = vmatpush1.bf16.msra.mxu0 %v2241
      %2259 = vmatprep.subr.bf16.mxu0 0
      %2260 = vmatpush1.bf16.msra.mxu0 %v2240
      %2261 = vmatprep.subr.bf16.mxu0 0
      %2262 = vmatpush1.bf16.msra.mxu0 %v2239
      %2263 = vmatprep.subr.bf16.mxu0 0
      %2264 = vmatpush2.bf16.msra.mxu0 0
      %2265 = vmatprep.subr.bf16.mxu0 0
      %2266 = vmatpush2.bf16.msra.mxu0 0
      %2267 = vmatprep.subr.bf16.mxu0 0
      %2268 = vmatpush2.bf16.msra.mxu0 0
      %2269 = vmatprep.subr.bf16.mxu0 0
      %2270 = vmatpush2.bf16.msra.mxu0 0
      %2271 = vmatprep.subr.bf16.mxu0 0
      %2272 = vmatpush2.bf16.msra.mxu0 0
      %2273 = vmatprep.subr.bf16.mxu0 0
      %2274 = vmatpush2.bf16.msra.mxu0 0
      %2275 = vmatprep.subr.bf16.mxu0 0
      %2276 = vmatpush2.bf16.msra.mxu0 0
      %2277 = vmatprep.subr.bf16.mxu0 0
      %2278 = vmatpush2.bf16.msra.mxu0 0
      %2279 = vmatprep.mubr.bf16.mxu0 0
      %2280 = vmatmul.mubr.bf16.gmra.mxu0 %v2092
      %v2281 = vpop.f32.mrf.mxu0
      %v2282 = vadd.f32 0.0, %v2281
      %v2283 = vpop.f32.mrf.mxu0
      %v2284 = vpop.f32.mrf.mxu0
      %v2285 = vadd.f32 0.0, %v2284
      %v2286 = vpop.f32.mrf.mxu0
      %2287 = vdwg.mxu0
      %2288 = vst.msk [vmem:[#allocation3 + $0x20] sm:$0xff] %vm2135, %v2282
      %2289 = vst.msk [vmem:[#allocation3 + $0x28] sm:$0xff] %vm2135, %v2285
      %s2290 = scalar_lea.vmem %s4, 96
      %v2291 = vld [vmem:[%s2290] sm:$0xf]
      %v2292 = vld [vmem:[%s2290 + $0x4] sm:$0xf]
      %v2293 = vld [vmem:[%s2290 + $0x8] sm:$0xf]
      %v2294 = vld [vmem:[%s2290 + $0xc] sm:$0xf]
      %v2295 = vld [vmem:[%s2290 + $0x10] sm:$0xf]
      %v2296 = vld [vmem:[%s2290 + $0x14] sm:$0xf]
      %v2297 = vld [vmem:[%s2290 + $0x18] sm:$0xf]
      %v2298 = vld [vmem:[%s2290 + $0x1c] sm:$0xf]
      %v2307 = vunpack.c.l.b16 %v2291
      %v2308 = vunpack.c.l.b16 %v2292
      %v2309 = vunpack.c.l.b16 %v2293
      %v2310 = vunpack.c.l.b16 %v2294
      %v2311 = vunpack.c.l.b16 %v2295
      %v2312 = vunpack.c.l.b16 %v2296
      %v2313 = vunpack.c.l.b16 %v2297
      %v2314 = vunpack.c.l.b16 %v2298
      %v2315 = vpack.c.b16 %v2308, %v2307
      %v2316 = vpack.c.b16 %v2310, %v2309
      %v2317 = vpack.c.b16 %v2312, %v2311
      %v2318 = vpack.c.b16 %v2314, %v2313
      %2323 = vmatprep.subr.bf16.mxu0 0
      %2324 = vmatpush1.bf16.msra.mxu0 0
      %2325 = vmatprep.subr.bf16.mxu0 0
      %2326 = vmatpush1.bf16.msra.mxu0 0
      %2327 = vmatprep.subr.bf16.mxu0 0
      %2328 = vmatpush1.bf16.msra.mxu0 0
      %2329 = vmatprep.subr.bf16.mxu0 0
      %2330 = vmatpush1.bf16.msra.mxu0 0
      %2331 = vmatprep.subr.bf16.mxu0 0
      %2332 = vmatpush1.bf16.msra.mxu0 %v2318
      %2333 = vmatprep.subr.bf16.mxu0 0
      %2334 = vmatpush1.bf16.msra.mxu0 %v2317
      %2335 = vmatprep.subr.bf16.mxu0 0
      %2336 = vmatpush1.bf16.msra.mxu0 %v2316
      %2337 = vmatprep.subr.bf16.mxu0 0
      %2338 = vmatpush1.bf16.msra.mxu0 %v2315
      %2339 = vmatprep.subr.bf16.mxu0 0
      %2340 = vmatpush2.bf16.msra.mxu0 0
      %2341 = vmatprep.subr.bf16.mxu0 0
      %2342 = vmatpush2.bf16.msra.mxu0 0
      %2343 = vmatprep.subr.bf16.mxu0 0
      %2344 = vmatpush2.bf16.msra.mxu0 0
      %2345 = vmatprep.subr.bf16.mxu0 0
      %2346 = vmatpush2.bf16.msra.mxu0 0
      %2347 = vmatprep.subr.bf16.mxu0 0
      %2348 = vmatpush2.bf16.msra.mxu0 0
      %2349 = vmatprep.subr.bf16.mxu0 0
      %2350 = vmatpush2.bf16.msra.mxu0 0
      %2351 = vmatprep.subr.bf16.mxu0 0
      %2352 = vmatpush2.bf16.msra.mxu0 0
      %2353 = vmatprep.subr.bf16.mxu0 0
      %2354 = vmatpush2.bf16.msra.mxu0 0
      %2355 = vmatprep.mubr.bf16.mxu0 0
      %2356 = vmatmul.mubr.bf16.gmra.mxu0 %v2092
      %v2357 = vpop.f32.mrf.mxu0
      %v2358 = vadd.f32 0.0, %v2357
      %v2359 = vpop.f32.mrf.mxu0
      %v2360 = vpop.f32.mrf.mxu0
      %v2361 = vadd.f32 0.0, %v2360
      %v2362 = vpop.f32.mrf.mxu0
      %2363 = vdwg.mxu0
      %2364 = vst.msk [vmem:[#allocation3 + $0x30] sm:$0xff] %vm2135, %v2358
      %2365 = vst.msk [vmem:[#allocation3 + $0x38] sm:$0xff] %vm2135, %v2361
      %s2366 = scalar_lea.vmem %s4, 128
      %v2367 = vld [vmem:[%s2366] sm:$0xf]
      %v2368 = vld [vmem:[%s2366 + $0x4] sm:$0xf]
      %v2369 = vld [vmem:[%s2366 + $0x8] sm:$0xf]
      %v2370 = vld [vmem:[%s2366 + $0xc] sm:$0xf]
      %v2371 = vld [vmem:[%s2366 + $0x10] sm:$0xf]
      %v2372 = vld [vmem:[%s2366 + $0x14] sm:$0xf]
      %v2373 = vld [vmem:[%s2366 + $0x18] sm:$0xf]
      %v2374 = vld [vmem:[%s2366 + $0x1c] sm:$0xf]
      %v2383 = vunpack.c.l.b16 %v2367
      %v2384 = vunpack.c.l.b16 %v2368
      %v2385 = vunpack.c.l.b16 %v2369
      %v2386 = vunpack.c.l.b16 %v2370
      %v2387 = vunpack.c.l.b16 %v2371
      %v2388 = vunpack.c.l.b16 %v2372
      %v2389 = vunpack.c.l.b16 %v2373
      %v2390 = vunpack.c.l.b16 %v2374
      %v2391 = vpack.c.b16 %v2384, %v2383
      %v2392 = vpack.c.b16 %v2386, %v2385
      %v2393 = vpack.c.b16 %v2388, %v2387
      %v2394 = vpack.c.b16 %v2390, %v2389
      %2399 = vmatprep.subr.bf16.mxu0 0
      %2400 = vmatpush1.bf16.msra.mxu0 0
      %2401 = vmatprep.subr.bf16.mxu0 0
      %2402 = vmatpush1.bf16.msra.mxu0 0
      %2403 = vmatprep.subr.bf16.mxu0 0
      %2404 = vmatpush1.bf16.msra.mxu0 0
      %2405 = vmatprep.subr.bf16.mxu0 0
      %2406 = vmatpush1.bf16.msra.mxu0 0
      %2407 = vmatprep.subr.bf16.mxu0 0
      %2408 = vmatpush1.bf16.msra.mxu0 %v2394
      %2409 = vmatprep.subr.bf16.mxu0 0
      %2410 = vmatpush1.bf16.msra.mxu0 %v2393
      %2411 = vmatprep.subr.bf16.mxu0 0
      %2412 = vmatpush1.bf16.msra.mxu0 %v2392
      %2413 = vmatprep.subr.bf16.mxu0 0
      %2414 = vmatpush1.bf16.msra.mxu0 %v2391
      %2415 = vmatprep.subr.bf16.mxu0 0
      %2416 = vmatpush2.bf16.msra.mxu0 0
      %2417 = vmatprep.subr.bf16.mxu0 0
      %2418 = vmatpush2.bf16.msra.mxu0 0
      %2419 = vmatprep.subr.bf16.mxu0 0
      %2420 = vmatpush2.bf16.msra.mxu0 0
      %2421 = vmatprep.subr.bf16.mxu0 0
      %2422 = vmatpush2.bf16.msra.mxu0 0
      %2423 = vmatprep.subr.bf16.mxu0 0
      %2424 = vmatpush2.bf16.msra.mxu0 0
      %2425 = vmatprep.subr.bf16.mxu0 0
      %2426 = vmatpush2.bf16.msra.mxu0 0
      %2427 = vmatprep.subr.bf16.mxu0 0
      %2428 = vmatpush2.bf16.msra.mxu0 0
      %2429 = vmatprep.subr.bf16.mxu0 0
      %2430 = vmatpush2.bf16.msra.mxu0 0
      %2431 = vmatprep.mubr.bf16.mxu0 0
      %2432 = vmatmul.mubr.bf16.gmra.mxu0 %v2092
      %v2433 = vpop.f32.mrf.mxu0
      %v2434 = vadd.f32 0.0, %v2433
      %v2435 = vpop.f32.mrf.mxu0
      %v2436 = vpop.f32.mrf.mxu0
      %v2437 = vadd.f32 0.0, %v2436
      %v2438 = vpop.f32.mrf.mxu0
      %2439 = vdwg.mxu0
      %2440 = vst.msk [vmem:[#allocation3 + $0x40] sm:$0xff] %vm2135, %v2434
      %2441 = vst.msk [vmem:[#allocation3 + $0x48] sm:$0xff] %vm2135, %v2437
      %s2442 = scalar_lea.vmem %s4, 160
      %v2443 = vld [vmem:[%s2442] sm:$0xf]
      %v2444 = vld [vmem:[%s2442 + $0x4] sm:$0xf]
      %v2445 = vld [vmem:[%s2442 + $0x8] sm:$0xf]
      %v2446 = vld [vmem:[%s2442 + $0xc] sm:$0xf]
      %v2447 = vld [vmem:[%s2442 + $0x10] sm:$0xf]
      %v2448 = vld [vmem:[%s2442 + $0x14] sm:$0xf]
      %v2449 = vld [vmem:[%s2442 + $0x18] sm:$0xf]
      %v2450 = vld [vmem:[%s2442 + $0x1c] sm:$0xf]
      %v2459 = vunpack.c.l.b16 %v2443
      %v2460 = vunpack.c.l.b16 %v2444
      %v2461 = vunpack.c.l.b16 %v2445
      %v2462 = vunpack.c.l.b16 %v2446
      %v2463 = vunpack.c.l.b16 %v2447
      %v2464 = vunpack.c.l.b16 %v2448
      %v2465 = vunpack.c.l.b16 %v2449
      %v2466 = vunpack.c.l.b16 %v2450
      %v2467 = vpack.c.b16 %v2460, %v2459
      %v2468 = vpack.c.b16 %v2462, %v2461
      %v2469 = vpack.c.b16 %v2464, %v2463
      %v2470 = vpack.c.b16 %v2466, %v2465
      %2475 = vmatprep.subr.bf16.mxu0 0
      %2476 = vmatpush1.bf16.msra.mxu0 0
      %2477 = vmatprep.subr.bf16.mxu0 0
      %2478 = vmatpush1.bf16.msra.mxu0 0
      %2479 = vmatprep.subr.bf16.mxu0 0
      %2480 = vmatpush1.bf16.msra.mxu0 0
      %2481 = vmatprep.subr.bf16.mxu0 0
      %2482 = vmatpush1.bf16.msra.mxu0 0
      %2483 = vmatprep.subr.bf16.mxu0 0
      %2484 = vmatpush1.bf16.msra.mxu0 %v2470
      %2485 = vmatprep.subr.bf16.mxu0 0
      %2486 = vmatpush1.bf16.msra.mxu0 %v2469
      %2487 = vmatprep.subr.bf16.mxu0 0
      %2488 = vmatpush1.bf16.msra.mxu0 %v2468
      %2489 = vmatprep.subr.bf16.mxu0 0
      %2490 = vmatpush1.bf16.msra.mxu0 %v2467
      %2491 = vmatprep.subr.bf16.mxu0 0
      %2492 = vmatpush2.bf16.msra.mxu0 0
      %2493 = vmatprep.subr.bf16.mxu0 0
      %2494 = vmatpush2.bf16.msra.mxu0 0
      %2495 = vmatprep.subr.bf16.mxu0 0
      %2496 = vmatpush2.bf16.msra.mxu0 0
      %2497 = vmatprep.subr.bf16.mxu0 0
      %2498 = vmatpush2.bf16.msra.mxu0 0
      %2499 = vmatprep.subr.bf16.mxu0 0
      %2500 = vmatpush2.bf16.msra.mxu0 0
      %2501 = vmatprep.subr.bf16.mxu0 0
      %2502 = vmatpush2.bf16.msra.mxu0 0
      %2503 = vmatprep.subr.bf16.mxu0 0
      %2504 = vmatpush2.bf16.msra.mxu0 0
      %2505 = vmatprep.subr.bf16.mxu0 0
      %2506 = vmatpush2.bf16.msra.mxu0 0
      %2507 = vmatprep.mubr.bf16.mxu0 0
      %2508 = vmatmul.mubr.bf16.gmra.mxu0 %v2092
      %v2509 = vpop.f32.mrf.mxu0
      %v2510 = vadd.f32 0.0, %v2509
      %v2511 = vpop.f32.mrf.mxu0
      %v2512 = vpop.f32.mrf.mxu0
      %v2513 = vadd.f32 0.0, %v2512
      %v2514 = vpop.f32.mrf.mxu0
      %2515 = vdwg.mxu0
      %2516 = vst.msk [vmem:[#allocation3 + $0x50] sm:$0xff] %vm2135, %v2510
      %2517 = vst.msk [vmem:[#allocation3 + $0x58] sm:$0xff] %vm2135, %v2513
      %s2518 = scalar_lea.vmem %s4, 192
      %v2519 = vld [vmem:[%s2518] sm:$0xf]
      %v2520 = vld [vmem:[%s2518 + $0x4] sm:$0xf]
      %v2521 = vld [vmem:[%s2518 + $0x8] sm:$0xf]
      %v2522 = vld [vmem:[%s2518 + $0xc] sm:$0xf]
      %v2523 = vld [vmem:[%s2518 + $0x10] sm:$0xf]
      %v2524 = vld [vmem:[%s2518 + $0x14] sm:$0xf]
      %v2525 = vld [vmem:[%s2518 + $0x18] sm:$0xf]
      %v2526 = vld [vmem:[%s2518 + $0x1c] sm:$0xf]
      %v2535 = vunpack.c.l.b16 %v2519
      %v2536 = vunpack.c.l.b16 %v2520
      %v2537 = vunpack.c.l.b16 %v2521
      %v2538 = vunpack.c.l.b16 %v2522
      %v2539 = vunpack.c.l.b16 %v2523
      %v2540 = vunpack.c.l.b16 %v2524
      %v2541 = vunpack.c.l.b16 %v2525
      %v2542 = vunpack.c.l.b16 %v2526
      %v2543 = vpack.c.b16 %v2536, %v2535
      %v2544 = vpack.c.b16 %v2538, %v2537
      %v2545 = vpack.c.b16 %v2540, %v2539
      %v2546 = vpack.c.b16 %v2542, %v2541
      %2551 = vmatprep.subr.bf16.mxu0 0
      %2552 = vmatpush1.bf16.msra.mxu0 0
      %2553 = vmatprep.subr.bf16.mxu0 0
      %2554 = vmatpush1.bf16.msra.mxu0 0
      %2555 = vmatprep.subr.bf16.mxu0 0
      %2556 = vmatpush1.bf16.msra.mxu0 0
      %2557 = vmatprep.subr.bf16.mxu0 0
      %2558 = vmatpush1.bf16.msra.mxu0 0
      %2559 = vmatprep.subr.bf16.mxu0 0
      %2560 = vmatpush1.bf16.msra.mxu0 %v2546
      %2561 = vmatprep.subr.bf16.mxu0 0
      %2562 = vmatpush1.bf16.msra.mxu0 %v2545
      %2563 = vmatprep.subr.bf16.mxu0 0
      %2564 = vmatpush1.bf16.msra.mxu0 %v2544
      %2565 = vmatprep.subr.bf16.mxu0 0
      %2566 = vmatpush1.bf16.msra.mxu0 %v2543
      %2567 = vmatprep.subr.bf16.mxu0 0
      %2568 = vmatpush2.bf16.msra.mxu0 0
      %2569 = vmatprep.subr.bf16.mxu0 0
      %2570 = vmatpush2.bf16.msra.mxu0 0
      %2571 = vmatprep.subr.bf16.mxu0 0
      %2572 = vmatpush2.bf16.msra.mxu0 0
      %2573 = vmatprep.subr.bf16.mxu0 0
      %2574 = vmatpush2.bf16.msra.mxu0 0
      %2575 = vmatprep.subr.bf16.mxu0 0
      %2576 = vmatpush2.bf16.msra.mxu0 0
      %2577 = vmatprep.subr.bf16.mxu0 0
      %2578 = vmatpush2.bf16.msra.mxu0 0
      %2579 = vmatprep.subr.bf16.mxu0 0
      %2580 = vmatpush2.bf16.msra.mxu0 0
      %2581 = vmatprep.subr.bf16.mxu0 0
      %2582 = vmatpush2.bf16.msra.mxu0 0
      %2583 = vmatprep.mubr.bf16.mxu0 0
      %2584 = vmatmul.mubr.bf16.gmra.mxu0 %v2092
      %v2585 = vpop.f32.mrf.mxu0
      %v2586 = vadd.f32 0.0, %v2585
      %v2587 = vpop.f32.mrf.mxu0
      %v2588 = vpop.f32.mrf.mxu0
      %v2589 = vadd.f32 0.0, %v2588
      %v2590 = vpop.f32.mrf.mxu0
      %2591 = vdwg.mxu0
      %2592 = vst.msk [vmem:[#allocation3 + $0x60] sm:$0xff] %vm2135, %v2586
      %2593 = vst.msk [vmem:[#allocation3 + $0x68] sm:$0xff] %vm2135, %v2589
      %s2594 = scalar_lea.vmem %s4, 224
      %v2595 = vld [vmem:[%s2594] sm:$0xf]
      %v2596 = vld [vmem:[%s2594 + $0x4] sm:$0xf]
      %v2597 = vld [vmem:[%s2594 + $0x8] sm:$0xf]
      %v2598 = vld [vmem:[%s2594 + $0xc] sm:$0xf]
      %v2599 = vld [vmem:[%s2594 + $0x10] sm:$0xf]
      %v2600 = vld [vmem:[%s2594 + $0x14] sm:$0xf]
      %v2601 = vld [vmem:[%s2594 + $0x18] sm:$0xf]
      %v2602 = vld [vmem:[%s2594 + $0x1c] sm:$0xf]
      %v2611 = vunpack.c.l.b16 %v2595
      %v2612 = vunpack.c.l.b16 %v2596
      %v2613 = vunpack.c.l.b16 %v2597
      %v2614 = vunpack.c.l.b16 %v2598
      %v2615 = vunpack.c.l.b16 %v2599
      %v2616 = vunpack.c.l.b16 %v2600
      %v2617 = vunpack.c.l.b16 %v2601
      %v2618 = vunpack.c.l.b16 %v2602
      %v2619 = vpack.c.b16 %v2612, %v2611
      %v2620 = vpack.c.b16 %v2614, %v2613
      %v2621 = vpack.c.b16 %v2616, %v2615
      %v2622 = vpack.c.b16 %v2618, %v2617
      %2627 = vmatprep.subr.bf16.mxu0 0
      %2628 = vmatpush1.bf16.msra.mxu0 0
      %2629 = vmatprep.subr.bf16.mxu0 0
      %2630 = vmatpush1.bf16.msra.mxu0 0
      %2631 = vmatprep.subr.bf16.mxu0 0
      %2632 = vmatpush1.bf16.msra.mxu0 0
      %2633 = vmatprep.subr.bf16.mxu0 0
      %2634 = vmatpush1.bf16.msra.mxu0 0
      %2635 = vmatprep.subr.bf16.mxu0 0
      %2636 = vmatpush1.bf16.msra.mxu0 %v2622
      %2637 = vmatprep.subr.bf16.mxu0 0
      %2638 = vmatpush1.bf16.msra.mxu0 %v2621
      %2639 = vmatprep.subr.bf16.mxu0 0
      %2640 = vmatpush1.bf16.msra.mxu0 %v2620
      %2641 = vmatprep.subr.bf16.mxu0 0
      %2642 = vmatpush1.bf16.msra.mxu0 %v2619
      %2643 = vmatprep.subr.bf16.mxu0 0
      %2644 = vmatpush2.bf16.msra.mxu0 0
      %2645 = vmatprep.subr.bf16.mxu0 0
      %2646 = vmatpush2.bf16.msra.mxu0 0
      %2647 = vmatprep.subr.bf16.mxu0 0
      %2648 = vmatpush2.bf16.msra.mxu0 0
      %2649 = vmatprep.subr.bf16.mxu0 0
      %2650 = vmatpush2.bf16.msra.mxu0 0
      %2651 = vmatprep.subr.bf16.mxu0 0
      %2652 = vmatpush2.bf16.msra.mxu0 0
      %2653 = vmatprep.subr.bf16.mxu0 0
      %2654 = vmatpush2.bf16.msra.mxu0 0
      %2655 = vmatprep.subr.bf16.mxu0 0
      %2656 = vmatpush2.bf16.msra.mxu0 0
      %2657 = vmatprep.subr.bf16.mxu0 0
      %2658 = vmatpush2.bf16.msra.mxu0 0
      %2659 = vmatprep.mubr.bf16.mxu0 0
      %2660 = vmatmul.mubr.bf16.gmra.mxu0 %v2092
      %v2661 = vpop.f32.mrf.mxu0
      %v2662 = vadd.f32 0.0, %v2661
      %v2663 = vpop.f32.mrf.mxu0
      %v2664 = vpop.f32.mrf.mxu0
      %v2665 = vadd.f32 0.0, %v2664
      %v2666 = vpop.f32.mrf.mxu0
      %2667 = vdwg.mxu0
      %2668 = vst.msk [vmem:[#allocation3 + $0x70] sm:$0xff] %vm2135, %v2662
      %2669 = vst.msk [vmem:[#allocation3 + $0x78] sm:$0xff] %vm2135, %v2665
      %s2670 = scalar_lea.vmem %s4, 256
      %v2671 = vld [vmem:[%s2670] sm:$0xf]
      %v2672 = vld [vmem:[%s2670 + $0x4] sm:$0xf]
      %v2673 = vld [vmem:[%s2670 + $0x8] sm:$0xf]
      %v2674 = vld [vmem:[%s2670 + $0xc] sm:$0xf]
      %v2675 = vld [vmem:[%s2670 + $0x10] sm:$0xf]
      %v2676 = vld [vmem:[%s2670 + $0x14] sm:$0xf]
      %v2677 = vld [vmem:[%s2670 + $0x18] sm:$0xf]
      %v2678 = vld [vmem:[%s2670 + $0x1c] sm:$0xf]
      %v2687 = vunpack.c.l.b16 %v2671
      %v2688 = vunpack.c.l.b16 %v2672
      %v2689 = vunpack.c.l.b16 %v2673
      %v2690 = vunpack.c.l.b16 %v2674
      %v2691 = vunpack.c.l.b16 %v2675
      %v2692 = vunpack.c.l.b16 %v2676
      %v2693 = vunpack.c.l.b16 %v2677
      %v2694 = vunpack.c.l.b16 %v2678
      %v2695 = vpack.c.b16 %v2688, %v2687
      %v2696 = vpack.c.b16 %v2690, %v2689
      %v2697 = vpack.c.b16 %v2692, %v2691
      %v2698 = vpack.c.b16 %v2694, %v2693
      %2703 = vmatprep.subr.bf16.mxu0 0
      %2704 = vmatpush1.bf16.msra.mxu0 0
      %2705 = vmatprep.subr.bf16.mxu0 0
      %2706 = vmatpush1.bf16.msra.mxu0 0
      %2707 = vmatprep.subr.bf16.mxu0 0
      %2708 = vmatpush1.bf16.msra.mxu0 0
      %2709 = vmatprep.subr.bf16.mxu0 0
      %2710 = vmatpush1.bf16.msra.mxu0 0
      %2711 = vmatprep.subr.bf16.mxu0 0
      %2712 = vmatpush1.bf16.msra.mxu0 %v2698
      %2713 = vmatprep.subr.bf16.mxu0 0
      %2714 = vmatpush1.bf16.msra.mxu0 %v2697
      %2715 = vmatprep.subr.bf16.mxu0 0
      %2716 = vmatpush1.bf16.msra.mxu0 %v2696
      %2717 = vmatprep.subr.bf16.mxu0 0
      %2718 = vmatpush1.bf16.msra.mxu0 %v2695
      %2719 = vmatprep.subr.bf16.mxu0 0
      %2720 = vmatpush2.bf16.msra.mxu0 0
      %2721 = vmatprep.subr.bf16.mxu0 0
      %2722 = vmatpush2.bf16.msra.mxu0 0
      %2723 = vmatprep.subr.bf16.mxu0 0
      %2724 = vmatpush2.bf16.msra.mxu0 0
      %2725 = vmatprep.subr.bf16.mxu0 0
      %2726 = vmatpush2.bf16.msra.mxu0 0
      %2727 = vmatprep.subr.bf16.mxu0 0
      %2728 = vmatpush2.bf16.msra.mxu0 0
      %2729 = vmatprep.subr.bf16.mxu0 0
      %2730 = vmatpush2.bf16.msra.mxu0 0
      %2731 = vmatprep.subr.bf16.mxu0 0
      %2732 = vmatpush2.bf16.msra.mxu0 0
      %2733 = vmatprep.subr.bf16.mxu0 0
      %2734 = vmatpush2.bf16.msra.mxu0 0
      %2735 = vmatprep.mubr.bf16.mxu0 0
      %2736 = vmatmul.mubr.bf16.gmra.mxu0 %v2092
      %v2737 = vpop.f32.mrf.mxu0
      %v2738 = vadd.f32 0.0, %v2737
      %v2739 = vpop.f32.mrf.mxu0
      %v2740 = vpop.f32.mrf.mxu0
      %v2741 = vadd.f32 0.0, %v2740
      %v2742 = vpop.f32.mrf.mxu0
      %2743 = vdwg.mxu0
      %2744 = vst.msk [vmem:[#allocation3 + $0x80] sm:$0xff] %vm2135, %v2738
      %2745 = vst.msk [vmem:[#allocation3 + $0x88] sm:$0xff] %vm2135, %v2741
      %v2746 = vld [vmem:[%s5] sm:$0xff]
      %v2747 = vld [vmem:[%s5 + $0x8] sm:$0xff]
      %v2748 = vld [vmem:[%s5 + $0x10] sm:$0xff]
      %v2749 = vld [vmem:[%s5 + $0x18] sm:$0xff]
      %v2750 = vld [vmem:[%s5 + $0x20] sm:$0xff]
      %v2751 = vld [vmem:[%s5 + $0x28] sm:$0xff]
      %v2752 = vld [vmem:[%s5 + $0x30] sm:$0xff]
      %v2753 = vld [vmem:[%s5 + $0x38] sm:$0xff]
      %v2754 = vld [vmem:[#allocation3] sm:$0xff]
      %v2755 = vld [vmem:[#allocation3 + $0x8] sm:$0xff]
      %v2756 = vld [vmem:[#allocation3 + $0x10] sm:$0xff]
      %v2757 = vld [vmem:[#allocation3 + $0x18] sm:$0xff]
      %v2758 = vld [vmem:[#allocation3 + $0x20] sm:$0xff]
      %v2759 = vld [vmem:[#allocation3 + $0x28] sm:$0xff]
      %v2760 = vld [vmem:[#allocation3 + $0x30] sm:$0xff]
      %v2761 = vld [vmem:[#allocation3 + $0x38] sm:$0xff]
      %v2762 = vld [vmem:[#allocation3 + $0x40] sm:$0xff]
      %v2763 = vld [vmem:[#allocation3 + $0x48] sm:$0xff]
      %v2764 = vld [vmem:[#allocation3 + $0x50] sm:$0xff]
      %v2765 = vld [vmem:[#allocation3 + $0x58] sm:$0xff]
      %v2766 = vld [vmem:[#allocation3 + $0x60] sm:$0xff]
      %v2767 = vld [vmem:[#allocation3 + $0x68] sm:$0xff]
      %v2768 = vld [vmem:[#allocation3 + $0x70] sm:$0xff]
      %v2769 = vld [vmem:[#allocation3 + $0x78] sm:$0xff]
      %v2770 = vld [vmem:[#allocation3 + $0x80] sm:$0xff]
      %v2771 = vld [vmem:[#allocation3 + $0x88] sm:$0xff]
      %v2772 = vld [vmem:[%s6] sm:$0xff]
      %v2773 = vld [vmem:[%s6 + $0x8] sm:$0xff]
      %v2774 = vld [vmem:[%s6 + $0x10] sm:$0xff]
      %v2775 = vld [vmem:[%s6 + $0x18] sm:$0xff]
      %2777 = vset.pattern.permute.xlu0 0
      %2778 = vperm.xlu0 %2777, %v2772
      %v2779 = vpop.permute.xlu0 %2778
      %2782 = vset.pattern.permute.xlu0 0
      %2783 = vperm.xlu0 %2782, %v2773
      %v2784 = vpop.permute.xlu0 %2783
      %2787 = vset.pattern.permute.xlu0 0
      %2788 = vperm.xlu0 %2787, %v2774
      %v2789 = vpop.permute.xlu0 %2788
      %2792 = vset.pattern.permute.xlu0 0
      %2793 = vperm.xlu0 %2792, %v2775
      %v2794 = vpop.permute.xlu0 %2793
      %v2797 = vsel %vm2135, %v2747, 0
      %v2800 = vsel %vm2135, %v2749, 0
      %v2803 = vsel %vm2135, %v2751, 0
      %v2806 = vsel %vm2135, %v2753, 0
      %2808 = vmatprep.subr.mxu0 0.0
      %2809 = vmatpush1.msra.mxu0 %v2769
      %2810 = vmatprep.subr.mxu0 0.0
      %2811 = vmatpush1.msra.mxu0 %v2768
      %2812 = vmatprep.subr.mxu0 0.0
      %2813 = vmatpush1.msra.mxu0 %v2767
      %2814 = vmatprep.subr.mxu0 0.0
      %2815 = vmatpush1.msra.mxu0 %v2766
      %2816 = vmatprep.subr.mxu0 0.0
      %2817 = vmatpush1.msra.mxu0 %v2765
      %2818 = vmatprep.subr.mxu0 0.0
      %2819 = vmatpush1.msra.mxu0 %v2764
      %2820 = vmatprep.subr.mxu0 0.0
      %2821 = vmatpush1.msra.mxu0 %v2763
      %2822 = vmatprep.subr.mxu0 0.0
      %2823 = vmatpush1.msra.mxu0 %v2762
      %2824 = vmatprep.subr.mxu0 0.0
      %2825 = vmatpush1.msra.mxu0 %v2761
      %2826 = vmatprep.subr.mxu0 0.0
      %2827 = vmatpush1.msra.mxu0 %v2760
      %2828 = vmatprep.subr.mxu0 0.0
      %2829 = vmatpush1.msra.mxu0 %v2759
      %2830 = vmatprep.subr.mxu0 0.0
      %2831 = vmatpush1.msra.mxu0 %v2758
      %2832 = vmatprep.subr.mxu0 0.0
      %2833 = vmatpush1.msra.mxu0 %v2757
      %2834 = vmatprep.subr.mxu0 0.0
      %2835 = vmatpush1.msra.mxu0 %v2756
      %2836 = vmatprep.subr.mxu0 0.0
      %2837 = vmatpush1.msra.mxu0 %v2755
      %2838 = vmatprep.subr.mxu0 0.0
      %2839 = vmatpush1.msra.mxu0 %v2754
      %2840 = vmatprep.subr.mxu0 0.0
      %2841 = vmatpush2.msra.mxu0 0.0
      %2842 = vmatprep.subr.mxu0 0.0
      %2843 = vmatpush2.msra.mxu0 0.0
      %2844 = vmatprep.subr.mxu0 0.0
      %2845 = vmatpush2.msra.mxu0 0.0
      %2846 = vmatprep.subr.mxu0 0.0
      %2847 = vmatpush2.msra.mxu0 0.0
      %2848 = vmatprep.subr.mxu0 0.0
      %2849 = vmatpush2.msra.mxu0 0.0
      %2850 = vmatprep.subr.mxu0 0.0
      %2851 = vmatpush2.msra.mxu0 0.0
      %2852 = vmatprep.subr.mxu0 0.0
      %2853 = vmatpush2.msra.mxu0 0.0
      %2854 = vmatprep.subr.mxu0 0.0
      %2855 = vmatpush2.msra.mxu0 0.0
      %2856 = vmatprep.subr.mxu0 0.0
      %2857 = vmatpush2.msra.mxu0 0.0
      %2858 = vmatprep.subr.mxu0 0.0
      %2859 = vmatpush2.msra.mxu0 0.0
      %2860 = vmatprep.subr.mxu0 0.0
      %2861 = vmatpush2.msra.mxu0 0.0
      %2862 = vmatprep.subr.mxu0 0.0
      %2863 = vmatpush2.msra.mxu0 0.0
      %2864 = vmatprep.subr.mxu0 0.0
      %2865 = vmatpush2.msra.mxu0 0.0
      %2866 = vmatprep.subr.mxu0 0.0
      %2867 = vmatpush2.msra.mxu0 0.0
      %2868 = vmatprep.subr.mxu0 0.0
      %2869 = vmatpush2.msra.mxu0 %v2771
      %2870 = vmatprep.subr.mxu0 0.0
      %2871 = vmatpush2.msra.mxu0 %v2770
      %2872 = vmatprep.mubr.f32.mxu0 %v2797
      %2873 = vmatmul.mubr.f32.gmra.mxu0 %v2746
      %v2874 = vpop.f32.mrf.mxu0
      %v2875 = vadd.f32 %v2779, %v2874
      %v2876 = vpop.f32.mrf.mxu0
      %2877 = vmatprep.mubr.f32.mxu0 %v2800
      %2878 = vmatmul.mubr.f32.gmra.mxu0 %v2748
      %v2879 = vpop.f32.mrf.mxu0
      %v2880 = vadd.f32 %v2784, %v2879
      %v2881 = vpop.f32.mrf.mxu0
      %2882 = vmatprep.mubr.f32.mxu0 %v2803
      %2883 = vmatmul.mubr.f32.gmra.mxu0 %v2750
      %v2884 = vpop.f32.mrf.mxu0
      %v2885 = vadd.f32 %v2789, %v2884
      %v2886 = vpop.f32.mrf.mxu0
      %2887 = vmatprep.mubr.f32.mxu0 %v2806
      %2888 = vmatmul.mubr.f32.gmra.mxu0 %v2752
      %v2889 = vpop.f32.mrf.mxu0
      %v2890 = vadd.f32 %v2794, %v2889
      %v2891 = vpop.f32.mrf.mxu0
      %2892 = vdwg.mxu0
      %v2893 = vmax.f32 %v2875, 0.0
      %v2894 = vmax.f32 %v2880, 0.0
      %v2895 = vmax.f32 %v2885, 0.0
      %v2896 = vmax.f32 %v2890, 0.0
      %v2897 = vpack.c.bf16 %v2894, %v2893
      %v2898 = vpack.c.bf16 %v2896, %v2895
      %v2899 = vld [vmem:[%s7] sm:$0xf]
      %v2900 = vld [vmem:[%s7 + $0x4] sm:$0xf]
      %v2903 = vunpack.c.l.b16 %v2899
      %v2904 = vunpack.c.l.b16 %v2900
      %v2905 = vpack.c.b16 %v2904, %v2903
      %v2908 = vsel %vm2135, %v2897, 0
      %v2911 = vsel %vm2135, %v2898, 0
      %2913 = vmatprep.subr.bf16.mxu0 0
      %2914 = vmatpush1.bf16.msra.mxu0 0
      %2915 = vmatprep.subr.bf16.mxu0 0
      %2916 = vmatpush1.bf16.msra.mxu0 0
      %2917 = vmatprep.subr.bf16.mxu0 0
      %2918 = vmatpush1.bf16.msra.mxu0 0
      %2919 = vmatprep.subr.bf16.mxu0 0
      %2920 = vmatpush1.bf16.msra.mxu0 0
      %2921 = vmatprep.subr.bf16.mxu0 0
      %2922 = vmatpush1.bf16.msra.mxu0 0
      %2923 = vmatprep.subr.bf16.mxu0 0
      %2924 = vmatpush1.bf16.msra.mxu0 0
      %2925 = vmatprep.subr.bf16.mxu0 0
      %2926 = vmatpush1.bf16.msra.mxu0 0
      %2927 = vmatprep.subr.bf16.mxu0 0
      %2928 = vmatpush1.bf16.msra.mxu0 %v2905
      %2929 = vmatprep.subr.bf16.mxu0 0
      %2930 = vmatpush2.bf16.msra.mxu0 0
      %2931 = vmatprep.subr.bf16.mxu0 0
      %2932 = vmatpush2.bf16.msra.mxu0 0
      %2933 = vmatprep.subr.bf16.mxu0 0
      %2934 = vmatpush2.bf16.msra.mxu0 0
      %2935 = vmatprep.subr.bf16.mxu0 0
      %2936 = vmatpush2.bf16.msra.mxu0 0
      %2937 = vmatprep.subr.bf16.mxu0 0
      %2938 = vmatpush2.bf16.msra.mxu0 0
      %2939 = vmatprep.subr.bf16.mxu0 0
      %2940 = vmatpush2.bf16.msra.mxu0 0
      %2941 = vmatprep.subr.bf16.mxu0 0
      %2942 = vmatpush2.bf16.msra.mxu0 0
      %2943 = vmatprep.subr.bf16.mxu0 0
      %2944 = vmatpush2.bf16.msra.mxu0 0
      %2945 = vmatprep.mubr.bf16.mxu0 0
      %2946 = vmatmul.mubr.bf16.gmra.mxu0 %v2908
      %v2947 = vpop.f32.mrf.mxu0
      %v2948 = vadd.f32 0.0, %v2947
      %v2949 = vpop.f32.mrf.mxu0
      %v2950 = vpop.f32.mrf.mxu0
      %v2951 = vadd.f32 0.0, %v2950
      %v2952 = vpop.f32.mrf.mxu0
      %2953 = vmatprep.mubr.bf16.mxu0 0
      %2954 = vmatmul.mubr.bf16.gmra.mxu0 %v2911
      %v2955 = vpop.f32.mrf.mxu0
      %v2956 = vadd.f32 0.0, %v2955
      %v2957 = vpop.f32.mrf.mxu0
      %v2958 = vpop.f32.mrf.mxu0
      %v2959 = vadd.f32 0.0, %v2958
      %v2960 = vpop.f32.mrf.mxu0
      %2961 = vdwg.mxu0
      %vm2962 = vcmask 31744
      %2963 = vst.msk [vmem:[#allocation4] sm:$0xff] %vm2962, %v2948
      %2964 = vst.msk [vmem:[#allocation4 + $0x8] sm:$0xff] %vm2962, %v2951
      %2965 = vst.msk [vmem:[#allocation4 + $0x10] sm:$0xff] %vm2962, %v2956
      %2966 = vst.msk [vmem:[#allocation4 + $0x18] sm:$0xff] %vm2962, %v2959
      %s2967 = scalar_lea.vmem %s7, 8
      %v2968 = vld [vmem:[%s2967] sm:$0xf]
      %v2969 = vld [vmem:[%s2967 + $0x4] sm:$0xf]
      %v2972 = vunpack.c.l.b16 %v2968
      %v2973 = vunpack.c.l.b16 %v2969
      %v2974 = vpack.c.b16 %v2973, %v2972
      %2976 = vmatprep.subr.bf16.mxu0 0
      %2977 = vmatpush1.bf16.msra.mxu0 0
      %2978 = vmatprep.subr.bf16.mxu0 0
      %2979 = vmatpush1.bf16.msra.mxu0 0
      %2980 = vmatprep.subr.bf16.mxu0 0
      %2981 = vmatpush1.bf16.msra.mxu0 0
      %2982 = vmatprep.subr.bf16.mxu0 0
      %2983 = vmatpush1.bf16.msra.mxu0 0
      %2984 = vmatprep.subr.bf16.mxu0 0
      %2985 = vmatpush1.bf16.msra.mxu0 0
      %2986 = vmatprep.subr.bf16.mxu0 0
      %2987 = vmatpush1.bf16.msra.mxu0 0
      %2988 = vmatprep.subr.bf16.mxu0 0
      %2989 = vmatpush1.bf16.msra.mxu0 0
      %2990 = vmatprep.subr.bf16.mxu0 0
      %2991 = vmatpush1.bf16.msra.mxu0 %v2974
      %2992 = vmatprep.subr.bf16.mxu0 0
      %2993 = vmatpush2.bf16.msra.mxu0 0
      %2994 = vmatprep.subr.bf16.mxu0 0
      %2995 = vmatpush2.bf16.msra.mxu0 0
      %2996 = vmatprep.subr.bf16.mxu0 0
      %2997 = vmatpush2.bf16.msra.mxu0 0
      %2998 = vmatprep.subr.bf16.mxu0 0
      %2999 = vmatpush2.bf16.msra.mxu0 0
      %3000 = vmatprep.subr.bf16.mxu0 0
      %3001 = vmatpush2.bf16.msra.mxu0 0
      %3002 = vmatprep.subr.bf16.mxu0 0
      %3003 = vmatpush2.bf16.msra.mxu0 0
      %3004 = vmatprep.subr.bf16.mxu0 0
      %3005 = vmatpush2.bf16.msra.mxu0 0
      %3006 = vmatprep.subr.bf16.mxu0 0
      %3007 = vmatpush2.bf16.msra.mxu0 0
      %3008 = vmatprep.mubr.bf16.mxu0 0
      %3009 = vmatmul.mubr.bf16.gmra.mxu0 %v2908
      %v3010 = vpop.f32.mrf.mxu0
      %v3011 = vadd.f32 0.0, %v3010
      %v3012 = vpop.f32.mrf.mxu0
      %v3013 = vpop.f32.mrf.mxu0
      %v3014 = vadd.f32 0.0, %v3013
      %v3015 = vpop.f32.mrf.mxu0
      %3016 = vmatprep.mubr.bf16.mxu0 0
      %3017 = vmatmul.mubr.bf16.gmra.mxu0 %v2911
      %v3018 = vpop.f32.mrf.mxu0
      %v3019 = vadd.f32 0.0, %v3018
      %v3020 = vpop.f32.mrf.mxu0
      %v3021 = vpop.f32.mrf.mxu0
      %v3022 = vadd.f32 0.0, %v3021
      %v3023 = vpop.f32.mrf.mxu0
      %3024 = vdwg.mxu0
      %3025 = vst.msk [vmem:[#allocation4 + $0x20] sm:$0xff] %vm2962, %v3011
      %3026 = vst.msk [vmem:[#allocation4 + $0x28] sm:$0xff] %vm2962, %v3014
      %3027 = vst.msk [vmem:[#allocation4 + $0x30] sm:$0xff] %vm2962, %v3019
      %3028 = vst.msk [vmem:[#allocation4 + $0x38] sm:$0xff] %vm2962, %v3022
      %s3029 = scalar_lea.vmem %s7, 16
      %v3030 = vld [vmem:[%s3029] sm:$0xf]
      %v3031 = vld [vmem:[%s3029 + $0x4] sm:$0xf]
      %v3034 = vunpack.c.l.b16 %v3030
      %v3035 = vunpack.c.l.b16 %v3031
      %v3036 = vpack.c.b16 %v3035, %v3034
      %3038 = vmatprep.subr.bf16.mxu0 0
      %3039 = vmatpush1.bf16.msra.mxu0 0
      %3040 = vmatprep.subr.bf16.mxu0 0
      %3041 = vmatpush1.bf16.msra.mxu0 0
      %3042 = vmatprep.subr.bf16.mxu0 0
      %3043 = vmatpush1.bf16.msra.mxu0 0
      %3044 = vmatprep.subr.bf16.mxu0 0
      %3045 = vmatpush1.bf16.msra.mxu0 0
      %3046 = vmatprep.subr.bf16.mxu0 0
      %3047 = vmatpush1.bf16.msra.mxu0 0
      %3048 = vmatprep.subr.bf16.mxu0 0
      %3049 = vmatpush1.bf16.msra.mxu0 0
      %3050 = vmatprep.subr.bf16.mxu0 0
      %3051 = vmatpush1.bf16.msra.mxu0 0
      %3052 = vmatprep.subr.bf16.mxu0 0
      %3053 = vmatpush1.bf16.msra.mxu0 %v3036
      %3054 = vmatprep.subr.bf16.mxu0 0
      %3055 = vmatpush2.bf16.msra.mxu0 0
      %3056 = vmatprep.subr.bf16.mxu0 0
      %3057 = vmatpush2.bf16.msra.mxu0 0
      %3058 = vmatprep.subr.bf16.mxu0 0
      %3059 = vmatpush2.bf16.msra.mxu0 0
      %3060 = vmatprep.subr.bf16.mxu0 0
      %3061 = vmatpush2.bf16.msra.mxu0 0
      %3062 = vmatprep.subr.bf16.mxu0 0
      %3063 = vmatpush2.bf16.msra.mxu0 0
      %3064 = vmatprep.subr.bf16.mxu0 0
      %3065 = vmatpush2.bf16.msra.mxu0 0
      %3066 = vmatprep.subr.bf16.mxu0 0
      %3067 = vmatpush2.bf16.msra.mxu0 0
      %3068 = vmatprep.subr.bf16.mxu0 0
      %3069 = vmatpush2.bf16.msra.mxu0 0
      %3070 = vmatprep.mubr.bf16.mxu0 0
      %3071 = vmatmul.mubr.bf16.gmra.mxu0 %v2908
      %v3072 = vpop.f32.mrf.mxu0
      %v3073 = vadd.f32 0.0, %v3072
      %v3074 = vpop.f32.mrf.mxu0
      %v3075 = vpop.f32.mrf.mxu0
      %v3076 = vadd.f32 0.0, %v3075
      %v3077 = vpop.f32.mrf.mxu0
      %3078 = vmatprep.mubr.bf16.mxu0 0
      %3079 = vmatmul.mubr.bf16.gmra.mxu0 %v2911
      %v3080 = vpop.f32.mrf.mxu0
      %v3081 = vadd.f32 0.0, %v3080
      %v3082 = vpop.f32.mrf.mxu0
      %v3083 = vpop.f32.mrf.mxu0
      %v3084 = vadd.f32 0.0, %v3083
      %v3085 = vpop.f32.mrf.mxu0
      %3086 = vdwg.mxu0
      %3087 = vst.msk [vmem:[#allocation4 + $0x40] sm:$0xff] %vm2962, %v3073
      %3088 = vst.msk [vmem:[#allocation4 + $0x48] sm:$0xff] %vm2962, %v3076
      %3089 = vst.msk [vmem:[#allocation4 + $0x50] sm:$0xff] %vm2962, %v3081
      %3090 = vst.msk [vmem:[#allocation4 + $0x58] sm:$0xff] %vm2962, %v3084
      %s3091 = scalar_lea.vmem %s7, 24
      %v3092 = vld [vmem:[%s3091] sm:$0xf]
      %v3093 = vld [vmem:[%s3091 + $0x4] sm:$0xf]
      %v3096 = vunpack.c.l.b16 %v3092
      %v3097 = vunpack.c.l.b16 %v3093
      %v3098 = vpack.c.b16 %v3097, %v3096
      %3100 = vmatprep.subr.bf16.mxu0 0
      %3101 = vmatpush1.bf16.msra.mxu0 0
      %3102 = vmatprep.subr.bf16.mxu0 0
      %3103 = vmatpush1.bf16.msra.mxu0 0
      %3104 = vmatprep.subr.bf16.mxu0 0
      %3105 = vmatpush1.bf16.msra.mxu0 0
      %3106 = vmatprep.subr.bf16.mxu0 0
      %3107 = vmatpush1.bf16.msra.mxu0 0
      %3108 = vmatprep.subr.bf16.mxu0 0
      %3109 = vmatpush1.bf16.msra.mxu0 0
      %3110 = vmatprep.subr.bf16.mxu0 0
      %3111 = vmatpush1.bf16.msra.mxu0 0
      %3112 = vmatprep.subr.bf16.mxu0 0
      %3113 = vmatpush1.bf16.msra.mxu0 0
      %3114 = vmatprep.subr.bf16.mxu0 0
      %3115 = vmatpush1.bf16.msra.mxu0 %v3098
      %3116 = vmatprep.subr.bf16.mxu0 0
      %3117 = vmatpush2.bf16.msra.mxu0 0
      %3118 = vmatprep.subr.bf16.mxu0 0
      %3119 = vmatpush2.bf16.msra.mxu0 0
      %3120 = vmatprep.subr.bf16.mxu0 0
      %3121 = vmatpush2.bf16.msra.mxu0 0
      %3122 = vmatprep.subr.bf16.mxu0 0
      %3123 = vmatpush2.bf16.msra.mxu0 0
      %3124 = vmatprep.subr.bf16.mxu0 0
      %3125 = vmatpush2.bf16.msra.mxu0 0
      %3126 = vmatprep.subr.bf16.mxu0 0
      %3127 = vmatpush2.bf16.msra.mxu0 0
      %3128 = vmatprep.subr.bf16.mxu0 0
      %3129 = vmatpush2.bf16.msra.mxu0 0
      %3130 = vmatprep.subr.bf16.mxu0 0
      %3131 = vmatpush2.bf16.msra.mxu0 0
      %3132 = vmatprep.mubr.bf16.mxu0 0
      %3133 = vmatmul.mubr.bf16.gmra.mxu0 %v2908
      %v3134 = vpop.f32.mrf.mxu0
      %v3135 = vadd.f32 0.0, %v3134
      %v3136 = vpop.f32.mrf.mxu0
      %v3137 = vpop.f32.mrf.mxu0
      %v3138 = vadd.f32 0.0, %v3137
      %v3139 = vpop.f32.mrf.mxu0
      %3140 = vmatprep.mubr.bf16.mxu0 0
      %3141 = vmatmul.mubr.bf16.gmra.mxu0 %v2911
      %v3142 = vpop.f32.mrf.mxu0
      %v3143 = vadd.f32 0.0, %v3142
      %v3144 = vpop.f32.mrf.mxu0
      %v3145 = vpop.f32.mrf.mxu0
      %v3146 = vadd.f32 0.0, %v3145
      %v3147 = vpop.f32.mrf.mxu0
      %3148 = vdwg.mxu0
      %3149 = vst.msk [vmem:[#allocation4 + $0x60] sm:$0xff] %vm2962, %v3135
      %3150 = vst.msk [vmem:[#allocation4 + $0x68] sm:$0xff] %vm2962, %v3138
      %3151 = vst.msk [vmem:[#allocation4 + $0x70] sm:$0xff] %vm2962, %v3143
      %3152 = vst.msk [vmem:[#allocation4 + $0x78] sm:$0xff] %vm2962, %v3146
      %s3153 = scalar_lea.vmem %s7, 32
      %v3154 = vld [vmem:[%s3153] sm:$0xf]
      %v3155 = vld [vmem:[%s3153 + $0x4] sm:$0xf]
      %v3158 = vunpack.c.l.b16 %v3154
      %v3159 = vunpack.c.l.b16 %v3155
      %v3160 = vpack.c.b16 %v3159, %v3158
      %3162 = vmatprep.subr.bf16.mxu0 0
      %3163 = vmatpush1.bf16.msra.mxu0 0
      %3164 = vmatprep.subr.bf16.mxu0 0
      %3165 = vmatpush1.bf16.msra.mxu0 0
      %3166 = vmatprep.subr.bf16.mxu0 0
      %3167 = vmatpush1.bf16.msra.mxu0 0
      %3168 = vmatprep.subr.bf16.mxu0 0
      %3169 = vmatpush1.bf16.msra.mxu0 0
      %3170 = vmatprep.subr.bf16.mxu0 0
      %3171 = vmatpush1.bf16.msra.mxu0 0
      %3172 = vmatprep.subr.bf16.mxu0 0
      %3173 = vmatpush1.bf16.msra.mxu0 0
      %3174 = vmatprep.subr.bf16.mxu0 0
      %3175 = vmatpush1.bf16.msra.mxu0 0
      %3176 = vmatprep.subr.bf16.mxu0 0
      %3177 = vmatpush1.bf16.msra.mxu0 %v3160
      %3178 = vmatprep.subr.bf16.mxu0 0
      %3179 = vmatpush2.bf16.msra.mxu0 0
      %3180 = vmatprep.subr.bf16.mxu0 0
      %3181 = vmatpush2.bf16.msra.mxu0 0
      %3182 = vmatprep.subr.bf16.mxu0 0
      %3183 = vmatpush2.bf16.msra.mxu0 0
      %3184 = vmatprep.subr.bf16.mxu0 0
      %3185 = vmatpush2.bf16.msra.mxu0 0
      %3186 = vmatprep.subr.bf16.mxu0 0
      %3187 = vmatpush2.bf16.msra.mxu0 0
      %3188 = vmatprep.subr.bf16.mxu0 0
      %3189 = vmatpush2.bf16.msra.mxu0 0
      %3190 = vmatprep.subr.bf16.mxu0 0
      %3191 = vmatpush2.bf16.msra.mxu0 0
      %3192 = vmatprep.subr.bf16.mxu0 0
      %3193 = vmatpush2.bf16.msra.mxu0 0
      %3194 = vmatprep.mubr.bf16.mxu0 0
      %3195 = vmatmul.mubr.bf16.gmra.mxu0 %v2908
      %v3196 = vpop.f32.mrf.mxu0
      %v3197 = vadd.f32 0.0, %v3196
      %v3198 = vpop.f32.mrf.mxu0
      %v3199 = vpop.f32.mrf.mxu0
      %v3200 = vadd.f32 0.0, %v3199
      %v3201 = vpop.f32.mrf.mxu0
      %3202 = vmatprep.mubr.bf16.mxu0 0
      %3203 = vmatmul.mubr.bf16.gmra.mxu0 %v2911
      %v3204 = vpop.f32.mrf.mxu0
      %v3205 = vadd.f32 0.0, %v3204
      %v3206 = vpop.f32.mrf.mxu0
      %v3207 = vpop.f32.mrf.mxu0
      %v3208 = vadd.f32 0.0, %v3207
      %v3209 = vpop.f32.mrf.mxu0
      %3210 = vdwg.mxu0
      %3211 = vst.msk [vmem:[#allocation4 + $0x80] sm:$0xff] %vm2962, %v3197
      %3212 = vst.msk [vmem:[#allocation4 + $0x88] sm:$0xff] %vm2962, %v3200
      %3213 = vst.msk [vmem:[#allocation4 + $0x90] sm:$0xff] %vm2962, %v3205
      %3214 = vst.msk [vmem:[#allocation4 + $0x98] sm:$0xff] %vm2962, %v3208
      %s3215 = scalar_lea.vmem %s7, 40
      %v3216 = vld [vmem:[%s3215] sm:$0xf]
      %v3217 = vld [vmem:[%s3215 + $0x4] sm:$0xf]
      %v3220 = vunpack.c.l.b16 %v3216
      %v3221 = vunpack.c.l.b16 %v3217
      %v3222 = vpack.c.b16 %v3221, %v3220
      %3224 = vmatprep.subr.bf16.mxu0 0
      %3225 = vmatpush1.bf16.msra.mxu0 0
      %3226 = vmatprep.subr.bf16.mxu0 0
      %3227 = vmatpush1.bf16.msra.mxu0 0
      %3228 = vmatprep.subr.bf16.mxu0 0
      %3229 = vmatpush1.bf16.msra.mxu0 0
      %3230 = vmatprep.subr.bf16.mxu0 0
      %3231 = vmatpush1.bf16.msra.mxu0 0
      %3232 = vmatprep.subr.bf16.mxu0 0
      %3233 = vmatpush1.bf16.msra.mxu0 0
      %3234 = vmatprep.subr.bf16.mxu0 0
      %3235 = vmatpush1.bf16.msra.mxu0 0
      %3236 = vmatprep.subr.bf16.mxu0 0
      %3237 = vmatpush1.bf16.msra.mxu0 0
      %3238 = vmatprep.subr.bf16.mxu0 0
      %3239 = vmatpush1.bf16.msra.mxu0 %v3222
      %3240 = vmatprep.subr.bf16.mxu0 0
      %3241 = vmatpush2.bf16.msra.mxu0 0
      %3242 = vmatprep.subr.bf16.mxu0 0
      %3243 = vmatpush2.bf16.msra.mxu0 0
      %3244 = vmatprep.subr.bf16.mxu0 0
      %3245 = vmatpush2.bf16.msra.mxu0 0
      %3246 = vmatprep.subr.bf16.mxu0 0
      %3247 = vmatpush2.bf16.msra.mxu0 0
      %3248 = vmatprep.subr.bf16.mxu0 0
      %3249 = vmatpush2.bf16.msra.mxu0 0
      %3250 = vmatprep.subr.bf16.mxu0 0
      %3251 = vmatpush2.bf16.msra.mxu0 0
      %3252 = vmatprep.subr.bf16.mxu0 0
      %3253 = vmatpush2.bf16.msra.mxu0 0
      %3254 = vmatprep.subr.bf16.mxu0 0
      %3255 = vmatpush2.bf16.msra.mxu0 0
      %3256 = vmatprep.mubr.bf16.mxu0 0
      %3257 = vmatmul.mubr.bf16.gmra.mxu0 %v2908
      %v3258 = vpop.f32.mrf.mxu0
      %v3259 = vadd.f32 0.0, %v3258
      %v3260 = vpop.f32.mrf.mxu0
      %v3261 = vpop.f32.mrf.mxu0
      %v3262 = vadd.f32 0.0, %v3261
      %v3263 = vpop.f32.mrf.mxu0
      %3264 = vmatprep.mubr.bf16.mxu0 0
      %3265 = vmatmul.mubr.bf16.gmra.mxu0 %v2911
      %v3266 = vpop.f32.mrf.mxu0
      %v3267 = vadd.f32 0.0, %v3266
      %v3268 = vpop.f32.mrf.mxu0
      %v3269 = vpop.f32.mrf.mxu0
      %v3270 = vadd.f32 0.0, %v3269
      %v3271 = vpop.f32.mrf.mxu0
      %3272 = vdwg.mxu0
      %3273 = vst.msk [vmem:[#allocation4 + $0xa0] sm:$0xff] %vm2962, %v3259
      %3274 = vst.msk [vmem:[#allocation4 + $0xa8] sm:$0xff] %vm2962, %v3262
      %3275 = vst.msk [vmem:[#allocation4 + $0xb0] sm:$0xff] %vm2962, %v3267
      %3276 = vst.msk [vmem:[#allocation4 + $0xb8] sm:$0xff] %vm2962, %v3270
      %s3277 = scalar_lea.vmem %s7, 48
      %v3278 = vld [vmem:[%s3277] sm:$0xf]
      %v3279 = vld [vmem:[%s3277 + $0x4] sm:$0xf]
      %v3282 = vunpack.c.l.b16 %v3278
      %v3283 = vunpack.c.l.b16 %v3279
      %v3284 = vpack.c.b16 %v3283, %v3282
      %3286 = vmatprep.subr.bf16.mxu0 0
      %3287 = vmatpush1.bf16.msra.mxu0 0
      %3288 = vmatprep.subr.bf16.mxu0 0
      %3289 = vmatpush1.bf16.msra.mxu0 0
      %3290 = vmatprep.subr.bf16.mxu0 0
      %3291 = vmatpush1.bf16.msra.mxu0 0
      %3292 = vmatprep.subr.bf16.mxu0 0
      %3293 = vmatpush1.bf16.msra.mxu0 0
      %3294 = vmatprep.subr.bf16.mxu0 0
      %3295 = vmatpush1.bf16.msra.mxu0 0
      %3296 = vmatprep.subr.bf16.mxu0 0
      %3297 = vmatpush1.bf16.msra.mxu0 0
      %3298 = vmatprep.subr.bf16.mxu0 0
      %3299 = vmatpush1.bf16.msra.mxu0 0
      %3300 = vmatprep.subr.bf16.mxu0 0
      %3301 = vmatpush1.bf16.msra.mxu0 %v3284
      %3302 = vmatprep.subr.bf16.mxu0 0
      %3303 = vmatpush2.bf16.msra.mxu0 0
      %3304 = vmatprep.subr.bf16.mxu0 0
      %3305 = vmatpush2.bf16.msra.mxu0 0
      %3306 = vmatprep.subr.bf16.mxu0 0
      %3307 = vmatpush2.bf16.msra.mxu0 0
      %3308 = vmatprep.subr.bf16.mxu0 0
      %3309 = vmatpush2.bf16.msra.mxu0 0
      %3310 = vmatprep.subr.bf16.mxu0 0
      %3311 = vmatpush2.bf16.msra.mxu0 0
      %3312 = vmatprep.subr.bf16.mxu0 0
      %3313 = vmatpush2.bf16.msra.mxu0 0
      %3314 = vmatprep.subr.bf16.mxu0 0
      %3315 = vmatpush2.bf16.msra.mxu0 0
      %3316 = vmatprep.subr.bf16.mxu0 0
      %3317 = vmatpush2.bf16.msra.mxu0 0
      %3318 = vmatprep.mubr.bf16.mxu0 0
      %3319 = vmatmul.mubr.bf16.gmra.mxu0 %v2908
      %v3320 = vpop.f32.mrf.mxu0
      %v3321 = vadd.f32 0.0, %v3320
      %v3322 = vpop.f32.mrf.mxu0
      %v3323 = vpop.f32.mrf.mxu0
      %v3324 = vadd.f32 0.0, %v3323
      %v3325 = vpop.f32.mrf.mxu0
      %3326 = vmatprep.mubr.bf16.mxu0 0
      %3327 = vmatmul.mubr.bf16.gmra.mxu0 %v2911
      %v3328 = vpop.f32.mrf.mxu0
      %v3329 = vadd.f32 0.0, %v3328
      %v3330 = vpop.f32.mrf.mxu0
      %v3331 = vpop.f32.mrf.mxu0
      %v3332 = vadd.f32 0.0, %v3331
      %v3333 = vpop.f32.mrf.mxu0
      %3334 = vdwg.mxu0
      %3335 = vst.msk [vmem:[#allocation4 + $0xc0] sm:$0xff] %vm2962, %v3321
      %3336 = vst.msk [vmem:[#allocation4 + $0xc8] sm:$0xff] %vm2962, %v3324
      %3337 = vst.msk [vmem:[#allocation4 + $0xd0] sm:$0xff] %vm2962, %v3329
      %3338 = vst.msk [vmem:[#allocation4 + $0xd8] sm:$0xff] %vm2962, %v3332
      %s3339 = scalar_lea.vmem %s7, 56
      %v3340 = vld [vmem:[%s3339] sm:$0xf]
      %v3341 = vld [vmem:[%s3339 + $0x4] sm:$0xf]
      %v3344 = vunpack.c.l.b16 %v3340
      %v3345 = vunpack.c.l.b16 %v3341
      %v3346 = vpack.c.b16 %v3345, %v3344
      %3348 = vmatprep.subr.bf16.mxu0 0
      %3349 = vmatpush1.bf16.msra.mxu0 0
      %3350 = vmatprep.subr.bf16.mxu0 0
      %3351 = vmatpush1.bf16.msra.mxu0 0
      %3352 = vmatprep.subr.bf16.mxu0 0
      %3353 = vmatpush1.bf16.msra.mxu0 0
      %3354 = vmatprep.subr.bf16.mxu0 0
      %3355 = vmatpush1.bf16.msra.mxu0 0
      %3356 = vmatprep.subr.bf16.mxu0 0
      %3357 = vmatpush1.bf16.msra.mxu0 0
      %3358 = vmatprep.subr.bf16.mxu0 0
      %3359 = vmatpush1.bf16.msra.mxu0 0
      %3360 = vmatprep.subr.bf16.mxu0 0
      %3361 = vmatpush1.bf16.msra.mxu0 0
      %3362 = vmatprep.subr.bf16.mxu0 0
      %3363 = vmatpush1.bf16.msra.mxu0 %v3346
      %3364 = vmatprep.subr.bf16.mxu0 0
      %3365 = vmatpush2.bf16.msra.mxu0 0
      %3366 = vmatprep.subr.bf16.mxu0 0
      %3367 = vmatpush2.bf16.msra.mxu0 0
      %3368 = vmatprep.subr.bf16.mxu0 0
      %3369 = vmatpush2.bf16.msra.mxu0 0
      %3370 = vmatprep.subr.bf16.mxu0 0
      %3371 = vmatpush2.bf16.msra.mxu0 0
      %3372 = vmatprep.subr.bf16.mxu0 0
      %3373 = vmatpush2.bf16.msra.mxu0 0
      %3374 = vmatprep.subr.bf16.mxu0 0
      %3375 = vmatpush2.bf16.msra.mxu0 0
      %3376 = vmatprep.subr.bf16.mxu0 0
      %3377 = vmatpush2.bf16.msra.mxu0 0
      %3378 = vmatprep.subr.bf16.mxu0 0
      %3379 = vmatpush2.bf16.msra.mxu0 0
      %3380 = vmatprep.mubr.bf16.mxu0 0
      %3381 = vmatmul.mubr.bf16.gmra.mxu0 %v2908
      %v3382 = vpop.f32.mrf.mxu0
      %v3383 = vadd.f32 0.0, %v3382
      %v3384 = vpop.f32.mrf.mxu0
      %v3385 = vpop.f32.mrf.mxu0
      %v3386 = vadd.f32 0.0, %v3385
      %v3387 = vpop.f32.mrf.mxu0
      %3388 = vmatprep.mubr.bf16.mxu0 0
      %3389 = vmatmul.mubr.bf16.gmra.mxu0 %v2911
      %v3390 = vpop.f32.mrf.mxu0
      %v3391 = vadd.f32 0.0, %v3390
      %v3392 = vpop.f32.mrf.mxu0
      %v3393 = vpop.f32.mrf.mxu0
      %v3394 = vadd.f32 0.0, %v3393
      %v3395 = vpop.f32.mrf.mxu0
      %3396 = vdwg.mxu0
      %3397 = vst.msk [vmem:[#allocation4 + $0xe0] sm:$0xff] %vm2962, %v3383
      %3398 = vst.msk [vmem:[#allocation4 + $0xe8] sm:$0xff] %vm2962, %v3386
      %3399 = vst.msk [vmem:[#allocation4 + $0xf0] sm:$0xff] %vm2962, %v3391
      %3400 = vst.msk [vmem:[#allocation4 + $0xf8] sm:$0xff] %vm2962, %v3394
      %s3401 = scalar_lea.vmem %s7, 64
      %v3402 = vld [vmem:[%s3401] sm:$0xf]
      %v3403 = vld [vmem:[%s3401 + $0x4] sm:$0xf]
      %v3406 = vunpack.c.l.b16 %v3402
      %v3407 = vunpack.c.l.b16 %v3403
      %v3408 = vpack.c.b16 %v3407, %v3406
      %3410 = vmatprep.subr.bf16.mxu0 0
      %3411 = vmatpush1.bf16.msra.mxu0 0
      %3412 = vmatprep.subr.bf16.mxu0 0
      %3413 = vmatpush1.bf16.msra.mxu0 0
      %3414 = vmatprep.subr.bf16.mxu0 0
      %3415 = vmatpush1.bf16.msra.mxu0 0
      %3416 = vmatprep.subr.bf16.mxu0 0
      %3417 = vmatpush1.bf16.msra.mxu0 0
      %3418 = vmatprep.subr.bf16.mxu0 0
      %3419 = vmatpush1.bf16.msra.mxu0 0
      %3420 = vmatprep.subr.bf16.mxu0 0
      %3421 = vmatpush1.bf16.msra.mxu0 0
      %3422 = vmatprep.subr.bf16.mxu0 0
      %3423 = vmatpush1.bf16.msra.mxu0 0
      %3424 = vmatprep.subr.bf16.mxu0 0
      %3425 = vmatpush1.bf16.msra.mxu0 %v3408
      %3426 = vmatprep.subr.bf16.mxu0 0
      %3427 = vmatpush2.bf16.msra.mxu0 0
      %3428 = vmatprep.subr.bf16.mxu0 0
      %3429 = vmatpush2.bf16.msra.mxu0 0
      %3430 = vmatprep.subr.bf16.mxu0 0
      %3431 = vmatpush2.bf16.msra.mxu0 0
      %3432 = vmatprep.subr.bf16.mxu0 0
      %3433 = vmatpush2.bf16.msra.mxu0 0
      %3434 = vmatprep.subr.bf16.mxu0 0
      %3435 = vmatpush2.bf16.msra.mxu0 0
      %3436 = vmatprep.subr.bf16.mxu0 0
      %3437 = vmatpush2.bf16.msra.mxu0 0
      %3438 = vmatprep.subr.bf16.mxu0 0
      %3439 = vmatpush2.bf16.msra.mxu0 0
      %3440 = vmatprep.subr.bf16.mxu0 0
      %3441 = vmatpush2.bf16.msra.mxu0 0
      %3442 = vmatprep.mubr.bf16.mxu0 0
      %3443 = vmatmul.mubr.bf16.gmra.mxu0 %v2908
      %v3444 = vpop.f32.mrf.mxu0
      %v3445 = vadd.f32 0.0, %v3444
      %v3446 = vpop.f32.mrf.mxu0
      %v3447 = vpop.f32.mrf.mxu0
      %v3448 = vadd.f32 0.0, %v3447
      %v3449 = vpop.f32.mrf.mxu0
      %3450 = vmatprep.mubr.bf16.mxu0 0
      %3451 = vmatmul.mubr.bf16.gmra.mxu0 %v2911
      %v3452 = vpop.f32.mrf.mxu0
      %v3453 = vadd.f32 0.0, %v3452
      %v3454 = vpop.f32.mrf.mxu0
      %v3455 = vpop.f32.mrf.mxu0
      %v3456 = vadd.f32 0.0, %v3455
      %v3457 = vpop.f32.mrf.mxu0
      %3458 = vdwg.mxu0
      %3459 = vst.msk [vmem:[#allocation4 + $0x100] sm:$0xff] %vm2962, %v3445
      %3460 = vst.msk [vmem:[#allocation4 + $0x108] sm:$0xff] %vm2962, %v3448
      %3461 = vst.msk [vmem:[#allocation4 + $0x110] sm:$0xff] %vm2962, %v3453
      %3462 = vst.msk [vmem:[#allocation4 + $0x118] sm:$0xff] %vm2962, %v3456
      %v3463 = vld [vmem:[%s8] sm:$0xff]
      %v3464 = vld [vmem:[%s8 + $0x8] sm:$0xff]
      %v3465 = vld [vmem:[%s8 + $0x10] sm:$0xff]
      %v3466 = vld [vmem:[%s8 + $0x18] sm:$0xff]
      %v3467 = vld [vmem:[%s8 + $0x20] sm:$0xff]
      %v3468 = vld [vmem:[%s8 + $0x28] sm:$0xff]
      %v3469 = vld [vmem:[%s8 + $0x30] sm:$0xff]
      %v3470 = vld [vmem:[%s8 + $0x38] sm:$0xff]
      %v3471 = vld [vmem:[%s8 + $0x40] sm:$0xff]
      %v3472 = vld [vmem:[%s8 + $0x48] sm:$0xff]
      %v3473 = vld [vmem:[%s8 + $0x50] sm:$0xff]
      %v3474 = vld [vmem:[%s8 + $0x58] sm:$0xff]
      %v3475 = vld [vmem:[%s8 + $0x60] sm:$0xff]
      %v3476 = vld [vmem:[%s8 + $0x68] sm:$0xff]
      %v3477 = vld [vmem:[%s8 + $0x70] sm:$0xff]
      %v3478 = vld [vmem:[%s8 + $0x78] sm:$0xff]
      %v3479 = vld [vmem:[%s8 + $0x80] sm:$0xff]
      %v3480 = vld [vmem:[%s8 + $0x88] sm:$0xff]
      %v3481 = vld [vmem:[%s8 + $0x90] sm:$0xff]
      %v3482 = vld [vmem:[%s8 + $0x98] sm:$0xff]
      %v3483 = vld [vmem:[%s8 + $0xa0] sm:$0xff]
      %v3484 = vld [vmem:[%s8 + $0xa8] sm:$0xff]
      %v3485 = vld [vmem:[%s8 + $0xb0] sm:$0xff]
      %v3486 = vld [vmem:[%s8 + $0xb8] sm:$0xff]
      %v3487 = vld [vmem:[#allocation4] sm:$0xff]
      %v3488 = vld [vmem:[#allocation4 + $0x8] sm:$0xff]
      %v3489 = vld [vmem:[#allocation4 + $0x10] sm:$0xff]
      %v3490 = vld [vmem:[#allocation4 + $0x18] sm:$0xff]
      %v3491 = vld [vmem:[#allocation4 + $0x20] sm:$0xff]
      %v3492 = vld [vmem:[#allocation4 + $0x28] sm:$0xff]
      %v3493 = vld [vmem:[#allocation4 + $0x30] sm:$0xff]
      %v3494 = vld [vmem:[#allocation4 + $0x38] sm:$0xff]
      %v3495 = vld [vmem:[#allocation4 + $0x40] sm:$0xff]
      %v3496 = vld [vmem:[#allocation4 + $0x48] sm:$0xff]
      %v3497 = vld [vmem:[#allocation4 + $0x50] sm:$0xff]
      %v3498 = vld [vmem:[#allocation4 + $0x58] sm:$0xff]
      %v3499 = vld [vmem:[#allocation4 + $0x60] sm:$0xff]
      %v3500 = vld [vmem:[#allocation4 + $0x68] sm:$0xff]
      %v3501 = vld [vmem:[#allocation4 + $0x70] sm:$0xff]
      %v3502 = vld [vmem:[#allocation4 + $0x78] sm:$0xff]
      %v3503 = vld [vmem:[#allocation4 + $0x80] sm:$0xff]
      %v3504 = vld [vmem:[#allocation4 + $0x88] sm:$0xff]
      %v3505 = vld [vmem:[#allocation4 + $0x90] sm:$0xff]
      %v3506 = vld [vmem:[#allocation4 + $0x98] sm:$0xff]
      %v3507 = vld [vmem:[#allocation4 + $0xa0] sm:$0xff]
      %v3508 = vld [vmem:[#allocation4 + $0xa8] sm:$0xff]
      %v3509 = vld [vmem:[#allocation4 + $0xb0] sm:$0xff]
      %v3510 = vld [vmem:[#allocation4 + $0xb8] sm:$0xff]
      %v3511 = vld [vmem:[#allocation4 + $0xc0] sm:$0xff]
      %v3512 = vld [vmem:[#allocation4 + $0xc8] sm:$0xff]
      %v3513 = vld [vmem:[#allocation4 + $0xd0] sm:$0xff]
      %v3514 = vld [vmem:[#allocation4 + $0xd8] sm:$0xff]
      %v3515 = vld [vmem:[#allocation4 + $0xe0] sm:$0xff]
      %v3516 = vld [vmem:[#allocation4 + $0xe8] sm:$0xff]
      %v3517 = vld [vmem:[#allocation4 + $0xf0] sm:$0xff]
      %v3518 = vld [vmem:[#allocation4 + $0xf8] sm:$0xff]
      %v3519 = vld [vmem:[#allocation4 + $0x100] sm:$0xff]
      %v3520 = vld [vmem:[#allocation4 + $0x108] sm:$0xff]
      %v3521 = vld [vmem:[#allocation4 + $0x110] sm:$0xff]
      %v3522 = vld [vmem:[#allocation4 + $0x118] sm:$0xff]
      %v3523 = vld [vmem:[%s9] sm:$0xff]
      %v3524 = vld [vmem:[%s9 + $0x8] sm:$0xff]
      %v3525 = vld [vmem:[%s9 + $0x10] sm:$0xff]
      %v3526 = vld [vmem:[%s9 + $0x18] sm:$0xff]
      %v3527 = vld [vmem:[%s9 + $0x20] sm:$0xff]
      %v3528 = vld [vmem:[%s9 + $0x28] sm:$0xff]
      %v3529 = vld [vmem:[%s9 + $0x30] sm:$0xff]
      %v3530 = vld [vmem:[%s9 + $0x38] sm:$0xff]
      %3532 = vset.pattern.permute.xlu0 0
      %3533 = vperm.xlu0 %3532, %v3523
      %v3534 = vpop.permute.xlu0 %3533
      %3537 = vset.pattern.permute.xlu0 0
      %3538 = vperm.xlu0 %3537, %v3524
      %v3539 = vpop.permute.xlu0 %3538
      %3542 = vset.pattern.permute.xlu0 0
      %3543 = vperm.xlu0 %3542, %v3525
      %v3544 = vpop.permute.xlu0 %3543
      %3547 = vset.pattern.permute.xlu0 0
      %3548 = vperm.xlu0 %3547, %v3526
      %v3549 = vpop.permute.xlu0 %3548
      %3552 = vset.pattern.permute.xlu0 0
      %3553 = vperm.xlu0 %3552, %v3527
      %v3554 = vpop.permute.xlu0 %3553
      %3557 = vset.pattern.permute.xlu0 0
      %3558 = vperm.xlu0 %3557, %v3528
      %v3559 = vpop.permute.xlu0 %3558
      %3562 = vset.pattern.permute.xlu0 0
      %3563 = vperm.xlu0 %3562, %v3529
      %v3564 = vpop.permute.xlu0 %3563
      %3567 = vset.pattern.permute.xlu0 0
      %3568 = vperm.xlu0 %3567, %v3530
      %v3569 = vpop.permute.xlu0 %3568
      %vm3571 = vcmask 261120
      %v3573 = vsel %vm3571, %v3465, 0
      %v3576 = vsel %vm3571, %v3468, 0
      %v3579 = vsel %vm3571, %v3471, 0
      %v3582 = vsel %vm3571, %v3474, 0
      %v3585 = vsel %vm3571, %v3477, 0
      %v3588 = vsel %vm3571, %v3480, 0
      %v3591 = vsel %vm3571, %v3483, 0
      %v3594 = vsel %vm3571, %v3486, 0
      %3596 = vmatprep.subr.mxu0 0.0
      %3597 = vmatpush1.msra.mxu0 %v3502
      %3598 = vmatprep.subr.mxu0 0.0
      %3599 = vmatpush1.msra.mxu0 %v3501
      %3600 = vmatprep.subr.mxu0 0.0
      %3601 = vmatpush1.msra.mxu0 %v3500
      %3602 = vmatprep.subr.mxu0 0.0
      %3603 = vmatpush1.msra.mxu0 %v3499
      %3604 = vmatprep.subr.mxu0 0.0
      %3605 = vmatpush1.msra.mxu0 %v3498
      %3606 = vmatprep.subr.mxu0 0.0
      %3607 = vmatpush1.msra.mxu0 %v3497
      %3608 = vmatprep.subr.mxu0 0.0
      %3609 = vmatpush1.msra.mxu0 %v3496
      %3610 = vmatprep.subr.mxu0 0.0
      %3611 = vmatpush1.msra.mxu0 %v3495
      %3612 = vmatprep.subr.mxu0 0.0
      %3613 = vmatpush1.msra.mxu0 %v3494
      %3614 = vmatprep.subr.mxu0 0.0
      %3615 = vmatpush1.msra.mxu0 %v3493
      %3616 = vmatprep.subr.mxu0 0.0
      %3617 = vmatpush1.msra.mxu0 %v3492
      %3618 = vmatprep.subr.mxu0 0.0
      %3619 = vmatpush1.msra.mxu0 %v3491
      %3620 = vmatprep.subr.mxu0 0.0
      %3621 = vmatpush1.msra.mxu0 %v3490
      %3622 = vmatprep.subr.mxu0 0.0
      %3623 = vmatpush1.msra.mxu0 %v3489
      %3624 = vmatprep.subr.mxu0 0.0
      %3625 = vmatpush1.msra.mxu0 %v3488
      %3626 = vmatprep.subr.mxu0 0.0
      %3627 = vmatpush1.msra.mxu0 %v3487
      %3628 = vmatprep.subr.mxu0 0.0
      %3629 = vmatpush2.msra.mxu0 %v3518
      %3630 = vmatprep.subr.mxu0 0.0
      %3631 = vmatpush2.msra.mxu0 %v3517
      %3632 = vmatprep.subr.mxu0 0.0
      %3633 = vmatpush2.msra.mxu0 %v3516
      %3634 = vmatprep.subr.mxu0 0.0
      %3635 = vmatpush2.msra.mxu0 %v3515
      %3636 = vmatprep.subr.mxu0 0.0
      %3637 = vmatpush2.msra.mxu0 %v3514
      %3638 = vmatprep.subr.mxu0 0.0
      %3639 = vmatpush2.msra.mxu0 %v3513
      %3640 = vmatprep.subr.mxu0 0.0
      %3641 = vmatpush2.msra.mxu0 %v3512
      %3642 = vmatprep.subr.mxu0 0.0
      %3643 = vmatpush2.msra.mxu0 %v3511
      %3644 = vmatprep.subr.mxu0 0.0
      %3645 = vmatpush2.msra.mxu0 %v3510
      %3646 = vmatprep.subr.mxu0 0.0
      %3647 = vmatpush2.msra.mxu0 %v3509
      %3648 = vmatprep.subr.mxu0 0.0
      %3649 = vmatpush2.msra.mxu0 %v3508
      %3650 = vmatprep.subr.mxu0 0.0
      %3651 = vmatpush2.msra.mxu0 %v3507
      %3652 = vmatprep.subr.mxu0 0.0
      %3653 = vmatpush2.msra.mxu0 %v3506
      %3654 = vmatprep.subr.mxu0 0.0
      %3655 = vmatpush2.msra.mxu0 %v3505
      %3656 = vmatprep.subr.mxu0 0.0
      %3657 = vmatpush2.msra.mxu0 %v3504
      %3658 = vmatprep.subr.mxu0 0.0
      %3659 = vmatpush2.msra.mxu0 %v3503
      %3660 = vmatprep.mubr.f32.mxu0 %v3464
      %3661 = vmatmul.mubr.f32.gmra.mxu0 %v3463
      %v3662 = vpop.f32.mrf.mxu0
      %v3663 = vadd.f32 %v3534, %v3662
      %v3664 = vpop.f32.mrf.mxu0
      %3665 = vmatprep.mubr.f32.mxu0 %v3467
      %3666 = vmatmul.mubr.f32.gmra.mxu0 %v3466
      %v3667 = vpop.f32.mrf.mxu0
      %v3668 = vadd.f32 %v3539, %v3667
      %v3669 = vpop.f32.mrf.mxu0
      %3670 = vmatprep.mubr.f32.mxu0 %v3470
      %3671 = vmatmul.mubr.f32.gmra.mxu0 %v3469
      %v3672 = vpop.f32.mrf.mxu0
      %v3673 = vadd.f32 %v3544, %v3672
      %v3674 = vpop.f32.mrf.mxu0
      %3675 = vmatprep.mubr.f32.mxu0 %v3473
      %3676 = vmatmul.mubr.f32.gmra.mxu0 %v3472
      %v3677 = vpop.f32.mrf.mxu0
      %v3678 = vadd.f32 %v3549, %v3677
      %v3679 = vpop.f32.mrf.mxu0
      %3680 = vmatprep.mubr.f32.mxu0 %v3476
      %3681 = vmatmul.mubr.f32.gmra.mxu0 %v3475
      %v3682 = vpop.f32.mrf.mxu0
      %v3683 = vadd.f32 %v3554, %v3682
      %v3684 = vpop.f32.mrf.mxu0
      %3685 = vmatprep.mubr.f32.mxu0 %v3479
      %3686 = vmatmul.mubr.f32.gmra.mxu0 %v3478
      %v3687 = vpop.f32.mrf.mxu0
      %v3688 = vadd.f32 %v3559, %v3687
      %v3689 = vpop.f32.mrf.mxu0
      %3690 = vmatprep.mubr.f32.mxu0 %v3482
      %3691 = vmatmul.mubr.f32.gmra.mxu0 %v3481
      %v3692 = vpop.f32.mrf.mxu0
      %v3693 = vadd.f32 %v3564, %v3692
      %v3694 = vpop.f32.mrf.mxu0
      %3695 = vmatprep.mubr.f32.mxu0 %v3485
      %3696 = vmatmul.mubr.f32.gmra.mxu0 %v3484
      %v3697 = vpop.f32.mrf.mxu0
      %v3698 = vadd.f32 %v3569, %v3697
      %v3699 = vpop.f32.mrf.mxu0
      %3700 = vdwg.mxu0
      %3701 = vmatprep.subr.mxu0 0.0
      %3702 = vmatpush1.msra.mxu0 0.0
      %3703 = vmatprep.subr.mxu0 0.0
      %3704 = vmatpush1.msra.mxu0 0.0
      %3705 = vmatprep.subr.mxu0 0.0
      %3706 = vmatpush1.msra.mxu0 0.0
      %3707 = vmatprep.subr.mxu0 0.0
      %3708 = vmatpush1.msra.mxu0 0.0
      %3709 = vmatprep.subr.mxu0 0.0
      %3710 = vmatpush1.msra.mxu0 0.0
      %3711 = vmatprep.subr.mxu0 0.0
      %3712 = vmatpush1.msra.mxu0 0.0
      %3713 = vmatprep.subr.mxu0 0.0
      %3714 = vmatpush1.msra.mxu0 0.0
      %3715 = vmatprep.subr.mxu0 0.0
      %3716 = vmatpush1.msra.mxu0 0.0
      %3717 = vmatprep.subr.mxu0 0.0
      %3718 = vmatpush1.msra.mxu0 0.0
      %3719 = vmatprep.subr.mxu0 0.0
      %3720 = vmatpush1.msra.mxu0 0.0
      %3721 = vmatprep.subr.mxu0 0.0
      %3722 = vmatpush1.msra.mxu0 0.0
      %3723 = vmatprep.subr.mxu0 0.0
      %3724 = vmatpush1.msra.mxu0 0.0
      %3725 = vmatprep.subr.mxu0 0.0
      %3726 = vmatpush1.msra.mxu0 %v3522
      %3727 = vmatprep.subr.mxu0 0.0
      %3728 = vmatpush1.msra.mxu0 %v3521
      %3729 = vmatprep.subr.mxu0 0.0
      %3730 = vmatpush1.msra.mxu0 %v3520
      %3731 = vmatprep.subr.mxu0 0.0
      %3732 = vmatpush1.msra.mxu0 %v3519
      %3733 = vmatprep.subr.mxu0 0.0
      %3734 = vmatpush2.msra.mxu0 0.0
      %3735 = vmatprep.subr.mxu0 0.0
      %3736 = vmatpush2.msra.mxu0 0.0
      %3737 = vmatprep.subr.mxu0 0.0
      %3738 = vmatpush2.msra.mxu0 0.0
      %3739 = vmatprep.subr.mxu0 0.0
      %3740 = vmatpush2.msra.mxu0 0.0
      %3741 = vmatprep.subr.mxu0 0.0
      %3742 = vmatpush2.msra.mxu0 0.0
      %3743 = vmatprep.subr.mxu0 0.0
      %3744 = vmatpush2.msra.mxu0 0.0
      %3745 = vmatprep.subr.mxu0 0.0
      %3746 = vmatpush2.msra.mxu0 0.0
      %3747 = vmatprep.subr.mxu0 0.0
      %3748 = vmatpush2.msra.mxu0 0.0
      %3749 = vmatprep.subr.mxu0 0.0
      %3750 = vmatpush2.msra.mxu0 0.0
      %3751 = vmatprep.subr.mxu0 0.0
      %3752 = vmatpush2.msra.mxu0 0.0
      %3753 = vmatprep.subr.mxu0 0.0
      %3754 = vmatpush2.msra.mxu0 0.0
      %3755 = vmatprep.subr.mxu0 0.0
      %3756 = vmatpush2.msra.mxu0 0.0
      %3757 = vmatprep.subr.mxu0 0.0
      %3758 = vmatpush2.msra.mxu0 0.0
      %3759 = vmatprep.subr.mxu0 0.0
      %3760 = vmatpush2.msra.mxu0 0.0
      %3761 = vmatprep.subr.mxu0 0.0
      %3762 = vmatpush2.msra.mxu0 0.0
      %3763 = vmatprep.subr.mxu0 0.0
      %3764 = vmatpush2.msra.mxu0 0.0
      %3765 = vmatprep.mubr.f32.mxu0 0.0
      %3766 = vmatmul.mubr.f32.gmra.mxu0 %v3573
      %v3767 = vpop.f32.mrf.mxu0
      %v3768 = vadd.f32 %v3663, %v3767
      %v3769 = vpop.f32.mrf.mxu0
      %3770 = vmatprep.mubr.f32.mxu0 0.0
      %3771 = vmatmul.mubr.f32.gmra.mxu0 %v3576
      %v3772 = vpop.f32.mrf.mxu0
      %v3773 = vadd.f32 %v3668, %v3772
      %v3774 = vpop.f32.mrf.mxu0
      %3775 = vmatprep.mubr.f32.mxu0 0.0
      %3776 = vmatmul.mubr.f32.gmra.mxu0 %v3579
      %v3777 = vpop.f32.mrf.mxu0
      %v3778 = vadd.f32 %v3673, %v3777
      %v3779 = vpop.f32.mrf.mxu0
      %3780 = vmatprep.mubr.f32.mxu0 0.0
      %3781 = vmatmul.mubr.f32.gmra.mxu0 %v3582
      %v3782 = vpop.f32.mrf.mxu0
      %v3783 = vadd.f32 %v3678, %v3782
      %v3784 = vpop.f32.mrf.mxu0
      %3785 = vmatprep.mubr.f32.mxu0 0.0
      %3786 = vmatmul.mubr.f32.gmra.mxu0 %v3585
      %v3787 = vpop.f32.mrf.mxu0
      %v3788 = vadd.f32 %v3683, %v3787
      %v3789 = vpop.f32.mrf.mxu0
      %3790 = vmatprep.mubr.f32.mxu0 0.0
      %3791 = vmatmul.mubr.f32.gmra.mxu0 %v3588
      %v3792 = vpop.f32.mrf.mxu0
      %v3793 = vadd.f32 %v3688, %v3792
      %v3794 = vpop.f32.mrf.mxu0
      %3795 = vmatprep.mubr.f32.mxu0 0.0
      %3796 = vmatmul.mubr.f32.gmra.mxu0 %v3591
      %v3797 = vpop.f32.mrf.mxu0
      %v3798 = vadd.f32 %v3693, %v3797
      %v3799 = vpop.f32.mrf.mxu0
      %3800 = vmatprep.mubr.f32.mxu0 0.0
      %3801 = vmatmul.mubr.f32.gmra.mxu0 %v3594
      %v3802 = vpop.f32.mrf.mxu0
      %v3803 = vadd.f32 %v3698, %v3802
      %v3804 = vpop.f32.mrf.mxu0
      %3805 = vdwg.mxu0
      %v3806 = vmax.f32 %v3768, 0.0
      %v3807 = vmax.f32 %v3773, 0.0
      %v3808 = vmax.f32 %v3778, 0.0
      %v3809 = vmax.f32 %v3783, 0.0
      %v3810 = vmax.f32 %v3788, 0.0
      %v3811 = vmax.f32 %v3793, 0.0
      %v3812 = vmax.f32 %v3798, 0.0
      %v3813 = vmax.f32 %v3803, 0.0
      %v3814 = vsel %vm2962, %v3806, 0.0
      %3815 = vadd.xlane.f32.xlu0 %v3814
      %v3816 = vpop.xlane.xlu0 %3815
      %v3817 = vsel %vm2962, %v3807, 0.0
      %3818 = vadd.xlane.f32.xlu0 %v3817
      %v3819 = vpop.xlane.xlu0 %3818
      %v3820 = vsel %vm2962, %v3808, 0.0
      %3821 = vadd.xlane.f32.xlu0 %v3820
      %v3822 = vpop.xlane.xlu0 %3821
      %v3823 = vsel %vm2962, %v3809, 0.0
      %3824 = vadd.xlane.f32.xlu0 %v3823
      %v3825 = vpop.xlane.xlu0 %3824
      %v3826 = vsel %vm2962, %v3810, 0.0
      %3827 = vadd.xlane.f32.xlu0 %v3826
      %v3828 = vpop.xlane.xlu0 %3827
      %v3829 = vsel %vm2962, %v3811, 0.0
      %3830 = vadd.xlane.f32.xlu0 %v3829
      %v3831 = vpop.xlane.xlu0 %3830
      %v3832 = vsel %vm2962, %v3812, 0.0
      %3833 = vadd.xlane.f32.xlu0 %v3832
      %v3834 = vpop.xlane.xlu0 %3833
      %v3835 = vsel %vm2962, %v3813, 0.0
      %3836 = vadd.xlane.f32.xlu0 %v3835
      %v3837 = vpop.xlane.xlu0 %3836
      %v3838 = vrcp.pop 4.0
      %v3839 = vmul.f32 %v3816, %v3838
      %v3840 = vmul.f32 %v3819, %v3838
      %v3841 = vmul.f32 %v3822, %v3838
      %v3842 = vmul.f32 %v3825, %v3838
      %v3843 = vmul.f32 %v3828, %v3838
      %v3844 = vmul.f32 %v3831, %v3838
      %v3845 = vmul.f32 %v3834, %v3838
      %v3846 = vmul.f32 %v3837, %v3838
      %v3847 = vld [vmem:[%s10] sm:$0xff]
      %v3848 = vld [vmem:[%s10 + $0x8] sm:$0xff]
      %v3849 = vld [vmem:[%s10 + $0x10] sm:$0xff]
      %v3850 = vld [vmem:[%s10 + $0x18] sm:$0xff]
      %v3851 = vld [vmem:[%s10 + $0x20] sm:$0xff]
      %v3852 = vld [vmem:[%s10 + $0x28] sm:$0xff]
      %v3853 = vld [vmem:[%s10 + $0x30] sm:$0xff]
      %v3854 = vld [vmem:[%s10 + $0x38] sm:$0xff]
      %v3855 = vld [vmem:[%s10 + $0x40] sm:$0xff]
      %v3856 = vld [vmem:[%s10 + $0x48] sm:$0xff]
      %v3857 = vld [vmem:[%s10 + $0x50] sm:$0xff]
      %v3858 = vld [vmem:[%s10 + $0x58] sm:$0xff]
      %v3859 = vld [vmem:[%s10 + $0x60] sm:$0xff]
      %v3860 = vld [vmem:[%s10 + $0x68] sm:$0xff]
      %v3861 = vld [vmem:[%s10 + $0x70] sm:$0xff]
      %v3862 = vld [vmem:[%s10 + $0x78] sm:$0xff]
      %v3863 = vld [vmem:[%s10 + $0x80] sm:$0xff]
      %v3864 = vld [vmem:[%s10 + $0x88] sm:$0xff]
      %v3865 = vld [vmem:[%s10 + $0x90] sm:$0xff]
      %v3866 = vld [vmem:[%s10 + $0x98] sm:$0xff]
      %v3867 = vld [vmem:[%s10 + $0xa0] sm:$0xff]
      %v3868 = vld [vmem:[%s10 + $0xa8] sm:$0xff]
      %v3869 = vld [vmem:[%s10 + $0xb0] sm:$0xff]
      %v3870 = vld [vmem:[%s10 + $0xb8] sm:$0xff]
      %v3871 = vld [vmem:[%s10 + $0xc0] sm:$0xff]
      %v3872 = vld [vmem:[%s10 + $0xc8] sm:$0xff]
      %v3873 = vld [vmem:[%s10 + $0xd0] sm:$0xff]
      %v3874 = vld [vmem:[%s10 + $0xd8] sm:$0xff]
      %v3875 = vld [vmem:[%s10 + $0xe0] sm:$0xff]
      %v3876 = vld [vmem:[%s10 + $0xe8] sm:$0xff]
      %v3877 = vld [vmem:[%s10 + $0xf0] sm:$0xff]
      %v3878 = vld [vmem:[%s10 + $0xf8] sm:$0xff]
      %v3879 = vmul.f32 %v3839, %v3847
      %v3880 = vmul.f32 %v3839, %v3848
      %v3881 = vmul.f32 %v3839, %v3849
      %v3882 = vmul.f32 %v3839, %v3850
      %v3883 = vmul.f32 %v3840, %v3851
      %v3884 = vmul.f32 %v3840, %v3852
      %v3885 = vmul.f32 %v3840, %v3853
      %v3886 = vmul.f32 %v3840, %v3854
      %v3887 = vmul.f32 %v3841, %v3855
      %v3888 = vmul.f32 %v3841, %v3856
      %v3889 = vmul.f32 %v3841, %v3857
      %v3890 = vmul.f32 %v3841, %v3858
      %v3891 = vmul.f32 %v3842, %v3859
      %v3892 = vmul.f32 %v3842, %v3860
      %v3893 = vmul.f32 %v3842, %v3861
      %v3894 = vmul.f32 %v3842, %v3862
      %v3895 = vmul.f32 %v3843, %v3863
      %v3896 = vmul.f32 %v3843, %v3864
      %v3897 = vmul.f32 %v3843, %v3865
      %v3898 = vmul.f32 %v3843, %v3866
      %v3899 = vmul.f32 %v3844, %v3867
      %v3900 = vmul.f32 %v3844, %v3868
      %v3901 = vmul.f32 %v3844, %v3869
      %v3902 = vmul.f32 %v3844, %v3870
      %v3903 = vmul.f32 %v3845, %v3871
      %v3904 = vmul.f32 %v3845, %v3872
      %v3905 = vmul.f32 %v3845, %v3873
      %v3906 = vmul.f32 %v3845, %v3874
      %v3907 = vmul.f32 %v3846, %v3875
      %v3908 = vmul.f32 %v3846, %v3876
      %v3909 = vmul.f32 %v3846, %v3877
      %v3910 = vmul.f32 %v3846, %v3878
      %v3911 = vadd.f32 %v3879, %v3883
      %v3912 = vadd.f32 %v3911, %v3887
      %v3913 = vadd.f32 %v3912, %v3891
      %v3914 = vadd.f32 %v3913, %v3895
      %v3915 = vadd.f32 %v3914, %v3899
      %v3916 = vadd.f32 %v3915, %v3903
      %v3917 = vadd.f32 %v3916, %v3907
      %v3918 = vrot.slane %v3917, 4
      %v3919 = vadd.f32 %v3917, %v3918
      %v3920 = vrot.slane %v3919, 2
      %v3921 = vadd.f32 %v3919, %v3920
      %v3922 = vrot.slane %v3921, 1
      %v3923 = vadd.f32 %v3921, %v3922
      %v3924 = vadd.f32 %v3880, %v3884
      %v3925 = vadd.f32 %v3924, %v3888
      %v3926 = vadd.f32 %v3925, %v3892
      %v3927 = vadd.f32 %v3926, %v3896
      %v3928 = vadd.f32 %v3927, %v3900
      %v3929 = vadd.f32 %v3928, %v3904
      %v3930 = vadd.f32 %v3929, %v3908
      %v3931 = vrot.slane %v3930, 4
      %v3932 = vadd.f32 %v3930, %v3931
      %v3933 = vrot.slane %v3932, 2
      %v3934 = vadd.f32 %v3932, %v3933
      %v3935 = vrot.slane %v3934, 1
      %v3936 = vadd.f32 %v3934, %v3935
      %v3937 = vadd.f32 %v3881, %v3885
      %v3938 = vadd.f32 %v3937, %v3889
      %v3939 = vadd.f32 %v3938, %v3893
      %v3940 = vadd.f32 %v3939, %v3897
      %v3941 = vadd.f32 %v3940, %v3901
      %v3942 = vadd.f32 %v3941, %v3905
      %v3943 = vadd.f32 %v3942, %v3909
      %v3944 = vrot.slane %v3943, 4
      %v3945 = vadd.f32 %v3943, %v3944
      %v3946 = vrot.slane %v3945, 2
      %v3947 = vadd.f32 %v3945, %v3946
      %v3948 = vrot.slane %v3947, 1
      %v3949 = vadd.f32 %v3947, %v3948
      %v3950 = vadd.f32 %v3882, %v3886
      %v3951 = vadd.f32 %v3950, %v3890
      %v3952 = vadd.f32 %v3951, %v3894
      %v3953 = vadd.f32 %v3952, %v3898
      %v3954 = vadd.f32 %v3953, %v3902
      %v3955 = vadd.f32 %v3954, %v3906
      %v3956 = vadd.f32 %v3955, %v3910
      %v3957 = vrot.slane %v3956, 4
      %v3958 = vadd.f32 %v3956, %v3957
      %v3959 = vrot.slane %v3958, 2
      %v3960 = vadd.f32 %v3958, %v3959
      %v3961 = vrot.slane %v3960, 1
      %v3962 = vadd.f32 %v3960, %v3961
      %v3963 = vld [vmem:[%s11] sm:$0xf]
      %v3965 = vlaneseq
      %v3966 = vshrl.u32 %v3965, 7
      %v3967 = vsub.s32 0, %v3966
      %v3968 = vrot.slane %v3963, %v3967
      %v3969 = vlaneseq
      %v3970 = vshrl.u32 %v3969, 7
      %v3971 = vsub.s32 1, %v3970
      %v3972 = vrot.slane %v3963, %v3971
      %v3973 = vlaneseq
      %v3974 = vshrl.u32 %v3973, 7
      %v3975 = vsub.s32 2, %v3974
      %v3976 = vrot.slane %v3963, %v3975
      %v3977 = vlaneseq
      %v3978 = vshrl.u32 %v3977, 7
      %v3979 = vsub.s32 3, %v3978
      %v3980 = vrot.slane %v3963, %v3979
      %v3985 = vadd.f32 %v3923, %v3968
      %v3986 = vadd.f32 %v3936, %v3972
      %v3987 = vadd.f32 %v3949, %v3976
      %v3988 = vadd.f32 %v3962, %v3980
      %v3993 = vcombine.low %v3985, %v3986
      %v3994 = vcombine.low %v3987, %v3988
      %v3996 = vunpack.c.l.s4 1966171168
      %v3997 = vunpack.c.0.s8 %v3996
      %v3998 = vlaneseq
      %v3999 = vshrl.u32 %v3998, 7
      %v4000 = vsub.s32 %v3997, %v3999
      %v4001 = vrot.slane %v3993, %v4000
      %v4003 = vunpack.c.l.s4 1966171168
      %v4004 = vunpack.c.0.s8 %v4003
      %v4005 = vlaneseq
      %v4006 = vshrl.u32 %v4005, 7
      %v4007 = vsub.s32 %v4004, %v4006
      %v4008 = vrot.slane %v3994, %v4007
      %v4009 = vcombine.low %v4001, %v4008
      %v4011 = vunpack.c.l.s4 1966171168
      %v4012 = vunpack.c.0.s8 %v4011
      %v4013 = vlaneseq
      %v4014 = vshrl.u32 %v4013, 7
      %v4015 = vsub.s32 %v4012, %v4014
      %v4016 = vrot.slane %v4009, %v4015
      %v4018 = vlaneseq
      %vm4019 = vcmp.ge.s32.totalorder %v4018, 0
      %vm4020 = vcmp.lt.s32.totalorder %v4018, 512
      %vm4021 = vmand %vm4019, %vm4020
      %4022 = vst.msk [vmem:[%s411] sm:$0xf] %vm4021, %v4016
      %p4023 = scmp.lt.s32.totalorder %s23, 1
      %s4024 = scalar_select %p4023, %s23, 1
      %s4025 = smul.addr %s4024, 4
      %s4026 = scalar_lea.vmem %s12, %s4025
      // Predicated region
      $region69: #{fused_cnn_forward.1} parent=67 // pred_check
        %p4027 = pneg %p298
      $region70: #{fused_cnn_forward.1} parent=67 // pred_check_branch
        %4029 = sbr.rel (%p4027) target = $region72
      $region71: #{fused_cnn_forward.1} parent=67 // pred_region
        _
      $region72: #{fused_cnn_forward.1} parent=67 // pred_fallthru
        _
    $region68: #{fused_cnn_forward.1} parent=5 // pred_fallthru
      _
    %p4030 = scmp.le.s32.totalorder 2, %s18
    // Predicated region
    $region73: #{fused_cnn_forward.1} parent=5 // pred_check
      %p4031 = pneg %p4030
    $region74: #{fused_cnn_forward.1} parent=5 // pred_check_branch
      %4033 = sbr.rel (%p4031) target = $region76
    $region75: #{fused_cnn_forward.1} parent=5 // pred_region
      %s4034 = ssub.s32 %s18, 2
      // Predicated region
      $region77: #{fused_cnn_forward.1} parent=75 // pred_check
        %p4035 = pneg %p304
      $region78: #{fused_cnn_forward.1} parent=75 // pred_check_branch
        %4037 = sbr.rel (%p4035) target = $region80
      $region79: #{fused_cnn_forward.1} parent=75 // pred_region
        %p4038 = scmp.lt.s32.totalorder %s24, 1
        %s4039 = scalar_select %p4038, %s24, 1
        %s4040 = smul.addr %s4039, 4
        %s4041 = scalar_lea.vmem %s12, %s4040
      $region80: #{fused_cnn_forward.1} parent=75 // pred_fallthru
        _
    $region76: #{fused_cnn_forward.1} parent=5 // pred_fallthru
      _
  $region6: #{fused_cnn_forward.1} parent=0 // loop_footer
    %s22 = sadd.s32 1, %s18
  $region7: #{fused_cnn_forward.1} parent=0 // loop_footer_branch
    %17 = sbr.rel target = $region3
  $region8: #{fused_cnn_forward.1} parent=0 // loop_exit
    _

</llo_original>
